<compile_context>
chip_gen: v7x
topology: tpu7x:2x2x1
jax: 0.10.0
libtpu: 0.0.40
codegen_flags: <defaults>
</compile_context>

<pallas_src>
import numpy as np
import jax
import jax.numpy as jnp
from jax import lax
from jax.experimental import pallas as pl
from jax.experimental.pallas import tpu as pltpu


# ----------------------------------------------------------------------------
# Fused LAdapter forward:
#   phase 0, tile 0 prologue: slab-DMA embeddings tiles, select x[j] = emb[eot[j], j]
#   phase 0, per tile i:      hw2_i = relu((adj_i @ x) @ W1 + b1) @ W2
#   phase 1, per tile i:      g_i = adj_i @ hw2 + b2;  slab write-back adds g to
#                             the eot row of every column (scatter-add, in place)
# ----------------------------------------------------------------------------
def ladapter_forward(embeddings, eot_idx, adj, params):
    L, N, D = embeddings.shape
    w1, b1, w2, b2 = params
    H = w1.shape[1]
    assert D % 128 == 0 and H % 128 == 0, "embed/hidden widths must be lane-dense"

    tm = 128                               # MXU-native M; TODO(synk): sweep 256 on v6e/v7x
    n_rt = pl.cdiv(N, tm)                  # node-row tiles
    N_pad = n_rt * tm
    last_w = N - (n_rt - 1) * tm           # ragged width of the final tile (static)
    last_c0 = (n_rt - 1) * tm
    last_slot = (n_rt - 1) % 2

    # bf16 matmul operands (f32 accumulation on the MXU), f32 biases.
    adj_p = (jnp.zeros((N_pad, N_pad), jnp.float32)
             .at[:N, :N].set(adj.astype(jnp.float32)).astype(jnp.bfloat16))
    eot_p = jnp.zeros((N_pad, 1), jnp.int32).at[:N, 0].set(eot_idx.astype(jnp.int32))
    w1_bf = w1.astype(jnp.bfloat16)
    w2_bf = w2.astype(jnp.bfloat16)
    b1_f = b1.reshape(1, H).astype(jnp.float32)
    b2_f = b2.reshape(1, D).astype(jnp.float32)

    def kernel(eot_ref, emb_ref, adj_ref, w1_ref, b1_ref, w2_ref, b2_ref,
               out_ref, x_bf_sc, hw2_bf_sc, slab_sc, rd_sem, wr_sem):
        p = pl.program_id(0)               # 0: gather + layer 1,  1: layer 2 + scatter
        i = pl.program_id(1)               # node-row tile
        row0 = pl.multiple_of(i * tm, tm)

        def slab_read(sl, c0, w):
            dst = slab_sc.at[sl] if w == tm else slab_sc.at[sl, :, pl.ds(0, w), :]
            return pltpu.make_async_copy(emb_ref.at[:, pl.ds(c0, w), :], dst,
                                         rd_sem.at[sl])

        def slab_write(sl, c0, w):
            src = slab_sc.at[sl] if w == tm else slab_sc.at[sl, :, pl.ds(0, w), :]
            return pltpu.make_async_copy(src, out_ref.at[:, pl.ds(c0, w), :],
                                         wr_sem.at[sl])

        def eot_hit(eot_col):
            # eot_col: [tm, 1] int32 -> bool [L, tm, D], True at each column's EOT row.
            l_ids = lax.broadcasted_iota(jnp.int32, (L, tm, D), 0)
            return l_ids == jnp.broadcast_to(eot_col[None, :, :], (L, tm, D))

        # ---------------- phase 0: one-shot gather prologue, then layer 1 ----------------
        @pl.when(p == 0)
        def _phase0():
            @pl.when(i == 0)
            def _gather_all_eot_rows():
                # Zero so the adjacency's zero pad columns never touch garbage VMEM.
                x_bf_sc[...] = jnp.zeros_like(x_bf_sc)

                def _w(t):
                    return min(tm, N - t * tm)

                slab_read(0, 0, _w(0)).start()
                for t in range(n_rt):                      # static unroll over row tiles
                    sl = t % 2
                    if t + 1 < n_rt:                       # prefetch next slab
                        slab_read(1 - sl, (t + 1) * tm, _w(t + 1)).start()
                    slab_read(sl, t * tm, _w(t)).wait()
                    hit = eot_hit(eot_ref[t * tm:(t + 1) * tm, :])
                    x_t = jnp.sum(jnp.where(hit, slab_sc[sl], 0.0), axis=0)  # [tm, D] f32
                    w = _w(t)
                    # bf16 mirror written once; pad rows stay zero.
                    x_bf_sc[t * tm:t * tm + w, :] = x_t[:w, :].astype(jnp.bfloat16)

            # Layer 1, re-associated: (adj @ x) @ W1 (cheaper when H >= D), fold in W2
            # immediately so h never persists.  f32 accumulate, f32 bias/ReLU epilogue.
            ax = jnp.dot(adj_ref[...], x_bf_sc[...],
                         preferred_element_type=jnp.float32)                 # [tm, D]
            h = jnp.maximum(
                jnp.dot(ax.astype(jnp.bfloat16), w1_ref[...],
                        preferred_element_type=jnp.float32) + b1_ref[...], 0.0)
            hw2 = jnp.dot(h.astype(jnp.bfloat16), w2_ref[...],
                          preferred_element_type=jnp.float32)                # [tm, D]
            hw2_bf_sc[pl.ds(row0, tm), :] = hw2.astype(jnp.bfloat16)

        # ------------- phase 1: layer 2 + masked slab write-back (scatter-add) -------------
        @pl.when(p == 1)
        def _phase1():
            slot = i % 2

            # Retire the write-back that used this slab slot two tiles ago.
            if n_rt > 2:
                @pl.when(i >= 2)
                def _():
                    slab_write(slot, 0, tm).wait()

            # Start this tile's embeddings slab read; overlaps the adj @ hw2 matmul.
            if n_rt > 1:
                @pl.when(i < n_rt - 1)
                def _():
                    slab_read(slot, row0, tm).start()

            @pl.when(i == n_rt - 1)
            def _():
                slab_read(last_slot, last_c0, last_w).start()

            g = jnp.dot(adj_ref[...], hw2_bf_sc[...],
                        preferred_element_type=jnp.float32) + b2_ref[...]    # [tm, D]

            if n_rt > 1:
                @pl.when(i < n_rt - 1)
                def _():
                    slab_read(slot, row0, tm).wait()

            @pl.when(i == n_rt - 1)
            def _():
                slab_read(last_slot, last_c0, last_w).wait()

            # scatter-ADD: embeddings[eot[j], j, :] += g[j, :]; other rows unchanged.
            hit = eot_hit(eot_ref[pl.ds(row0, tm), :])
            slab_sc[slot] = slab_sc[slot] + jnp.where(
                hit, jnp.broadcast_to(g[None, :, :], (L, tm, D)), 0.0)

            # Write back; full-width writes are retired at tile i+2 or in the drain.
            if n_rt > 1:
                @pl.when(i < n_rt - 1)
                def _():
                    slab_write(slot, row0, tm).start()

            @pl.when(i == n_rt - 1)
            def _():
                cp = slab_write(last_slot, last_c0, last_w)
                cp.start()
                cp.wait()
                if n_rt > 1:   # previous tile's full-width write-back is still in flight
                    slab_write(1 - last_slot, 0, tm).wait()

    grid_spec = pltpu.PrefetchScalarGridSpec(
        num_scalar_prefetch=0,
        grid=(2, n_rt),
        in_specs=[
            pl.BlockSpec((N_pad, 1), lambda p, i: (0, 0)),    # eot (padded), column vector
            pl.BlockSpec(memory_space=pl.ANY),                # embeddings (HBM, aliased)
            pl.BlockSpec((tm, N_pad), lambda p, i: (i, 0)),   # adj row tiles, bf16
            pl.BlockSpec((D, H), lambda p, i: (0, 0)),        # W1 (constant block, revisited)
            pl.BlockSpec((1, H), lambda p, i: (0, 0)),        # b1
            pl.BlockSpec((H, D), lambda p, i: (0, 0)),        # W2
            pl.BlockSpec((1, D), lambda p, i: (0, 0)),        # b2
        ],
        out_specs=pl.BlockSpec(memory_space=pl.ANY),          # aliased embeddings
        scratch_shapes=[
            pltpu.VMEM((N_pad, D), jnp.bfloat16),    # x_bf_sc   (gathered EOT rows, bf16)
            pltpu.VMEM((N_pad, D), jnp.bfloat16),    # hw2_bf_sc (h @ W2, bf16)
            pltpu.VMEM((2, L, tm, D), jnp.float32),  # embeddings slab ring (gather/scatter)
            pltpu.SemaphoreType.DMA((2,)),           # slab-read semaphores
            pltpu.SemaphoreType.DMA((2,)),           # slab write-back semaphores
        ],
    )

    out_emb = pl.pallas_call(
        kernel,
        out_shape=jax.ShapeDtypeStruct((L, N, D), embeddings.dtype),
        grid_spec=grid_spec,
        input_output_aliases={1: 0},   # embeddings updated in place (donate for true in-place)
        compiler_params=pltpu.CompilerParams(
            dimension_semantics=("arbitrary", "arbitrary"),   # fused phases must stay serial
            vmem_limit_bytes=32 * 1024 * 1024,
        ),
    )(eot_p, embeddings, adj_p, w1_bf, b1_f, w2_bf, b2_f)
    return out_emb, eot_idx


# ----------------------------------------------------------------------------
# Graph construction mirroring adj_from_pairs + row-normalization
# (normt_spm(adj, 'in') == D^-1 A), built dense in-script.
# ----------------------------------------------------------------------------
def build_adjacency(num_attrs, num_objs, pairs):
    num_words = num_attrs + num_objs
    n = num_words + len(pairs)
    adj = np.zeros((n, n), dtype=np.float32)

    def add(r, c):
        adj[r, c] += 1.0  # csr_matrix sums duplicate entries

    for i in range(num_words):          # word self-loops
        add(i, i)
    for idx, (a, o) in enumerate(pairs):
        ai, oi = a, o + num_attrs
        add(ai, oi); add(oi, ai)
        node = idx + num_words
        add(node, node)
        add(node, ai); add(node, oi)
        add(ai, node); add(oi, node)

    deg = adj.sum(axis=1, keepdims=True)
    deg[deg == 0.0] = 1.0
    return adj / deg                    # row-normalized D^-1 A


if __name__ == "__main__":
    # Synthetic dataset: 8 attrs, 8 objs, all 64 pairs -> 80 graph nodes
    num_attrs, num_objs = 8, 8
    pairs = [(a, o) for a in range(num_attrs) for o in range(num_objs)]
    N = num_attrs + num_objs + len(pairs)   # 80 graph nodes (padded to 128 inside)
    L = 8                                   # sequence (context) length
    D = 128                                 # embed_dim (lane-dense)
    H = 256                                 # GCN hidden width (lane-dense)
    # TODO(synk): config.hidden_layers string parsing (e.g. 'd4096,d') is
    # replaced by a fixed 2-layer GCN of width H.
    # NOTE: self.ln_1 (LayerNorm) is constructed in __init__ but never used in
    # forward(), so it is intentionally not applied here.

    adj = jnp.asarray(build_adjacency(num_attrs, num_objs, pairs))

    key = jax.random.PRNGKey(0)
    k1, k2, k3, k4, k5, k6 = jax.random.split(key, 6)
    embeddings = jax.random.normal(k1, (L, N, D), dtype=jnp.float32)
    eot_idx = jax.random.randint(k2, (N,), 0, L)
    w1 = jax.random.normal(k3, (D, H), dtype=jnp.float32) * 0.02
    b1 = jax.random.normal(k4, (1, H), dtype=jnp.float32) * 0.01
    w2 = jax.random.normal(k5, (H, D), dtype=jnp.float32) * 0.02
    b2 = jax.random.normal(k6, (1, D), dtype=jnp.float32) * 0.01
    params = (w1, b1, w2, b2)

    fwd = jax.jit(ladapter_forward)
    out_emb, out_idx = fwd(embeddings, eot_idx, adj, params)
    jax.block_until_ready(out_emb)

    # Plain-JAX f32 reference of the full forward pass (kernel uses bf16 matmul
    # operands with f32 accumulation, so allow a modest tolerance).
    cols = jnp.arange(N)
    eot = embeddings[eot_idx, cols]
    h_ref = jnp.maximum(adj @ (eot @ w1) + b1, 0.0)
    gcn_ref = adj @ (h_ref @ w2) + b2
    emb_ref = embeddings.at[eot_idx, cols].add(gcn_ref)
    err = float(jnp.max(jnp.abs(out_emb - emb_ref)))
    assert err < 2e-2, f"Pallas LAdapter mismatch: max |err| = {err}"
    assert jnp.array_equal(out_idx, eot_idx)

    print("KERNEL_OK")
</pallas_src>

<mosaic_0001>
module attributes {stable_mosaic.version = 11 : i64} {
  func.func @kernel(%arg0: i32, %arg1: i32, %arg2: memref<128x1xi32, #tpu.memory_space<vmem>>, %arg3: memref<8x80x128xf32, #tpu.memory_space<any>>, %arg4: memref<128x128xbf16, #tpu.memory_space<vmem>>, %arg5: memref<128x256xbf16, #tpu.memory_space<vmem>>, %arg6: memref<1x256xf32, #tpu.memory_space<vmem>>, %arg7: memref<256x128xbf16, #tpu.memory_space<vmem>>, %arg8: memref<1x128xf32, #tpu.memory_space<vmem>>, %arg9: memref<8x80x128xf32, #tpu.memory_space<any>>, %arg10: memref<128x128xbf16, #tpu.memory_space<vmem>>, %arg11: memref<128x128xbf16, #tpu.memory_space<vmem>>, %arg12: memref<2x8x128x128xf32, #tpu.memory_space<vmem>>, %arg13: memref<2x!tpu.dma_semaphore, #tpu.memory_space<semaphore_mem>>, %arg14: memref<2x!tpu.dma_semaphore, #tpu.memory_space<semaphore_mem>>) attributes {dimension_semantics = [#tpu.dimension_semantics<arbitrary>, #tpu.dimension_semantics<arbitrary>], iteration_bounds = array<i64: 2, 1>, scalar_prefetch = 0 : i64, scratch_operands = 5 : i64, tpu.core_type = #tpu.core_type<tc>, window_params = [{pipeline_mode = #tpu.pipeline_mode<synchronous>, transform_indices = @transform_0, window_bounds = array<i64: 128, 1>}, {}, {transform_indices = @transform_2, window_bounds = array<i64: 128, 128>}, {pipeline_mode = #tpu.pipeline_mode<synchronous>, transform_indices = @transform_3, window_bounds = array<i64: 128, 256>}, {pipeline_mode = #tpu.pipeline_mode<synchronous>, transform_indices = @transform_4, window_bounds = array<i64: 1, 256>}, {pipeline_mode = #tpu.pipeline_mode<synchronous>, transform_indices = @transform_5, window_bounds = array<i64: 256, 128>}, {pipeline_mode = #tpu.pipeline_mode<synchronous>, transform_indices = @transform_6, window_bounds = array<i64: 1, 128>}, {}]} {
    %c128_i32 = arith.constant 128 : i32
    %0 = arith.muli %arg1, %c128_i32 : i32
    %1 = tpu.assume_multiple %0, 128 : i32
    %c0_i32 = arith.constant 0 : i32
    %2 = arith.cmpi eq, %arg0, %c0_i32 : i32
    %3 = arith.extui %2 : i1 to i32
    %c0_i32_0 = arith.constant 0 : i32
    %4 = arith.cmpi ne, %3, %c0_i32_0 : i32
    scf.if %4 {
      %c0_i32_2 = arith.constant 0 : i32
      %8 = arith.cmpi eq, %arg1, %c0_i32_2 : i32
      %9 = arith.extui %8 : i1 to i32
      %c0_i32_3 = arith.constant 0 : i32
      %10 = arith.cmpi ne, %9, %c0_i32_3 : i32
      scf.if %10 {
        %cst_17 = arith.constant 0.000000e+00 : bf16
        %28 = vector.broadcast %cst_17 : bf16 to vector<128x128xbf16>
        %c0_18 = arith.constant 0 : index
        %c0_19 = arith.constant 0 : index
        %29 = vector.load %arg10[%c0_18, %c0_19] : memref<128x128xbf16, #tpu.memory_space<vmem>>, vector<128x128xbf16>
        tpu.vector_store %arg10[%c0_18, %c0_19], %28 {strides = array<i32>} : memref<128x128xbf16, #tpu.memory_space<vmem>>, vector<128x128xbf16>,
        %c0_i32_20 = arith.constant 0 : i32
        %c0_i32_21 = arith.constant 0 : i32
        %c0_i32_22 = arith.constant 0 : i32
        %c0_i32_23 = arith.constant 0 : i32
        %c0_i32_24 = arith.constant 0 : i32
        %30 = tpu.memref_slice %arg3[%c0_i32_22, %c0_i32_23, %c0_i32_24] : memref<8x80x128xf32, #tpu.memory_space<any>> -> memref<8x80x128xf32, #tpu.memory_space<any>>
        %c0_i32_25 = arith.constant 0 : i32
        %c0_i32_26 = arith.constant 0 : i32
        %c0_i32_27 = arith.constant 0 : i32
        %31 = tpu.memref_slice %arg12[%c0_i32_20, %c0_i32_25, %c0_i32_26, %c0_i32_27] : memref<2x8x128x128xf32, #tpu.memory_space<vmem>> -> memref<1x8x80x128xf32, #tpu.memory_space<vmem>>
        %32 = tpu.memref_squeeze %31 : memref<1x8x80x128xf32, #tpu.memory_space<vmem>> -> memref<8x80x128xf32, #tpu.memory_space<vmem>>
        %33 = tpu.memref_slice %arg13[%c0_i32_21] : memref<2x!tpu.dma_semaphore, #tpu.memory_space<semaphore_mem>> -> memref<1x!tpu.dma_semaphore, #tpu.memory_space<semaphore_mem>>
        %34 = tpu.memref_squeeze %33 : memref<1x!tpu.dma_semaphore, #tpu.memory_space<semaphore_mem>> -> memref<!tpu.dma_semaphore, #tpu.memory_space<semaphore_mem>>
        tpu.enqueue_dma source(%30 : memref<8x80x128xf32, #tpu.memory_space<any>>) target(%32 : memref<8x80x128xf32, #tpu.memory_space<vmem>>) target_semaphore(%34 : memref<!tpu.dma_semaphore, #tpu.memory_space<semaphore_mem>>)
        %c0_i32_28 = arith.constant 0 : i32
        %c0_i32_29 = arith.constant 0 : i32
        %c0_i32_30 = arith.constant 0 : i32
        %c0_i32_31 = arith.constant 0 : i32
        %c0_i32_32 = arith.constant 0 : i32
        %35 = tpu.memref_slice %arg3[%c0_i32_30, %c0_i32_31, %c0_i32_32] : memref<8x80x128xf32, #tpu.memory_space<any>> -> memref<8x80x128xf32, #tpu.memory_space<any>>
        %c0_i32_33 = arith.constant 0 : i32
        %c0_i32_34 = arith.constant 0 : i32
        %c0_i32_35 = arith.constant 0 : i32
        %36 = tpu.memref_slice %arg12[%c0_i32_28, %c0_i32_33, %c0_i32_34, %c0_i32_35] : memref<2x8x128x128xf32, #tpu.memory_space<vmem>> -> memref<1x8x80x128xf32, #tpu.memory_space<vmem>>
        %37 = tpu.memref_squeeze %36 : memref<1x8x80x128xf32, #tpu.memory_space<vmem>> -> memref<8x80x128xf32, #tpu.memory_space<vmem>>
        %38 = tpu.memref_slice %arg13[%c0_i32_29] : memref<2x!tpu.dma_semaphore, #tpu.memory_space<semaphore_mem>> -> memref<1x!tpu.dma_semaphore, #tpu.memory_space<semaphore_mem>>
        %39 = tpu.memref_squeeze %38 : memref<1x!tpu.dma_semaphore, #tpu.memory_space<semaphore_mem>> -> memref<!tpu.dma_semaphore, #tpu.memory_space<semaphore_mem>>
        tpu.wait_dma2 semaphore(%39 : memref<!tpu.dma_semaphore, #tpu.memory_space<semaphore_mem>>) src(%35 : memref<8x80x128xf32, #tpu.memory_space<any>>) dst(%37 : memref<8x80x128xf32, #tpu.memory_space<vmem>>)
        %c0_36 = arith.constant 0 : index
        %c0_37 = arith.constant 0 : index
        %40 = vector.load %arg2[%c0_36, %c0_37] : memref<128x1xi32, #tpu.memory_space<vmem>>, vector<128x1xi32>
        %41 = tpu.iota {dimensions = array<i32: 0>} : vector<8x128x128xi32>
        %42 = vector.shape_cast %40 : vector<128x1xi32> to vector<1x128x1xi32>
        %43 = vector.shape_cast %42 : vector<1x128x1xi32> to vector<1x128x1xi32>
        %44 = vector.broadcast %43 : vector<1x128x1xi32> to vector<8x128x128xi32>
        %45 = arith.cmpi eq, %41, %44 : vector<8x128x128xi32>
        %c0_38 = arith.constant 0 : index
        %c0_39 = arith.constant 0 : index
        %c0_40 = arith.constant 0 : index
        %c0_41 = arith.constant 0 : index
        %46 = vector.load %arg12[%c0_38, %c0_39, %c0_40, %c0_41] : memref<2x8x128x128xf32, #tpu.memory_space<vmem>>, vector<1x8x128x128xf32>
        %47 = vector.shape_cast %46 : vector<1x8x128x128xf32> to vector<8x128x128xf32>
        %cst_42 = arith.constant 0.000000e+00 : f32
        %48 = vector.broadcast %cst_42 : f32 to vector<8x128x128xf32>
        %49 = arith.select %45, %47, %48 : vector<8x128x128xi1>, vector<8x128x128xf32>
        %cst_43 = arith.constant dense<0.000000e+00> : vector<128x128xf32>
        %50 = vector.multi_reduction <add>, %49, %cst_43 [0] : vector<8x128x128xf32> to vector<128x128xf32>
        %51 = vector.extract_strided_slice %50 {offsets = [0, 0], sizes = [80, 128], strides = [1, 1]} : vector<128x128xf32> to vector<80x128xf32>
        %52 = arith.truncf %51 : vector<80x128xf32> to vector<80x128xbf16>
        %c0_44 = arith.constant 0 : index
        %c0_45 = arith.constant 0 : index
        %53 = vector.load %arg10[%c0_44, %c0_45] : memref<128x128xbf16, #tpu.memory_space<vmem>>, vector<80x128xbf16>
        tpu.vector_store %arg10[%c0_44, %c0_45], %52 {strides = array<i32>} : memref<128x128xbf16, #tpu.memory_space<vmem>>, vector<80x128xbf16>,
      } else {
      }
      %c0 = arith.constant 0 : index
      %c0_4 = arith.constant 0 : index
      %11 = vector.load %arg4[%c0, %c0_4] : memref<128x128xbf16, #tpu.memory_space<vmem>>, vector<128x128xbf16>
      %c0_5 = arith.constant 0 : index
      %c0_6 = arith.constant 0 : index
      %12 = vector.load %arg10[%c0_5, %c0_6] : memref<128x128xbf16, #tpu.memory_space<vmem>>, vector<128x128xbf16>
      %cst = arith.constant dense<0.000000e+00> : vector<128x128xf32>
      %13 = tpu.matmul %11, %12, %cst {dimension_numbers = #tpu.dot_dimension_numbers<[1], [0], [0], [1], [0, 0, 1, 1], [], []>} : vector<128x128xbf16>, vector<128x128xbf16>, vector<128x128xf32> -> vector<128x128xf32>
      %14 = arith.truncf %13 : vector<128x128xf32> to vector<128x128xbf16>
      %c0_7 = arith.constant 0 : index
      %c0_8 = arith.constant 0 : index
      %15 = vector.load %arg5[%c0_7, %c0_8] : memref<128x256xbf16, #tpu.memory_space<vmem>>, vector<128x256xbf16>
      %cst_9 = arith.constant dense<0.000000e+00> : vector<128x256xf32>
      %16 = tpu.matmul %14, %15, %cst_9 {dimension_numbers = #tpu.dot_dimension_numbers<[1], [0], [0], [1], [0, 0, 1, 1], [], []>} : vector<128x128xbf16>, vector<128x256xbf16>, vector<128x256xf32> -> vector<128x256xf32>
      %c0_10 = arith.constant 0 : index
      %c0_11 = arith.constant 0 : index
      %17 = vector.load %arg6[%c0_10, %c0_11] : memref<1x256xf32, #tpu.memory_space<vmem>>, vector<1x256xf32>
      %18 = vector.broadcast %17 : vector<1x256xf32> to vector<128x256xf32>
      %19 = arith.addf %16, %18 : vector<128x256xf32>
      %cst_12 = arith.constant 0.000000e+00 : f32
      %20 = vector.broadcast %cst_12 : f32 to vector<128x256xf32>
      %21 = arith.maximumf %19, %20 : vector<128x256xf32>
      %22 = arith.truncf %21 : vector<128x256xf32> to vector<128x256xbf16>
      %c0_13 = arith.constant 0 : index
      %c0_14 = arith.constant 0 : index
      %23 = vector.load %arg7[%c0_13, %c0_14] : memref<256x128xbf16, #tpu.memory_space<vmem>>, vector<256x128xbf16>
      %cst_15 = arith.constant dense<0.000000e+00> : vector<128x128xf32>
      %24 = tpu.matmul %22, %23, %cst_15 {dimension_numbers = #tpu.dot_dimension_numbers<[1], [0], [0], [1], [0, 0, 1, 1], [], []>} : vector<128x256xbf16>, vector<256x128xbf16>, vector<128x128xf32> -> vector<128x128xf32>
      %25 = arith.truncf %24 : vector<128x128xf32> to vector<128x128xbf16>
      %26 = arith.index_cast %1 : i32 to index
      %c0_16 = arith.constant 0 : index
      %27 = vector.load %arg11[%26, %c0_16] : memref<128x128xbf16, #tpu.memory_space<vmem>>, vector<128x128xbf16>
      tpu.vector_store %arg11[%26, %c0_16], %25 {strides = array<i32>} : memref<128x128xbf16, #tpu.memory_space<vmem>>, vector<128x128xbf16>,
    } else {
    }
    %c1_i32 = arith.constant 1 : i32
    %5 = arith.cmpi eq, %arg0, %c1_i32 : i32
    %6 = arith.extui %5 : i1 to i32
    %c0_i32_1 = arith.constant 0 : i32
    %7 = arith.cmpi ne, %6, %c0_i32_1 : i32
    scf.if %7 {
      %c2_i32 = arith.constant 2 : i32
      %c0_i32_2 = arith.constant 0 : i32
      %8 = arith.cmpi eq, %c2_i32, %c0_i32_2 : i32
      %c1_i32_3 = arith.constant 1 : i32
      %9 = arith.select %8, %c1_i32_3, %c2_i32 : i32
      %10 = arith.remsi %arg1, %9 : i32
      %c0_i32_4 = arith.constant 0 : i32
      %11 = arith.cmpi ne, %10, %c0_i32_4 : i32
      %c0_i32_5 = arith.constant 0 : i32
      %12 = arith.cmpi slt, %10, %c0_i32_5 : i32
      %c0_i32_6 = arith.constant 0 : i32
      %13 = arith.cmpi slt, %9, %c0_i32_6 : i32
      %14 = arith.xori %12, %13 : i1
      %15 = arith.andi %14, %11 : i1
      %16 = arith.addi %10, %9 : i32
      %17 = arith.select %15, %16, %10 : i32
      %c0_i32_7 = arith.constant 0 : i32
      %18 = arith.cmpi eq, %arg1, %c0_i32_7 : i32
      %19 = arith.extui %18 : i1 to i32
      %c0_i32_8 = arith.constant 0 : i32
      %20 = arith.cmpi ne, %19, %c0_i32_8 : i32
      scf.if %20 {
        %c0_i32_26 = arith.constant 0 : i32
        %c0_i32_27 = arith.constant 0 : i32
        %c0_i32_28 = arith.constant 0 : i32
        %c0_i32_29 = arith.constant 0 : i32
        %c0_i32_30 = arith.constant 0 : i32
        %53 = tpu.memref_slice %arg3[%c0_i32_28, %c0_i32_29, %c0_i32_30] : memref<8x80x128xf32, #tpu.memory_space<any>> -> memref<8x80x128xf32, #tpu.memory_space<any>>
        %c0_i32_31 = arith.constant 0 : i32
        %c0_i32_32 = arith.constant 0 : i32
        %c0_i32_33 = arith.constant 0 : i32
        %54 = tpu.memref_slice %arg12[%c0_i32_26, %c0_i32_31, %c0_i32_32, %c0_i32_33] : memref<2x8x128x128xf32, #tpu.memory_space<vmem>> -> memref<1x8x80x128xf32, #tpu.memory_space<vmem>>
        %55 = tpu.memref_squeeze %54 : memref<1x8x80x128xf32, #tpu.memory_space<vmem>> -> memref<8x80x128xf32, #tpu.memory_space<vmem>>
        %56 = tpu.memref_slice %arg13[%c0_i32_27] : memref<2x!tpu.dma_semaphore, #tpu.memory_space<semaphore_mem>> -> memref<1x!tpu.dma_semaphore, #tpu.memory_space<semaphore_mem>>
        %57 = tpu.memref_squeeze %56 : memref<1x!tpu.dma_semaphore, #tpu.memory_space<semaphore_mem>> -> memref<!tpu.dma_semaphore, #tpu.memory_space<semaphore_mem>>
        tpu.enqueue_dma source(%53 : memref<8x80x128xf32, #tpu.memory_space<any>>) target(%55 : memref<8x80x128xf32, #tpu.memory_space<vmem>>) target_semaphore(%57 : memref<!tpu.dma_semaphore, #tpu.memory_space<semaphore_mem>>)
      } else {
      }
      %c0 = arith.constant 0 : index
      %c0_9 = arith.constant 0 : index
      %21 = vector.load %arg4[%c0, %c0_9] : memref<128x128xbf16, #tpu.memory_space<vmem>>, vector<128x128xbf16>
      %c0_10 = arith.constant 0 : index
      %c0_11 = arith.constant 0 : index
      %22 = vector.load %arg11[%c0_10, %c0_11] : memref<128x128xbf16, #tpu.memory_space<vmem>>, vector<128x128xbf16>
      %cst = arith.constant dense<0.000000e+00> : vector<128x128xf32>
      %23 = tpu.matmul %21, %22, %cst {dimension_numbers = #tpu.dot_dimension_numbers<[1], [0], [0], [1], [0, 0, 1, 1], [], []>} : vector<128x128xbf16>, vector<128x128xbf16>, vector<128x128xf32> -> vector<128x128xf32>
      %c0_12 = arith.constant 0 : index
      %c0_13 = arith.constant 0 : index
      %24 = vector.load %arg8[%c0_12, %c0_13] : memref<1x128xf32, #tpu.memory_space<vmem>>, vector<1x128xf32>
      %25 = vector.broadcast %24 : vector<1x128xf32> to vector<128x128xf32>
      %26 = arith.addf %23, %25 : vector<128x128xf32>
      %c0_i32_14 = arith.constant 0 : i32
      %27 = arith.cmpi eq, %arg1, %c0_i32_14 : i32
      %28 = arith.extui %27 : i1 to i32
      %c0_i32_15 = arith.constant 0 : i32
      %29 = arith.cmpi ne, %28, %c0_i32_15 : i32
      scf.if %29 {
        %c0_i32_26 = arith.constant 0 : i32
        %c0_i32_27 = arith.constant 0 : i32
        %c0_i32_28 = arith.constant 0 : i32
        %c0_i32_29 = arith.constant 0 : i32
        %c0_i32_30 = arith.constant 0 : i32
        %53 = tpu.memref_slice %arg3[%c0_i32_28, %c0_i32_29, %c0_i32_30] : memref<8x80x128xf32, #tpu.memory_space<any>> -> memref<8x80x128xf32, #tpu.memory_space<any>>
        %c0_i32_31 = arith.constant 0 : i32
        %c0_i32_32 = arith.constant 0 : i32
        %c0_i32_33 = arith.constant 0 : i32
        %54 = tpu.memref_slice %arg12[%c0_i32_26, %c0_i32_31, %c0_i32_32, %c0_i32_33] : memref<2x8x128x128xf32, #tpu.memory_space<vmem>> -> memref<1x8x80x128xf32, #tpu.memory_space<vmem>>
        %55 = tpu.memref_squeeze %54 : memref<1x8x80x128xf32, #tpu.memory_space<vmem>> -> memref<8x80x128xf32, #tpu.memory_space<vmem>>
        %56 = tpu.memref_slice %arg13[%c0_i32_27] : memref<2x!tpu.dma_semaphore, #tpu.memory_space<semaphore_mem>> -> memref<1x!tpu.dma_semaphore, #tpu.memory_space<semaphore_mem>>
        %57 = tpu.memref_squeeze %56 : memref<1x!tpu.dma_semaphore, #tpu.memory_space<semaphore_mem>> -> memref<!tpu.dma_semaphore, #tpu.memory_space<semaphore_mem>>
        tpu.wait_dma2 semaphore(%57 : memref<!tpu.dma_semaphore, #tpu.memory_space<semaphore_mem>>) src(%53 : memref<8x80x128xf32, #tpu.memory_space<any>>) dst(%55 : memref<8x80x128xf32, #tpu.memory_space<vmem>>)
      } else {
      }
      %30 = arith.index_cast %1 : i32 to index
      %c0_16 = arith.constant 0 : index
      %31 = vector.load %arg2[%30, %c0_16] : memref<128x1xi32, #tpu.memory_space<vmem>>, vector<128x1xi32>
      %32 = tpu.iota {dimensions = array<i32: 0>} : vector<8x128x128xi32>
      %33 = vector.shape_cast %31 : vector<128x1xi32> to vector<1x128x1xi32>
      %34 = vector.shape_cast %33 : vector<1x128x1xi32> to vector<1x128x1xi32>
      %35 = vector.broadcast %34 : vector<1x128x1xi32> to vector<8x128x128xi32>
      %36 = arith.cmpi eq, %32, %35 : vector<8x128x128xi32>
      %37 = arith.index_cast %17 : i32 to index
      %c0_17 = arith.constant 0 : index
      %c0_18 = arith.constant 0 : index
      %c0_19 = arith.constant 0 : index
      %38 = vector.load %arg12[%37, %c0_17, %c0_18, %c0_19] : memref<2x8x128x128xf32, #tpu.memory_space<vmem>>, vector<1x8x128x128xf32>
      %39 = vector.shape_cast %38 : vector<1x8x128x128xf32> to vector<8x128x128xf32>
      %40 = vector.shape_cast %26 : vector<128x128xf32> to vector<1x128x128xf32>
      %41 = vector.shape_cast %40 : vector<1x128x128xf32> to vector<1x128x128xf32>
      %42 = vector.broadcast %41 : vector<1x128x128xf32> to vector<8x128x128xf32>
      %cst_20 = arith.constant 0.000000e+00 : f32
      %43 = vector.broadcast %cst_20 : f32 to vector<8x128x128xf32>
      %44 = arith.select %36, %42, %43 : vector<8x128x128xi1>, vector<8x128x128xf32>
      %45 = arith.addf %39, %44 : vector<8x128x128xf32>
      %46 = arith.index_cast %17 : i32 to index
      %c0_21 = arith.constant 0 : index
      %c0_22 = arith.constant 0 : index
      %c0_23 = arith.constant 0 : index
      %47 = vector.load %arg12[%46, %c0_21, %c0_22, %c0_23] : memref<2x8x128x128xf32, #tpu.memory_space<vmem>>, vector<1x8x128x128xf32>
      %48 = vector.shape_cast %47 : vector<1x8x128x128xf32> to vector<8x128x128xf32>
      %49 = vector.shape_cast %45 : vector<8x128x128xf32> to vector<1x8x128x128xf32>
      tpu.vector_store %arg12[%46, %c0_21, %c0_22, %c0_23], %49 {strides = array<i32>} : memref<2x8x128x128xf32, #tpu.memory_space<vmem>>, vector<1x8x128x128xf32>,
      %c0_i32_24 = arith.constant 0 : i32
      %50 = arith.cmpi eq, %arg1, %c0_i32_24 : i32
      %51 = arith.extui %50 : i1 to i32
      %c0_i32_25 = arith.constant 0 : i32
      %52 = arith.cmpi ne, %51, %c0_i32_25 : i32
      scf.if %52 {
        %c0_i32_26 = arith.constant 0 : i32
        %c0_i32_27 = arith.constant 0 : i32
        %c0_i32_28 = arith.constant 0 : i32
        %c0_i32_29 = arith.constant 0 : i32
        %c0_i32_30 = arith.constant 0 : i32
        %53 = tpu.memref_slice %arg12[%c0_i32_26, %c0_i32_28, %c0_i32_29, %c0_i32_30] : memref<2x8x128x128xf32, #tpu.memory_space<vmem>> -> memref<1x8x80x128xf32, #tpu.memory_space<vmem>>
        %54 = tpu.memref_squeeze %53 : memref<1x8x80x128xf32, #tpu.memory_space<vmem>> -> memref<8x80x128xf32, #tpu.memory_space<vmem>>
        %c0_i32_31 = arith.constant 0 : i32
        %c0_i32_32 = arith.constant 0 : i32
        %c0_i32_33 = arith.constant 0 : i32
        %55 = tpu.memref_slice %arg9[%c0_i32_31, %c0_i32_32, %c0_i32_33] : memref<8x80x128xf32, #tpu.memory_space<any>> -> memref<8x80x128xf32, #tpu.memory_space<any>>
        %56 = tpu.memref_slice %arg14[%c0_i32_27] : memref<2x!tpu.dma_semaphore, #tpu.memory_space<semaphore_mem>> -> memref<1x!tpu.dma_semaphore, #tpu.memory_space<semaphore_mem>>
        %57 = tpu.memref_squeeze %56 : memref<1x!tpu.dma_semaphore, #tpu.memory_space<semaphore_mem>> -> memref<!tpu.dma_semaphore, #tpu.memory_space<semaphore_mem>>
        tpu.enqueue_dma source(%54 : memref<8x80x128xf32, #tpu.memory_space<vmem>>) target(%55 : memref<8x80x128xf32, #tpu.memory_space<any>>) target_semaphore(%57 : memref<!tpu.dma_semaphore, #tpu.memory_space<semaphore_mem>>)
        %c0_i32_34 = arith.constant 0 : i32
        %c0_i32_35 = arith.constant 0 : i32
        %c0_i32_36 = arith.constant 0 : i32
        %c0_i32_37 = arith.constant 0 : i32
        %c0_i32_38 = arith.constant 0 : i32
        %58 = tpu.memref_slice %arg12[%c0_i32_34, %c0_i32_36, %c0_i32_37, %c0_i32_38] : memref<2x8x128x128xf32, #tpu.memory_space<vmem>> -> memref<1x8x80x128xf32, #tpu.memory_space<vmem>>
        %59 = tpu.memref_squeeze %58 : memref<1x8x80x128xf32, #tpu.memory_space<vmem>> -> memref<8x80x128xf32, #tpu.memory_space<vmem>>
        %c0_i32_39 = arith.constant 0 : i32
        %c0_i32_40 = arith.constant 0 : i32
        %c0_i32_41 = arith.constant 0 : i32
        %60 = tpu.memref_slice %arg9[%c0_i32_39, %c0_i32_40, %c0_i32_41] : memref<8x80x128xf32, #tpu.memory_space<any>> -> memref<8x80x128xf32, #tpu.memory_space<any>>
        %61 = tpu.memref_slice %arg14[%c0_i32_35] : memref<2x!tpu.dma_semaphore, #tpu.memory_space<semaphore_mem>> -> memref<1x!tpu.dma_semaphore, #tpu.memory_space<semaphore_mem>>
        %62 = tpu.memref_squeeze %61 : memref<1x!tpu.dma_semaphore, #tpu.memory_space<semaphore_mem>> -> memref<!tpu.dma_semaphore, #tpu.memory_space<semaphore_mem>>
        tpu.wait_dma2 semaphore(%62 : memref<!tpu.dma_semaphore, #tpu.memory_space<semaphore_mem>>) src(%59 : memref<8x80x128xf32, #tpu.memory_space<vmem>>) dst(%60 : memref<8x80x128xf32, #tpu.memory_space<any>>)
      } else {
      }
    } else {
    }
    return
  }
  func.func @transform_0(%arg0: i32, %arg1: i32) -> (i32, i32) {
    %c0_i32 = arith.constant 0 : i32
    %c0_i32_0 = arith.constant 0 : i32
    %c0_i32_1 = arith.constant 0 : i32
    return %c0_i32, %c0_i32_0 : i32, i32
  }
  func.func @transform_2(%arg0: i32, %arg1: i32) -> (i32, i32) {
    %c0_i32 = arith.constant 0 : i32
    %c0_i32_0 = arith.constant 0 : i32
    return %arg1, %c0_i32 : i32, i32
  }
  func.func @transform_3(%arg0: i32, %arg1: i32) -> (i32, i32) {
    %c0_i32 = arith.constant 0 : i32
    %c0_i32_0 = arith.constant 0 : i32
    %c0_i32_1 = arith.constant 0 : i32
    return %c0_i32, %c0_i32_0 : i32, i32
  }
  func.func @transform_4(%arg0: i32, %arg1: i32) -> (i32, i32) {
    %c0_i32 = arith.constant 0 : i32
    %c0_i32_0 = arith.constant 0 : i32
    %c0_i32_1 = arith.constant 0 : i32
    return %c0_i32, %c0_i32_0 : i32, i32
  }
  func.func @transform_5(%arg0: i32, %arg1: i32) -> (i32, i32) {
    %c0_i32 = arith.constant 0 : i32
    %c0_i32_0 = arith.constant 0 : i32
    %c0_i32_1 = arith.constant 0 : i32
    return %c0_i32, %c0_i32_0 : i32, i32
  }
  func.func @transform_6(%arg0: i32, %arg1: i32) -> (i32, i32) {
    %c0_i32 = arith.constant 0 : i32
    %c0_i32_0 = arith.constant 0 : i32
    %c0_i32_1 = arith.constant 0 : i32
    return %c0_i32, %c0_i32_0 : i32, i32
  }
}

</mosaic_0001>

<llo_original>
// kernel: ladapter_forward.1
$region0: #{ladapter_forward.1}
  #allocation0 [shape = 'u32[]', space=smem, size = 0x4, offset = 0x4, fixed_abs, tag = 'smem constant byte address 0x4 - core index']
  #allocation1 [shape = 'u32[144,128]{1,0:T(1,128)}', space=vmem, size = 0x12000, scoped, tag = 'internal scratch']
  #allocation2 [shape = 'bf16[128,128]{1,0:T(16,128)(2,1)}', space=vmem, size = 0x8000, scoped, tag = 'scratch operand']
  #allocation3 [shape = 'bf16[128,128]{1,0:T(16,128)(2,1)}', space=vmem, size = 0x8000, scoped, tag = 'scratch operand']
  #allocation4 [shape = 'f32[2,8,128,128]{3,2,1,0:T(8,128)}', space=vmem, size = 0x100000, scoped, tag = 'scratch operand']
  #allocation5 [shape = 's32[2]{0}', space=sflag, size = 0x8, scoped, tag = 'scratch operand']
  #allocation6 [shape = 's32[2]{0}', space=sflag, size = 0x8, scoped, tag = 'scratch operand']
  #allocation7 [shape = 's32[]', space=sflag, size = 0x4, offset = 0, fixed_abs, tag = 'sflag constant byte address 0x0 - dummy sync flag']
  #allocation8 [shape = 's32[]', space=sflag, size = 0x4, offset = 0, fixed_abs, tag = 'sflag constant byte address 0x0 - dummy sync flag']
  #allocation9 [shape = 's32[]', space=sflag, size = 0x4, offset = 0, fixed_abs, tag = 'sflag constant byte address 0x0 - dummy sync flag']
  %s0 = inlined_call_operand.vmem [shape: s32[128,1], index: 0, kind: input, shape index: {}]
  %s1 = inlined_call_operand.vmem [shape: f32[8,80,128], index: 1, kind: input, shape index: {}, may-alias: {1,7}]
  %s2 = inlined_call_operand.vmem [shape: bf16[128,128], index: 2, kind: input, shape index: {}]
  %s3 = inlined_call_operand.vmem [shape: bf16[128,256], index: 3, kind: input, shape index: {}]
  %s4 = inlined_call_operand.vmem [shape: f32[1,256], index: 4, kind: input, shape index: {}]
  %s5 = inlined_call_operand.vmem [shape: bf16[256,128], index: 5, kind: input, shape index: {}]
  %s6 = inlined_call_operand.vmem [shape: f32[1,128], index: 6, kind: input, shape index: {}]
  %s7 = inlined_call_operand.vmem [shape: f32[8,80,128], index: 7, kind: output, shape index: {}, may-alias: {1,7}]
  %s8 = sld [smem:[#allocation0]]
  $region171: #{ladapter_forward.1} parent=0
    _
  %s10 = ssub.s32 1, %s8
  %s11 = scalar_select 0, %s10, %s8
  loop: start=0, step=1, limit=3
  $region2: #{ladapter_forward.1} parent=0 // loop_pre_header
    _
  $region3: #{ladapter_forward.1} parent=0 // loop_header
    %s13 = sphi 0, %s17
    %p14 = scmp.ge.s32.totalorder %s13, 3
    %s19 = sphi 0, %s29
    %s20 = sphi 0, %s25
    %s21 = sphi 0, %s19
    %s22 = sphi 0, %s20
    %s30 = sphi 0, %s30
    %s32 = sphi 0, %s30
    %s40 = sphi 0, %s32
    %s46 = sphi 0, %s48
    %s49 = sphi 0, %s46
    %s59 = sphi 0, %s49
    %s63 = sphi 0, %s63
    %s65 = sphi 0, %s63
    %s73 = sphi 0, %s65
    %s77 = sphi 0, %s77
    %s79 = sphi 0, %s77
    %s87 = sphi 0, %s79
    %s91 = sphi 0, %s91
    %s93 = sphi 0, %s91
    %s101 = sphi 0, %s93
    %s105 = sphi 0, %s105
    %s107 = sphi 0, %s105
    %s115 = sphi 0, %s107
  $region4: #{ladapter_forward.1} parent=0 // loop_header_branch
    %16 = sbr.rel (%p14) target = $region8
  $region5: #{ladapter_forward.1} parent=0 // loop_body
    %s18 = ssub.s32 %s13, 1
    %s23 = sadd.s32 1, %s20
    %p24 = scmp.ge.s32.totalorder %s23, 1
    %s25 = scalar_select %p24, 0, %s23
    %s26 = sadd.s32 1, %s19
    %s27 = scalar_select %p24, %s26, %s19
    %p28 = scmp.ge.s32.totalorder %s27, 2
    %s29 = scalar_select %p28, 0, %s27
    %s31 = sadd.s32 %s30, 1
    %p33 = scmp.eq.s32.totalorder %s13, 1
    %p34 = scmp.ne.s32.totalorder %s30, %s32
    %p35 = scmp.eq.s32.totalorder %s13, 0
    %p36 = por %p34, %p35
    %p37 = scmp.ne.s32.totalorder %s30, %s32
    %p38 = scmp.eq.s32.totalorder %s18, 1
    %p39 = por %p37, %p38
    %p41 = scmp.ne.s32.totalorder %s32, %s40
    %p42 = scmp.eq.s32.totalorder %s18, 0
    %p43 = por %p41, %p42
    %s44 = ssub.s32 %s20, %s25
    %p45 = scmp.eq.s32.totalorder %s44, 0
    %s47 = sadd.s32 %s46, 1
    %s48 = scalar_select %p45, %s46, %s47
    %p50 = pneg %p45
    %p51 = scmp.eq.s32.totalorder %s13, 1
    %p52 = por %p50, %p51
    %p53 = scmp.ne.s32.totalorder %s46, %s49
    %p54 = scmp.eq.s32.totalorder %s13, 0
    %p55 = por %p53, %p54
    %p56 = scmp.ne.s32.totalorder %s46, %s49
    %p57 = scmp.eq.s32.totalorder %s18, 1
    %p58 = por %p56, %p57
    %p60 = scmp.ne.s32.totalorder %s49, %s59
    %p61 = scmp.eq.s32.totalorder %s18, 0
    %p62 = por %p60, %p61
    %s64 = sadd.s32 %s63, 1
    %p66 = scmp.eq.s32.totalorder %s13, 1
    %p67 = scmp.ne.s32.totalorder %s63, %s65
    %p68 = scmp.eq.s32.totalorder %s13, 0
    %p69 = por %p67, %p68
    %p70 = scmp.ne.s32.totalorder %s63, %s65
    %p71 = scmp.eq.s32.totalorder %s18, 1
    %p72 = por %p70, %p71
    %p74 = scmp.ne.s32.totalorder %s65, %s73
    %p75 = scmp.eq.s32.totalorder %s18, 0
    %p76 = por %p74, %p75
    %s78 = sadd.s32 %s77, 1
    %p80 = scmp.eq.s32.totalorder %s13, 1
    %p81 = scmp.ne.s32.totalorder %s77, %s79
    %p82 = scmp.eq.s32.totalorder %s13, 0
    %p83 = por %p81, %p82
    %p84 = scmp.ne.s32.totalorder %s77, %s79
    %p85 = scmp.eq.s32.totalorder %s18, 1
    %p86 = por %p84, %p85
    %p88 = scmp.ne.s32.totalorder %s79, %s87
    %p89 = scmp.eq.s32.totalorder %s18, 0
    %p90 = por %p88, %p89
    %s92 = sadd.s32 %s91, 1
    %p94 = scmp.eq.s32.totalorder %s13, 1
    %p95 = scmp.ne.s32.totalorder %s91, %s93
    %p96 = scmp.eq.s32.totalorder %s13, 0
    %p97 = por %p95, %p96
    %p98 = scmp.ne.s32.totalorder %s91, %s93
    %p99 = scmp.eq.s32.totalorder %s18, 1
    %p100 = por %p98, %p99
    %p102 = scmp.ne.s32.totalorder %s93, %s101
    %p103 = scmp.eq.s32.totalorder %s18, 0
    %p104 = por %p102, %p103
    %s106 = sadd.s32 %s105, 1
    %p108 = scmp.eq.s32.totalorder %s13, 1
    %p109 = scmp.ne.s32.totalorder %s105, %s107
    %p110 = scmp.eq.s32.totalorder %s13, 0
    %p111 = por %p109, %p110
    %p112 = scmp.ne.s32.totalorder %s105, %s107
    %p113 = scmp.eq.s32.totalorder %s18, 1
    %p114 = por %p112, %p113
    %p116 = scmp.ne.s32.totalorder %s107, %s115
    %p117 = scmp.eq.s32.totalorder %s18, 0
    %p118 = por %p116, %p117
    %p119 = scmp.le.s32.totalorder 1, %s13
    // Predicated region
    $region9: #{ladapter_forward.1} parent=5 // pred_check
      %p120 = pneg %p119
    $region10: #{ladapter_forward.1} parent=5 // pred_check_branch
      %122 = sbr.rel (%p120) target = $region12
    $region11: #{ladapter_forward.1} parent=5 // pred_region
      %s123 = ssub.s32 %s13, 1
      // Predicated region
      $region13: #{ladapter_forward.1} parent=11 // pred_check
        %p124 = pneg %p43
      $region14: #{ladapter_forward.1} parent=11 // pred_check_branch
        %126 = sbr.rel (%p124) target = $region16
      $region15: #{ladapter_forward.1} parent=11 // pred_region
        _
      $region16: #{ladapter_forward.1} parent=11 // pred_fallthru
        _
      // Predicated region
      $region17: #{ladapter_forward.1} parent=11 // pred_check
        %p127 = pneg %p62
      $region18: #{ladapter_forward.1} parent=11 // pred_check_branch
        %129 = sbr.rel (%p127) target = $region20
      $region19: #{ladapter_forward.1} parent=11 // pred_region
        %s130 = smul.u32 16, %s22
        %p131 = scmp.lt.s32.totalorder %s130, 15
        %s132 = scalar_select %p131, %s130, 15
        %s133 = smul.addr %s132, 4
        %s134 = scalar_lea.vmem %s2, %s133
        %s135 = smul.u32 16, %s22
      $region20: #{ladapter_forward.1} parent=11 // pred_fallthru
        _
      // Predicated region
      $region21: #{ladapter_forward.1} parent=11 // pred_check
        %p136 = pneg %p76
      $region22: #{ladapter_forward.1} parent=11 // pred_check_branch
        %138 = sbr.rel (%p136) target = $region24
      $region23: #{ladapter_forward.1} parent=11 // pred_region
        _
      $region24: #{ladapter_forward.1} parent=11 // pred_fallthru
        _
      // Predicated region
      $region25: #{ladapter_forward.1} parent=11 // pred_check
        %p139 = pneg %p90
      $region26: #{ladapter_forward.1} parent=11 // pred_check_branch
        %141 = sbr.rel (%p139) target = $region28
      $region27: #{ladapter_forward.1} parent=11 // pred_region
        _
      $region28: #{ladapter_forward.1} parent=11 // pred_fallthru
        _
      // Predicated region
      $region29: #{ladapter_forward.1} parent=11 // pred_check
        %p142 = pneg %p104
      $region30: #{ladapter_forward.1} parent=11 // pred_check_branch
        %144 = sbr.rel (%p142) target = $region32
      $region31: #{ladapter_forward.1} parent=11 // pred_region
        _
      $region32: #{ladapter_forward.1} parent=11 // pred_fallthru
        _
      // Predicated region
      $region33: #{ladapter_forward.1} parent=11 // pred_check
        %p145 = pneg %p118
      $region34: #{ladapter_forward.1} parent=11 // pred_check_branch
        %147 = sbr.rel (%p145) target = $region36
      $region35: #{ladapter_forward.1} parent=11 // pred_region
        _
      $region36: #{ladapter_forward.1} parent=11 // pred_fallthru
        _
    $region12: #{ladapter_forward.1} parent=5 // pred_fallthru
      _
    %p148 = scmp.lt.s32.totalorder %s13, 2
    // Predicated region
    $region37: #{ladapter_forward.1} parent=5 // pred_check
      %p149 = pneg %p148
    $region38: #{ladapter_forward.1} parent=5 // pred_check_branch
      %151 = sbr.rel (%p149) target = $region40
    $region39: #{ladapter_forward.1} parent=5 // pred_region
      _
    $region40: #{ladapter_forward.1} parent=5 // pred_fallthru
      _
    %p152 = scmp.le.s32.totalorder 1, %s13
    // Predicated region
    $region41: #{ladapter_forward.1} parent=5 // pred_check
      %p153 = pneg %p152
    $region42: #{ladapter_forward.1} parent=5 // pred_check_branch
      %155 = sbr.rel (%p153) target = $region44
    $region43: #{ladapter_forward.1} parent=5 // pred_region
      %s156 = ssub.s32 %s13, 1
      %p157 = pneg %p43
      %p158 = pneg %p39
      %s159 = smul.u32 16, %s22
      %p160 = scmp.lt.s32.totalorder %s159, 15
      %s161 = scalar_select %p160, %s159, 15
      %s162 = smul.addr %s161, 4
      %s163 = scalar_lea.vmem %s2, %s162
      %p164 = pneg %p62
      %p165 = pneg %p58
      %p166 = pneg %p76
      %p167 = pneg %p72
      %p168 = pneg %p90
      %p169 = pneg %p86
      %p170 = pneg %p104
      %p171 = pneg %p100
      %p172 = pneg %p118
      %p173 = pneg %p114
      %s174 = smul.u32 16, %s22
      %p175 = scmp.lt.s32.totalorder %s174, 15
      %s176 = scalar_select %p175, %s174, 15
      %s177 = smul.addr %s176, 4
      %s178 = scalar_lea.vmem %s2, %s177
      %s179 = smul.u32 16, %s22
      %s181 = smul.u32 %s22, 128
      %p182 = scmp.eq.s32.totalorder %s21, 0
      // Predicated region
      $region45: #{ladapter_forward.1} parent=43 // pred_check
        %p183 = pneg %p182
      $region46: #{ladapter_forward.1} parent=43 // pred_check_branch
        %185 = sbr.rel (%p183) target = $region48
      $region47: #{ladapter_forward.1} parent=43 // pred_region
        %p186 = scmp.eq.s32.totalorder %s22, 0
        // Predicated region
        $region49: #{ladapter_forward.1} parent=47 // pred_check
          %p187 = pneg %p186
        $region50: #{ladapter_forward.1} parent=47 // pred_check_branch
          %189 = sbr.rel (%p187) target = $region52
        $region51: #{ladapter_forward.1} parent=47 // pred_region
          %190 = vst [vmem:[#allocation2] sm:$0xff] 0
          %191 = vst [vmem:[#allocation2 + $0x8] sm:$0xff] 0
          %192 = vst [vmem:[#allocation2 + $0x10] sm:$0xff] 0
          %193 = vst [vmem:[#allocation2 + $0x18] sm:$0xff] 0
          %194 = vst [vmem:[#allocation2 + $0x20] sm:$0xff] 0
          %195 = vst [vmem:[#allocation2 + $0x28] sm:$0xff] 0
          %196 = vst [vmem:[#allocation2 + $0x30] sm:$0xff] 0
          %197 = vst [vmem:[#allocation2 + $0x38] sm:$0xff] 0
          %p199 = scmp.lt.u32.totalorder 80, 8
          %p200 = pneg %p199
          // Predicated region
          $region53: #{ladapter_forward.1} parent=51 // pred_check
            _
          $region54: #{ladapter_forward.1} parent=51 // pred_check_branch
            %202 = sbr.rel (%p199) target = $region56
          $region55: #{ladapter_forward.1} parent=51 // pred_region
            %s231 = sand.u32 80, 7
            %p232 = scmp.eq.s32.totalorder %s231, 0
            // Predicated region
            $region68: #{ladapter_forward.1} parent=55 // pred_check
              %p233 = pneg %p232
            $region69: #{ladapter_forward.1} parent=55 // pred_check_branch
              %235 = sbr.rel (%p233) target = $region71
            $region70: #{ladapter_forward.1} parent=55 // pred_region
              loop: start=0, step=1, limit=1
              $region72: #{ladapter_forward.1} parent=70 // loop_pre_header
                _
              $region73: #{ladapter_forward.1} parent=70 // loop_header
                %s237 = sphi 0, %s241
                %p238 = scmp.ge.s32.totalorder %s237, 1
                %s242 = sphi %s1, %s1
                %s243 = sphi [#allocation4], [#allocation4]
              $region74: #{ladapter_forward.1} parent=70 // loop_header_branch
                %240 = sbr.rel (%p238) target = $region78
              $region75: #{ladapter_forward.1} parent=70 // loop_body
                %v244 = vld [vmem:[%s242] sm:$0xff]
                %245 = vst [vmem:[%s243] sm:$0xff] %v244
                %v246 = vld [vmem:[%s242 + $0x8] sm:$0xff]
                %247 = vst [vmem:[%s243 + $0x8] sm:$0xff] %v246
                %v248 = vld [vmem:[%s242 + $0x10] sm:$0xff]
                %249 = vst [vmem:[%s243 + $0x10] sm:$0xff] %v248
                %v250 = vld [vmem:[%s242 + $0x18] sm:$0xff]
                %251 = vst [vmem:[%s243 + $0x18] sm:$0xff] %v250
                %v252 = vld [vmem:[%s242 + $0x20] sm:$0xff]
                %253 = vst [vmem:[%s243 + $0x20] sm:$0xff] %v252
                %v254 = vld [vmem:[%s242 + $0x28] sm:$0xff]
                %255 = vst [vmem:[%s243 + $0x28] sm:$0xff] %v254
                %v256 = vld [vmem:[%s242 + $0x30] sm:$0xff]
                %257 = vst [vmem:[%s243 + $0x30] sm:$0xff] %v256
                %v258 = vld [vmem:[%s242 + $0x38] sm:$0xff]
                %259 = vst [vmem:[%s243 + $0x38] sm:$0xff] %v258
                %v260 = vld [vmem:[%s242 + $0x40] sm:$0xff]
                %261 = vst [vmem:[%s243 + $0x40] sm:$0xff] %v260
                %v262 = vld [vmem:[%s242 + $0x48] sm:$0xff]
                %263 = vst [vmem:[%s243 + $0x48] sm:$0xff] %v262
                %v264 = vld [vmem:[%s242 + $0x50] sm:$0xff]
                %265 = vst [vmem:[%s243 + $0x80] sm:$0xff] %v264
                %v266 = vld [vmem:[%s242 + $0x58] sm:$0xff]
                %267 = vst [vmem:[%s243 + $0x88] sm:$0xff] %v266
                %v268 = vld [vmem:[%s242 + $0x60] sm:$0xff]
                %269 = vst [vmem:[%s243 + $0x90] sm:$0xff] %v268
                %v270 = vld [vmem:[%s242 + $0x68] sm:$0xff]
                %271 = vst [vmem:[%s243 + $0x98] sm:$0xff] %v270
                %v272 = vld [vmem:[%s242 + $0x70] sm:$0xff]
                %273 = vst [vmem:[%s243 + $0xa0] sm:$0xff] %v272
                %v274 = vld [vmem:[%s242 + $0x78] sm:$0xff]
                %275 = vst [vmem:[%s243 + $0xa8] sm:$0xff] %v274
                %v276 = vld [vmem:[%s242 + $0x80] sm:$0xff]
                %277 = vst [vmem:[%s243 + $0xb0] sm:$0xff] %v276
                %v278 = vld [vmem:[%s242 + $0x88] sm:$0xff]
                %279 = vst [vmem:[%s243 + $0xb8] sm:$0xff] %v278
                %v280 = vld [vmem:[%s242 + $0x90] sm:$0xff]
                %281 = vst [vmem:[%s243 + $0xc0] sm:$0xff] %v280
                %v282 = vld [vmem:[%s242 + $0x98] sm:$0xff]
                %283 = vst [vmem:[%s243 + $0xc8] sm:$0xff] %v282
                %v284 = vld [vmem:[%s242 + $0xa0] sm:$0xff]
                %285 = vst [vmem:[%s243 + $0x100] sm:$0xff] %v284
                %v286 = vld [vmem:[%s242 + $0xa8] sm:$0xff]
                %287 = vst [vmem:[%s243 + $0x108] sm:$0xff] %v286
                %v288 = vld [vmem:[%s242 + $0xb0] sm:$0xff]
                %289 = vst [vmem:[%s243 + $0x110] sm:$0xff] %v288
                %v290 = vld [vmem:[%s242 + $0xb8] sm:$0xff]
                %291 = vst [vmem:[%s243 + $0x118] sm:$0xff] %v290
                %v292 = vld [vmem:[%s242 + $0xc0] sm:$0xff]
                %293 = vst [vmem:[%s243 + $0x120] sm:$0xff] %v292
                %v294 = vld [vmem:[%s242 + $0xc8] sm:$0xff]
                %295 = vst [vmem:[%s243 + $0x128] sm:$0xff] %v294
                %v296 = vld [vmem:[%s242 + $0xd0] sm:$0xff]
                %297 = vst [vmem:[%s243 + $0x130] sm:$0xff] %v296
                %v298 = vld [vmem:[%s242 + $0xd8] sm:$0xff]
                %299 = vst [vmem:[%s243 + $0x138] sm:$0xff] %v298
                %v300 = vld [vmem:[%s242 + $0xe0] sm:$0xff]
                %301 = vst [vmem:[%s243 + $0x140] sm:$0xff] %v300
                %v302 = vld [vmem:[%s242 + $0xe8] sm:$0xff]
                %303 = vst [vmem:[%s243 + $0x148] sm:$0xff] %v302
                %v304 = vld [vmem:[%s242 + $0xf0] sm:$0xff]
                %305 = vst [vmem:[%s243 + $0x180] sm:$0xff] %v304
                %v306 = vld [vmem:[%s242 + $0xf8] sm:$0xff]
                %307 = vst [vmem:[%s243 + $0x188] sm:$0xff] %v306
                %v308 = vld [vmem:[%s242 + $0x100] sm:$0xff]
                %309 = vst [vmem:[%s243 + $0x190] sm:$0xff] %v308
                %v310 = vld [vmem:[%s242 + $0x108] sm:$0xff]
                %311 = vst [vmem:[%s243 + $0x198] sm:$0xff] %v310
                %v312 = vld [vmem:[%s242 + $0x110] sm:$0xff]
                %313 = vst [vmem:[%s243 + $0x1a0] sm:$0xff] %v312
                %v314 = vld [vmem:[%s242 + $0x118] sm:$0xff]
                %315 = vst [vmem:[%s243 + $0x1a8] sm:$0xff] %v314
                %v316 = vld [vmem:[%s242 + $0x120] sm:$0xff]
                %317 = vst [vmem:[%s243 + $0x1b0] sm:$0xff] %v316
                %v318 = vld [vmem:[%s242 + $0x128] sm:$0xff]
                %319 = vst [vmem:[%s243 + $0x1b8] sm:$0xff] %v318
                %v320 = vld [vmem:[%s242 + $0x130] sm:$0xff]
                %321 = vst [vmem:[%s243 + $0x1c0] sm:$0xff] %v320
                %v322 = vld [vmem:[%s242 + $0x138] sm:$0xff]
                %323 = vst [vmem:[%s243 + $0x1c8] sm:$0xff] %v322
                %v324 = vld [vmem:[%s242 + $0x140] sm:$0xff]
                %325 = vst [vmem:[%s243 + $0x200] sm:$0xff] %v324
                %v326 = vld [vmem:[%s242 + $0x148] sm:$0xff]
                %327 = vst [vmem:[%s243 + $0x208] sm:$0xff] %v326
                %v328 = vld [vmem:[%s242 + $0x150] sm:$0xff]
                %329 = vst [vmem:[%s243 + $0x210] sm:$0xff] %v328
                %v330 = vld [vmem:[%s242 + $0x158] sm:$0xff]
                %331 = vst [vmem:[%s243 + $0x218] sm:$0xff] %v330
                %v332 = vld [vmem:[%s242 + $0x160] sm:$0xff]
                %333 = vst [vmem:[%s243 + $0x220] sm:$0xff] %v332
                %v334 = vld [vmem:[%s242 + $0x168] sm:$0xff]
                %335 = vst [vmem:[%s243 + $0x228] sm:$0xff] %v334
                %v336 = vld [vmem:[%s242 + $0x170] sm:$0xff]
                %337 = vst [vmem:[%s243 + $0x230] sm:$0xff] %v336
                %v338 = vld [vmem:[%s242 + $0x178] sm:$0xff]
                %339 = vst [vmem:[%s243 + $0x238] sm:$0xff] %v338
                %v340 = vld [vmem:[%s242 + $0x180] sm:$0xff]
                %341 = vst [vmem:[%s243 + $0x240] sm:$0xff] %v340
                %v342 = vld [vmem:[%s242 + $0x188] sm:$0xff]
                %343 = vst [vmem:[%s243 + $0x248] sm:$0xff] %v342
                %v344 = vld [vmem:[%s242 + $0x190] sm:$0xff]
                %345 = vst [vmem:[%s243 + $0x280] sm:$0xff] %v344
                %v346 = vld [vmem:[%s242 + $0x198] sm:$0xff]
                %347 = vst [vmem:[%s243 + $0x288] sm:$0xff] %v346
                %v348 = vld [vmem:[%s242 + $0x1a0] sm:$0xff]
                %349 = vst [vmem:[%s243 + $0x290] sm:$0xff] %v348
                %v350 = vld [vmem:[%s242 + $0x1a8] sm:$0xff]
                %351 = vst [vmem:[%s243 + $0x298] sm:$0xff] %v350
                %v352 = vld [vmem:[%s242 + $0x1b0] sm:$0xff]
                %353 = vst [vmem:[%s243 + $0x2a0] sm:$0xff] %v352
                %v354 = vld [vmem:[%s242 + $0x1b8] sm:$0xff]
                %355 = vst [vmem:[%s243 + $0x2a8] sm:$0xff] %v354
                %v356 = vld [vmem:[%s242 + $0x1c0] sm:$0xff]
                %357 = vst [vmem:[%s243 + $0x2b0] sm:$0xff] %v356
                %v358 = vld [vmem:[%s242 + $0x1c8] sm:$0xff]
                %359 = vst [vmem:[%s243 + $0x2b8] sm:$0xff] %v358
                %v360 = vld [vmem:[%s242 + $0x1d0] sm:$0xff]
                %361 = vst [vmem:[%s243 + $0x2c0] sm:$0xff] %v360
                %v362 = vld [vmem:[%s242 + $0x1d8] sm:$0xff]
                %363 = vst [vmem:[%s243 + $0x2c8] sm:$0xff] %v362
                %v364 = vld [vmem:[%s242 + $0x1e0] sm:$0xff]
                %365 = vst [vmem:[%s243 + $0x300] sm:$0xff] %v364
                %v366 = vld [vmem:[%s242 + $0x1e8] sm:$0xff]
                %367 = vst [vmem:[%s243 + $0x308] sm:$0xff] %v366
                %v368 = vld [vmem:[%s242 + $0x1f0] sm:$0xff]
                %369 = vst [vmem:[%s243 + $0x310] sm:$0xff] %v368
                %v370 = vld [vmem:[%s242 + $0x1f8] sm:$0xff]
                %371 = vst [vmem:[%s243 + $0x318] sm:$0xff] %v370
                %v372 = vld [vmem:[%s242 + $0x200] sm:$0xff]
                %373 = vst [vmem:[%s243 + $0x320] sm:$0xff] %v372
                %v374 = vld [vmem:[%s242 + $0x208] sm:$0xff]
                %375 = vst [vmem:[%s243 + $0x328] sm:$0xff] %v374
                %v376 = vld [vmem:[%s242 + $0x210] sm:$0xff]
                %377 = vst [vmem:[%s243 + $0x330] sm:$0xff] %v376
                %v378 = vld [vmem:[%s242 + $0x218] sm:$0xff]
                %379 = vst [vmem:[%s243 + $0x338] sm:$0xff] %v378
                %v380 = vld [vmem:[%s242 + $0x220] sm:$0xff]
                %381 = vst [vmem:[%s243 + $0x340] sm:$0xff] %v380
                %v382 = vld [vmem:[%s242 + $0x228] sm:$0xff]
                %383 = vst [vmem:[%s243 + $0x348] sm:$0xff] %v382
                %v384 = vld [vmem:[%s242 + $0x230] sm:$0xff]
                %385 = vst [vmem:[%s243 + $0x380] sm:$0xff] %v384
                %v386 = vld [vmem:[%s242 + $0x238] sm:$0xff]
                %387 = vst [vmem:[%s243 + $0x388] sm:$0xff] %v386
                %v388 = vld [vmem:[%s242 + $0x240] sm:$0xff]
                %389 = vst [vmem:[%s243 + $0x390] sm:$0xff] %v388
                %v390 = vld [vmem:[%s242 + $0x248] sm:$0xff]
                %391 = vst [vmem:[%s243 + $0x398] sm:$0xff] %v390
                %v392 = vld [vmem:[%s242 + $0x250] sm:$0xff]
                %393 = vst [vmem:[%s243 + $0x3a0] sm:$0xff] %v392
                %v394 = vld [vmem:[%s242 + $0x258] sm:$0xff]
                %395 = vst [vmem:[%s243 + $0x3a8] sm:$0xff] %v394
                %v396 = vld [vmem:[%s242 + $0x260] sm:$0xff]
                %397 = vst [vmem:[%s243 + $0x3b0] sm:$0xff] %v396
                %v398 = vld [vmem:[%s242 + $0x268] sm:$0xff]
                %399 = vst [vmem:[%s243 + $0x3b8] sm:$0xff] %v398
                %v400 = vld [vmem:[%s242 + $0x270] sm:$0xff]
                %401 = vst [vmem:[%s243 + $0x3c0] sm:$0xff] %v400
                %v402 = vld [vmem:[%s242 + $0x278] sm:$0xff]
                %403 = vst [vmem:[%s243 + $0x3c8] sm:$0xff] %v402
              $region76: #{ladapter_forward.1} parent=70 // loop_footer
                %s241 = sadd.s32 1, %s237
              $region77: #{ladapter_forward.1} parent=70 // loop_footer_branch
                %236 = sbr.rel target = $region73
              $region78: #{ladapter_forward.1} parent=70 // loop_exit
                _
            $region71: #{ladapter_forward.1} parent=55 // pred_fallthru
              _
            %p404 = pneg %p232
            // Predicated region
            $region79: #{ladapter_forward.1} parent=55 // pred_check
              _
            $region80: #{ladapter_forward.1} parent=55 // pred_check_branch
              %406 = sbr.rel (%p232) target = $region82
            $region81: #{ladapter_forward.1} parent=55 // pred_region
              %s407 = sand.u32 80, 7
            $region82: #{ladapter_forward.1} parent=55 // pred_fallthru
              _
          $region56: #{ladapter_forward.1} parent=51 // pred_fallthru
            _
          // Predicated region
          $region57: #{ladapter_forward.1} parent=51 // pred_check
            %p203 = pneg %p199
          $region58: #{ladapter_forward.1} parent=51 // pred_check_branch
            %205 = sbr.rel (%p203) target = $region60
          $region59: #{ladapter_forward.1} parent=51 // pred_region
            %s206 = sshllo.u32 0, 80
            loop: start=0, step=1, limit=1
            $region61: #{ladapter_forward.1} parent=59 // loop_pre_header
              _
            $region62: #{ladapter_forward.1} parent=59 // loop_header
              %s208 = sphi 0, %s212
              %p209 = scmp.ge.s32.totalorder %s208, 1
              %s213 = sphi %s1, %s1
              %s214 = sphi [#allocation4], [#allocation4]
            $region63: #{ladapter_forward.1} parent=59 // loop_header_branch
              %211 = sbr.rel (%p209) target = $region67
            $region64: #{ladapter_forward.1} parent=59 // loop_body
              %v215 = vld [vmem:[%s213] sm:%s206]
              %216 = vst [vmem:[%s214] sm:%s206] %v215
              %v217 = vld [vmem:[%s213 + $0x50] sm:%s206]
              %218 = vst [vmem:[%s214 + $0x80] sm:%s206] %v217
              %v219 = vld [vmem:[%s213 + $0xa0] sm:%s206]
              %220 = vst [vmem:[%s214 + $0x100] sm:%s206] %v219
              %v221 = vld [vmem:[%s213 + $0xf0] sm:%s206]
              %222 = vst [vmem:[%s214 + $0x180] sm:%s206] %v221
              %v223 = vld [vmem:[%s213 + $0x140] sm:%s206]
              %224 = vst [vmem:[%s214 + $0x200] sm:%s206] %v223
              %v225 = vld [vmem:[%s213 + $0x190] sm:%s206]
              %226 = vst [vmem:[%s214 + $0x280] sm:%s206] %v225
              %v227 = vld [vmem:[%s213 + $0x1e0] sm:%s206]
              %228 = vst [vmem:[%s214 + $0x300] sm:%s206] %v227
              %v229 = vld [vmem:[%s213 + $0x230] sm:%s206]
              %230 = vst [vmem:[%s214 + $0x380] sm:%s206] %v229
            $region65: #{ladapter_forward.1} parent=59 // loop_footer
              %s212 = sadd.s32 1, %s208
            $region66: #{ladapter_forward.1} parent=59 // loop_footer_branch
              %207 = sbr.rel target = $region62
            $region67: #{ladapter_forward.1} parent=59 // loop_exit
              _
          $region60: #{ladapter_forward.1} parent=51 // pred_fallthru
            _
          // Predicated region
          $region83: #{ladapter_forward.1} parent=51 // pred_check
            _
          $region84: #{ladapter_forward.1} parent=51 // pred_check_branch
            %410 = sbr.rel (0) target = $region86
          $region85: #{ladapter_forward.1} parent=51 // pred_region
            %411 = vsyncadd [#allocation5], 10240
          $region86: #{ladapter_forward.1} parent=51 // pred_fallthru
            _
          %s412 = smul.u32 8, 80
          %s413 = smul.u32 %s412, 1
          %s414 = sshll.u32 %s413, 4
          %415 = dma.done [#allocation5], %s414
          %v416 = vld [vmem:[%s0] sm:$0xff]
          %v417 = vld [vmem:[%s0 + $0x8] sm:$0xff]
          %v418 = vld [vmem:[%s0 + $0x10] sm:$0xff]
          %v419 = vld [vmem:[%s0 + $0x18] sm:$0xff]
          %v420 = vld [vmem:[%s0 + $0x20] sm:$0xff]
          %v421 = vld [vmem:[%s0 + $0x28] sm:$0xff]
          %v422 = vld [vmem:[%s0 + $0x30] sm:$0xff]
          %v423 = vld [vmem:[%s0 + $0x38] sm:$0xff]
          %v424 = vld [vmem:[%s0 + $0x40] sm:$0xff]
          %v425 = vld [vmem:[%s0 + $0x48] sm:$0xff]
          %426 = vset.pattern.permute.xlu0 0
          %427 = vperm.xlu0 %426, %v416
          %v428 = vpop.permute.xlu0 %427
          %429 = vset.pattern.permute.xlu0 0
          %430 = vperm.xlu0 %429, %v417
          %v431 = vpop.permute.xlu0 %430
          %432 = vset.pattern.permute.xlu0 0
          %433 = vperm.xlu0 %432, %v418
          %v434 = vpop.permute.xlu0 %433
          %435 = vset.pattern.permute.xlu0 0
          %436 = vperm.xlu0 %435, %v419
          %v437 = vpop.permute.xlu0 %436
          %438 = vset.pattern.permute.xlu0 0
          %439 = vperm.xlu0 %438, %v420
          %v440 = vpop.permute.xlu0 %439
          %441 = vset.pattern.permute.xlu0 0
          %442 = vperm.xlu0 %441, %v421
          %v443 = vpop.permute.xlu0 %442
          %444 = vset.pattern.permute.xlu0 0
          %445 = vperm.xlu0 %444, %v422
          %v446 = vpop.permute.xlu0 %445
          %447 = vset.pattern.permute.xlu0 0
          %448 = vperm.xlu0 %447, %v423
          %v449 = vpop.permute.xlu0 %448
          %450 = vset.pattern.permute.xlu0 0
          %451 = vperm.xlu0 %450, %v424
          %v452 = vpop.permute.xlu0 %451
          %453 = vset.pattern.permute.xlu0 0
          %454 = vperm.xlu0 %453, %v425
          %v455 = vpop.permute.xlu0 %454
          %vm456 = vcmp.eq.s32.totalorder %v428, 0
          %vm457 = vcmp.eq.s32.totalorder %v431, 0
          %vm458 = vcmp.eq.s32.totalorder %v434, 0
          %vm459 = vcmp.eq.s32.totalorder %v437, 0
          %vm460 = vcmp.eq.s32.totalorder %v440, 0
          %vm461 = vcmp.eq.s32.totalorder %v443, 0
          %vm462 = vcmp.eq.s32.totalorder %v446, 0
          %vm463 = vcmp.eq.s32.totalorder %v449, 0
          %vm464 = vcmp.eq.s32.totalorder %v452, 0
          %vm465 = vcmp.eq.s32.totalorder %v455, 0
          %vm466 = vcmp.eq.s32.totalorder %v428, 1
          %vm467 = vcmp.eq.s32.totalorder %v431, 1
          %vm468 = vcmp.eq.s32.totalorder %v434, 1
          %vm469 = vcmp.eq.s32.totalorder %v437, 1
          %vm470 = vcmp.eq.s32.totalorder %v440, 1
          %vm471 = vcmp.eq.s32.totalorder %v443, 1
          %vm472 = vcmp.eq.s32.totalorder %v446, 1
          %vm473 = vcmp.eq.s32.totalorder %v449, 1
          %vm474 = vcmp.eq.s32.totalorder %v452, 1
          %vm475 = vcmp.eq.s32.totalorder %v455, 1
          %vm476 = vcmp.eq.s32.totalorder %v428, 2
          %vm477 = vcmp.eq.s32.totalorder %v431, 2
          %vm478 = vcmp.eq.s32.totalorder %v434, 2
          %vm479 = vcmp.eq.s32.totalorder %v437, 2
          %vm480 = vcmp.eq.s32.totalorder %v440, 2
          %vm481 = vcmp.eq.s32.totalorder %v443, 2
          %vm482 = vcmp.eq.s32.totalorder %v446, 2
          %vm483 = vcmp.eq.s32.totalorder %v449, 2
          %vm484 = vcmp.eq.s32.totalorder %v452, 2
          %vm485 = vcmp.eq.s32.totalorder %v455, 2
          %vm486 = vcmp.eq.s32.totalorder %v428, 3
          %vm487 = vcmp.eq.s32.totalorder %v431, 3
          %vm488 = vcmp.eq.s32.totalorder %v434, 3
          %vm489 = vcmp.eq.s32.totalorder %v437, 3
          %vm490 = vcmp.eq.s32.totalorder %v440, 3
          %vm491 = vcmp.eq.s32.totalorder %v443, 3
          %vm492 = vcmp.eq.s32.totalorder %v446, 3
          %vm493 = vcmp.eq.s32.totalorder %v449, 3
          %vm494 = vcmp.eq.s32.totalorder %v452, 3
          %vm495 = vcmp.eq.s32.totalorder %v455, 3
          %vm496 = vcmp.eq.s32.totalorder %v428, 4
          %vm497 = vcmp.eq.s32.totalorder %v431, 4
          %vm498 = vcmp.eq.s32.totalorder %v434, 4
          %vm499 = vcmp.eq.s32.totalorder %v437, 4
          %vm500 = vcmp.eq.s32.totalorder %v440, 4
          %vm501 = vcmp.eq.s32.totalorder %v443, 4
          %vm502 = vcmp.eq.s32.totalorder %v446, 4
          %vm503 = vcmp.eq.s32.totalorder %v449, 4
          %vm504 = vcmp.eq.s32.totalorder %v452, 4
          %vm505 = vcmp.eq.s32.totalorder %v455, 4
          %vm506 = vcmp.eq.s32.totalorder %v428, 5
          %vm507 = vcmp.eq.s32.totalorder %v431, 5
          %vm508 = vcmp.eq.s32.totalorder %v434, 5
          %vm509 = vcmp.eq.s32.totalorder %v437, 5
          %vm510 = vcmp.eq.s32.totalorder %v440, 5
          %vm511 = vcmp.eq.s32.totalorder %v443, 5
          %vm512 = vcmp.eq.s32.totalorder %v446, 5
          %vm513 = vcmp.eq.s32.totalorder %v449, 5
          %vm514 = vcmp.eq.s32.totalorder %v452, 5
          %vm515 = vcmp.eq.s32.totalorder %v455, 5
          %vm516 = vcmp.eq.s32.totalorder %v428, 6
          %vm517 = vcmp.eq.s32.totalorder %v431, 6
          %vm518 = vcmp.eq.s32.totalorder %v434, 6
          %vm519 = vcmp.eq.s32.totalorder %v437, 6
          %vm520 = vcmp.eq.s32.totalorder %v440, 6
          %vm521 = vcmp.eq.s32.totalorder %v443, 6
          %vm522 = vcmp.eq.s32.totalorder %v446, 6
          %vm523 = vcmp.eq.s32.totalorder %v449, 6
          %vm524 = vcmp.eq.s32.totalorder %v452, 6
          %vm525 = vcmp.eq.s32.totalorder %v455, 6
          %vm526 = vcmp.eq.s32.totalorder %v428, 7
          %vm527 = vcmp.eq.s32.totalorder %v431, 7
          %vm528 = vcmp.eq.s32.totalorder %v434, 7
          %vm529 = vcmp.eq.s32.totalorder %v437, 7
          %vm530 = vcmp.eq.s32.totalorder %v440, 7
          %vm531 = vcmp.eq.s32.totalorder %v443, 7
          %vm532 = vcmp.eq.s32.totalorder %v446, 7
          %vm533 = vcmp.eq.s32.totalorder %v449, 7
          %vm534 = vcmp.eq.s32.totalorder %v452, 7
          %vm535 = vcmp.eq.s32.totalorder %v455, 7
          %v536 = vld [vmem:[#allocation4] sm:$0xff]
          %v537 = vld [vmem:[#allocation4 + $0x8] sm:$0xff]
          %v538 = vld [vmem:[#allocation4 + $0x10] sm:$0xff]
          %v539 = vld [vmem:[#allocation4 + $0x18] sm:$0xff]
          %v540 = vld [vmem:[#allocation4 + $0x20] sm:$0xff]
          %v541 = vld [vmem:[#allocation4 + $0x28] sm:$0xff]
          %v542 = vld [vmem:[#allocation4 + $0x30] sm:$0xff]
          %v543 = vld [vmem:[#allocation4 + $0x38] sm:$0xff]
          %v544 = vld [vmem:[#allocation4 + $0x40] sm:$0xff]
          %v545 = vld [vmem:[#allocation4 + $0x48] sm:$0xff]
          %v546 = vld [vmem:[#allocation4 + $0x80] sm:$0xff]
          %v547 = vld [vmem:[#allocation4 + $0x88] sm:$0xff]
          %v548 = vld [vmem:[#allocation4 + $0x90] sm:$0xff]
          %v549 = vld [vmem:[#allocation4 + $0x98] sm:$0xff]
          %v550 = vld [vmem:[#allocation4 + $0xa0] sm:$0xff]
          %v551 = vld [vmem:[#allocation4 + $0xa8] sm:$0xff]
          %v552 = vld [vmem:[#allocation4 + $0xb0] sm:$0xff]
          %v553 = vld [vmem:[#allocation4 + $0xb8] sm:$0xff]
          %v554 = vld [vmem:[#allocation4 + $0xc0] sm:$0xff]
          %v555 = vld [vmem:[#allocation4 + $0xc8] sm:$0xff]
          %v556 = vld [vmem:[#allocation4 + $0x100] sm:$0xff]
          %v557 = vld [vmem:[#allocation4 + $0x108] sm:$0xff]
          %v558 = vld [vmem:[#allocation4 + $0x110] sm:$0xff]
          %v559 = vld [vmem:[#allocation4 + $0x118] sm:$0xff]
          %v560 = vld [vmem:[#allocation4 + $0x120] sm:$0xff]
          %v561 = vld [vmem:[#allocation4 + $0x128] sm:$0xff]
          %v562 = vld [vmem:[#allocation4 + $0x130] sm:$0xff]
          %v563 = vld [vmem:[#allocation4 + $0x138] sm:$0xff]
          %v564 = vld [vmem:[#allocation4 + $0x140] sm:$0xff]
          %v565 = vld [vmem:[#allocation4 + $0x148] sm:$0xff]
          %v566 = vld [vmem:[#allocation4 + $0x180] sm:$0xff]
          %v567 = vld [vmem:[#allocation4 + $0x188] sm:$0xff]
          %v568 = vld [vmem:[#allocation4 + $0x190] sm:$0xff]
          %v569 = vld [vmem:[#allocation4 + $0x198] sm:$0xff]
          %v570 = vld [vmem:[#allocation4 + $0x1a0] sm:$0xff]
          %v571 = vld [vmem:[#allocation4 + $0x1a8] sm:$0xff]
          %v572 = vld [vmem:[#allocation4 + $0x1b0] sm:$0xff]
          %v573 = vld [vmem:[#allocation4 + $0x1b8] sm:$0xff]
          %v574 = vld [vmem:[#allocation4 + $0x1c0] sm:$0xff]
          %v575 = vld [vmem:[#allocation4 + $0x1c8] sm:$0xff]
          %v576 = vld [vmem:[#allocation4 + $0x200] sm:$0xff]
          %v577 = vld [vmem:[#allocation4 + $0x208] sm:$0xff]
          %v578 = vld [vmem:[#allocation4 + $0x210] sm:$0xff]
          %v579 = vld [vmem:[#allocation4 + $0x218] sm:$0xff]
          %v580 = vld [vmem:[#allocation4 + $0x220] sm:$0xff]
          %v581 = vld [vmem:[#allocation4 + $0x228] sm:$0xff]
          %v582 = vld [vmem:[#allocation4 + $0x230] sm:$0xff]
          %v583 = vld [vmem:[#allocation4 + $0x238] sm:$0xff]
          %v584 = vld [vmem:[#allocation4 + $0x240] sm:$0xff]
          %v585 = vld [vmem:[#allocation4 + $0x248] sm:$0xff]
          %v586 = vld [vmem:[#allocation4 + $0x280] sm:$0xff]
          %v587 = vld [vmem:[#allocation4 + $0x288] sm:$0xff]
          %v588 = vld [vmem:[#allocation4 + $0x290] sm:$0xff]
          %v589 = vld [vmem:[#allocation4 + $0x298] sm:$0xff]
          %v590 = vld [vmem:[#allocation4 + $0x2a0] sm:$0xff]
          %v591 = vld [vmem:[#allocation4 + $0x2a8] sm:$0xff]
          %v592 = vld [vmem:[#allocation4 + $0x2b0] sm:$0xff]
          %v593 = vld [vmem:[#allocation4 + $0x2b8] sm:$0xff]
          %v594 = vld [vmem:[#allocation4 + $0x2c0] sm:$0xff]
          %v595 = vld [vmem:[#allocation4 + $0x2c8] sm:$0xff]
          %v596 = vld [vmem:[#allocation4 + $0x300] sm:$0xff]
          %v597 = vld [vmem:[#allocation4 + $0x308] sm:$0xff]
          %v598 = vld [vmem:[#allocation4 + $0x310] sm:$0xff]
          %v599 = vld [vmem:[#allocation4 + $0x318] sm:$0xff]
          %v600 = vld [vmem:[#allocation4 + $0x320] sm:$0xff]
          %v601 = vld [vmem:[#allocation4 + $0x328] sm:$0xff]
          %v602 = vld [vmem:[#allocation4 + $0x330] sm:$0xff]
          %v603 = vld [vmem:[#allocation4 + $0x338] sm:$0xff]
          %v604 = vld [vmem:[#allocation4 + $0x340] sm:$0xff]
          %v605 = vld [vmem:[#allocation4 + $0x348] sm:$0xff]
          %v606 = vld [vmem:[#allocation4 + $0x380] sm:$0xff]
          %v607 = vld [vmem:[#allocation4 + $0x388] sm:$0xff]
          %v608 = vld [vmem:[#allocation4 + $0x390] sm:$0xff]
          %v609 = vld [vmem:[#allocation4 + $0x398] sm:$0xff]
          %v610 = vld [vmem:[#allocation4 + $0x3a0] sm:$0xff]
          %v611 = vld [vmem:[#allocation4 + $0x3a8] sm:$0xff]
          %v612 = vld [vmem:[#allocation4 + $0x3b0] sm:$0xff]
          %v613 = vld [vmem:[#allocation4 + $0x3b8] sm:$0xff]
          %v614 = vld [vmem:[#allocation4 + $0x3c0] sm:$0xff]
          %v615 = vld [vmem:[#allocation4 + $0x3c8] sm:$0xff]
          %v616 = vsel %vm456, %v536, 0.0
          %v617 = vsel %vm457, %v537, 0.0
          %v618 = vsel %vm458, %v538, 0.0
          %v619 = vsel %vm459, %v539, 0.0
          %v620 = vsel %vm460, %v540, 0.0
          %v621 = vsel %vm461, %v541, 0.0
          %v622 = vsel %vm462, %v542, 0.0
          %v623 = vsel %vm463, %v543, 0.0
          %v624 = vsel %vm464, %v544, 0.0
          %v625 = vsel %vm465, %v545, 0.0
          %v626 = vsel %vm466, %v546, 0.0
          %v627 = vsel %vm467, %v547, 0.0
          %v628 = vsel %vm468, %v548, 0.0
          %v629 = vsel %vm469, %v549, 0.0
          %v630 = vsel %vm470, %v550, 0.0
          %v631 = vsel %vm471, %v551, 0.0
          %v632 = vsel %vm472, %v552, 0.0
          %v633 = vsel %vm473, %v553, 0.0
          %v634 = vsel %vm474, %v554, 0.0
          %v635 = vsel %vm475, %v555, 0.0
          %v636 = vsel %vm476, %v556, 0.0
          %v637 = vsel %vm477, %v557, 0.0
          %v638 = vsel %vm478, %v558, 0.0
          %v639 = vsel %vm479, %v559, 0.0
          %v640 = vsel %vm480, %v560, 0.0
          %v641 = vsel %vm481, %v561, 0.0
          %v642 = vsel %vm482, %v562, 0.0
          %v643 = vsel %vm483, %v563, 0.0
          %v644 = vsel %vm484, %v564, 0.0
          %v645 = vsel %vm485, %v565, 0.0
          %v646 = vsel %vm486, %v566, 0.0
          %v647 = vsel %vm487, %v567, 0.0
          %v648 = vsel %vm488, %v568, 0.0
          %v649 = vsel %vm489, %v569, 0.0
          %v650 = vsel %vm490, %v570, 0.0
          %v651 = vsel %vm491, %v571, 0.0
          %v652 = vsel %vm492, %v572, 0.0
          %v653 = vsel %vm493, %v573, 0.0
          %v654 = vsel %vm494, %v574, 0.0
          %v655 = vsel %vm495, %v575, 0.0
          %v656 = vsel %vm496, %v576, 0.0
          %v657 = vsel %vm497, %v577, 0.0
          %v658 = vsel %vm498, %v578, 0.0
          %v659 = vsel %vm499, %v579, 0.0
          %v660 = vsel %vm500, %v580, 0.0
          %v661 = vsel %vm501, %v581, 0.0
          %v662 = vsel %vm502, %v582, 0.0
          %v663 = vsel %vm503, %v583, 0.0
          %v664 = vsel %vm504, %v584, 0.0
          %v665 = vsel %vm505, %v585, 0.0
          %v666 = vsel %vm506, %v586, 0.0
          %v667 = vsel %vm507, %v587, 0.0
          %v668 = vsel %vm508, %v588, 0.0
          %v669 = vsel %vm509, %v589, 0.0
          %v670 = vsel %vm510, %v590, 0.0
          %v671 = vsel %vm511, %v591, 0.0
          %v672 = vsel %vm512, %v592, 0.0
          %v673 = vsel %vm513, %v593, 0.0
          %v674 = vsel %vm514, %v594, 0.0
          %v675 = vsel %vm515, %v595, 0.0
          %v676 = vsel %vm516, %v596, 0.0
          %v677 = vsel %vm517, %v597, 0.0
          %v678 = vsel %vm518, %v598, 0.0
          %v679 = vsel %vm519, %v599, 0.0
          %v680 = vsel %vm520, %v600, 0.0
          %v681 = vsel %vm521, %v601, 0.0
          %v682 = vsel %vm522, %v602, 0.0
          %v683 = vsel %vm523, %v603, 0.0
          %v684 = vsel %vm524, %v604, 0.0
          %v685 = vsel %vm525, %v605, 0.0
          %v686 = vsel %vm526, %v606, 0.0
          %v687 = vsel %vm527, %v607, 0.0
          %v688 = vsel %vm528, %v608, 0.0
          %v689 = vsel %vm529, %v609, 0.0
          %v690 = vsel %vm530, %v610, 0.0
          %v691 = vsel %vm531, %v611, 0.0
          %v692 = vsel %vm532, %v612, 0.0
          %v693 = vsel %vm533, %v613, 0.0
          %v694 = vsel %vm534, %v614, 0.0
          %v695 = vsel %vm535, %v615, 0.0
          %v696 = vadd.f32 %v616, %v626
          %v697 = vadd.f32 %v696, %v636
          %v698 = vadd.f32 %v697, %v646
          %v699 = vadd.f32 %v698, %v656
          %v700 = vadd.f32 %v699, %v666
          %v701 = vadd.f32 %v700, %v676
          %v702 = vadd.f32 %v701, %v686
          %v703 = vadd.f32 %v617, %v627
          %v704 = vadd.f32 %v703, %v637
          %v705 = vadd.f32 %v704, %v647
          %v706 = vadd.f32 %v705, %v657
          %v707 = vadd.f32 %v706, %v667
          %v708 = vadd.f32 %v707, %v677
          %v709 = vadd.f32 %v708, %v687
          %v710 = vadd.f32 %v618, %v628
          %v711 = vadd.f32 %v710, %v638
          %v712 = vadd.f32 %v711, %v648
          %v713 = vadd.f32 %v712, %v658
          %v714 = vadd.f32 %v713, %v668
          %v715 = vadd.f32 %v714, %v678
          %v716 = vadd.f32 %v715, %v688
          %v717 = vadd.f32 %v619, %v629
          %v718 = vadd.f32 %v717, %v639
          %v719 = vadd.f32 %v718, %v649
          %v720 = vadd.f32 %v719, %v659
          %v721 = vadd.f32 %v720, %v669
          %v722 = vadd.f32 %v721, %v679
          %v723 = vadd.f32 %v722, %v689
          %v724 = vadd.f32 %v620, %v630
          %v725 = vadd.f32 %v724, %v640
          %v726 = vadd.f32 %v725, %v650
          %v727 = vadd.f32 %v726, %v660
          %v728 = vadd.f32 %v727, %v670
          %v729 = vadd.f32 %v728, %v680
          %v730 = vadd.f32 %v729, %v690
          %v731 = vadd.f32 %v621, %v631
          %v732 = vadd.f32 %v731, %v641
          %v733 = vadd.f32 %v732, %v651
          %v734 = vadd.f32 %v733, %v661
          %v735 = vadd.f32 %v734, %v671
          %v736 = vadd.f32 %v735, %v681
          %v737 = vadd.f32 %v736, %v691
          %v738 = vadd.f32 %v622, %v632
          %v739 = vadd.f32 %v738, %v642
          %v740 = vadd.f32 %v739, %v652
          %v741 = vadd.f32 %v740, %v662
          %v742 = vadd.f32 %v741, %v672
          %v743 = vadd.f32 %v742, %v682
          %v744 = vadd.f32 %v743, %v692
          %v745 = vadd.f32 %v623, %v633
          %v746 = vadd.f32 %v745, %v643
          %v747 = vadd.f32 %v746, %v653
          %v748 = vadd.f32 %v747, %v663
          %v749 = vadd.f32 %v748, %v673
          %v750 = vadd.f32 %v749, %v683
          %v751 = vadd.f32 %v750, %v693
          %v752 = vadd.f32 %v624, %v634
          %v753 = vadd.f32 %v752, %v644
          %v754 = vadd.f32 %v753, %v654
          %v755 = vadd.f32 %v754, %v664
          %v756 = vadd.f32 %v755, %v674
          %v757 = vadd.f32 %v756, %v684
          %v758 = vadd.f32 %v757, %v694
          %v759 = vadd.f32 %v625, %v635
          %v760 = vadd.f32 %v759, %v645
          %v761 = vadd.f32 %v760, %v655
          %v762 = vadd.f32 %v761, %v665
          %v763 = vadd.f32 %v762, %v675
          %v764 = vadd.f32 %v763, %v685
          %v765 = vadd.f32 %v764, %v695
          %v766 = vpack.c.bf16 %v709, %v702
          %v767 = vpack.c.bf16 %v723, %v716
          %v768 = vpack.c.bf16 %v737, %v730
          %v769 = vpack.c.bf16 %v751, %v744
          %v770 = vpack.c.bf16 %v765, %v758
          %771 = vst [vmem:[#allocation2] sm:$0xff] %v766
          %772 = vst [vmem:[#allocation2 + $0x8] sm:$0xff] %v767
          %773 = vst [vmem:[#allocation2 + $0x10] sm:$0xff] %v768
          %774 = vst [vmem:[#allocation2 + $0x18] sm:$0xff] %v769
          %775 = vst [vmem:[#allocation2 + $0x20] sm:$0xff] %v770
        $region52: #{ladapter_forward.1} parent=47 // pred_fallthru
          _
        %v776 = vld [vmem:[%s178] sm:$0xf]
        %v777 = vld [vmem:[%s178 + $0x4] sm:$0xf]
        %v778 = vld [vmem:[%s178 + $0x8] sm:$0xf]
        %v779 = vld [vmem:[%s178 + $0xc] sm:$0xf]
        %v780 = vld [vmem:[%s178 + $0x10] sm:$0xf]
        %v781 = vld [vmem:[%s178 + $0x14] sm:$0xf]
        %v782 = vld [vmem:[%s178 + $0x18] sm:$0xf]
        %v783 = vld [vmem:[%s178 + $0x1c] sm:$0xf]
        %v784 = vld [vmem:[%s178 + $0x20] sm:$0xf]
        %v785 = vld [vmem:[%s178 + $0x24] sm:$0xf]
        %v786 = vld [vmem:[%s178 + $0x28] sm:$0xf]
        %v787 = vld [vmem:[%s178 + $0x2c] sm:$0xf]
        %v788 = vld [vmem:[%s178 + $0x30] sm:$0xf]
        %v789 = vld [vmem:[%s178 + $0x34] sm:$0xf]
        %v790 = vld [vmem:[%s178 + $0x38] sm:$0xf]
        %v791 = vld [vmem:[%s178 + $0x3c] sm:$0xf]
        %v792 = vld [vmem:[#allocation2] sm:$0xff]
        %v793 = vld [vmem:[#allocation2 + $0x8] sm:$0xff]
        %v794 = vld [vmem:[#allocation2 + $0x10] sm:$0xff]
        %v795 = vld [vmem:[#allocation2 + $0x18] sm:$0xff]
        %v796 = vld [vmem:[#allocation2 + $0x20] sm:$0xff]
        %v797 = vld [vmem:[#allocation2 + $0x28] sm:$0xff]
        %v798 = vld [vmem:[#allocation2 + $0x30] sm:$0xff]
        %v799 = vld [vmem:[#allocation2 + $0x38] sm:$0xff]
        %v816 = vunpack.c.l.b16 %v776
        %v817 = vunpack.c.l.b16 %v777
        %v818 = vunpack.c.l.b16 %v778
        %v819 = vunpack.c.l.b16 %v779
        %v820 = vunpack.c.l.b16 %v780
        %v821 = vunpack.c.l.b16 %v781
        %v822 = vunpack.c.l.b16 %v782
        %v823 = vunpack.c.l.b16 %v783
        %v824 = vunpack.c.l.b16 %v784
        %v825 = vunpack.c.l.b16 %v785
        %v826 = vunpack.c.l.b16 %v786
        %v827 = vunpack.c.l.b16 %v787
        %v828 = vunpack.c.l.b16 %v788
        %v829 = vunpack.c.l.b16 %v789
        %v830 = vunpack.c.l.b16 %v790
        %v831 = vunpack.c.l.b16 %v791
        %v832 = vpack.c.b16 %v817, %v816
        %v833 = vpack.c.b16 %v819, %v818
        %v834 = vpack.c.b16 %v821, %v820
        %v835 = vpack.c.b16 %v823, %v822
        %v836 = vpack.c.b16 %v825, %v824
        %v837 = vpack.c.b16 %v827, %v826
        %v838 = vpack.c.b16 %v829, %v828
        %v839 = vpack.c.b16 %v831, %v830
        %848 = vmatprep.subr.bf16.mxu0 0
        %849 = vmatpush1.bf16.msra.mxu0 %v792
        %850 = vmatprep.subr.bf16.mxu0 0
        %851 = vmatpush1.bf16.msra.mxu0 %v793
        %852 = vmatprep.subr.bf16.mxu0 0
        %853 = vmatpush1.bf16.msra.mxu0 %v794
        %854 = vmatprep.subr.bf16.mxu0 0
        %855 = vmatpush1.bf16.msra.mxu0 %v795
        %856 = vmatprep.subr.bf16.mxu0 0
        %857 = vmatpush1.bf16.msra.mxu0 %v796
        %858 = vmatprep.subr.bf16.mxu0 0
        %859 = vmatpush1.bf16.msra.mxu0 %v797
        %860 = vmatprep.subr.bf16.mxu0 0
        %861 = vmatpush1.bf16.msra.mxu0 %v798
        %862 = vmatprep.subr.bf16.mxu0 0
        %863 = vmatpush1.bf16.msra.mxu0 %v799
        %864 = vmatprep.subr.bf16.mxu0 0
        %865 = vmatpush1.bf16.msra.mxu0 0
        %866 = vmatprep.subr.bf16.mxu0 0
        %867 = vmatpush1.bf16.msra.mxu0 0
        %868 = vmatprep.subr.bf16.mxu0 0
        %869 = vmatpush1.bf16.msra.mxu0 0
        %870 = vmatprep.subr.bf16.mxu0 0
        %871 = vmatpush1.bf16.msra.mxu0 0
        %872 = vmatprep.subr.bf16.mxu0 0
        %873 = vmatpush1.bf16.msra.mxu0 0
        %874 = vmatprep.subr.bf16.mxu0 0
        %875 = vmatpush1.bf16.msra.mxu0 0
        %876 = vmatprep.subr.bf16.mxu0 0
        %877 = vmatpush1.bf16.msra.mxu0 0
        %878 = vmatprep.subr.bf16.mxu0 0
        %879 = vmatpush1.bf16.msra.mxu0 0
        %880 = vmatprep.mubr.bf16.mxu0 0
        %881 = vmatmul.mubr.bf16.gmra.mrb[0].mxu0 %v832
        %v882 = vpop.f32.mrb[0].mxu0
        %v883 = vadd.f32 0.0, %v882
        %v884 = vpop.f32.mrb[0].mxu0
        %v885 = vpop.f32.mrb[0].mxu0
        %v886 = vadd.f32 0.0, %v885
        %v887 = vpop.f32.mrb[0].mxu0
        %888 = vmatprep.mubr.bf16.mxu0 0
        %889 = vmatmul.mubr.bf16.gmra.mrb[0].mxu0 %v833
        %v890 = vpop.f32.mrb[0].mxu0
        %v891 = vadd.f32 0.0, %v890
        %v892 = vpop.f32.mrb[0].mxu0
        %v893 = vpop.f32.mrb[0].mxu0
        %v894 = vadd.f32 0.0, %v893
        %v895 = vpop.f32.mrb[0].mxu0
        %896 = vmatprep.mubr.bf16.mxu0 0
        %897 = vmatmul.mubr.bf16.gmra.mrb[0].mxu0 %v834
        %v898 = vpop.f32.mrb[0].mxu0
        %v899 = vadd.f32 0.0, %v898
        %v900 = vpop.f32.mrb[0].mxu0
        %v901 = vpop.f32.mrb[0].mxu0
        %v902 = vadd.f32 0.0, %v901
        %v903 = vpop.f32.mrb[0].mxu0
        %904 = vmatprep.mubr.bf16.mxu0 0
        %905 = vmatmul.mubr.bf16.gmra.mrb[0].mxu0 %v835
        %v906 = vpop.f32.mrb[0].mxu0
        %v907 = vadd.f32 0.0, %v906
        %v908 = vpop.f32.mrb[0].mxu0
        %v909 = vpop.f32.mrb[0].mxu0
        %v910 = vadd.f32 0.0, %v909
        %v911 = vpop.f32.mrb[0].mxu0
        %912 = vmatprep.mubr.bf16.mxu0 0
        %913 = vmatmul.mubr.bf16.gmra.mrb[0].mxu0 %v836
        %v914 = vpop.f32.mrb[0].mxu0
        %v915 = vadd.f32 0.0, %v914
        %v916 = vpop.f32.mrb[0].mxu0
        %v917 = vpop.f32.mrb[0].mxu0
        %v918 = vadd.f32 0.0, %v917
        %v919 = vpop.f32.mrb[0].mxu0
        %920 = vmatprep.mubr.bf16.mxu0 0
        %921 = vmatmul.mubr.bf16.gmra.mrb[0].mxu0 %v837
        %v922 = vpop.f32.mrb[0].mxu0
        %v923 = vadd.f32 0.0, %v922
        %v924 = vpop.f32.mrb[0].mxu0
        %v925 = vpop.f32.mrb[0].mxu0
        %v926 = vadd.f32 0.0, %v925
        %v927 = vpop.f32.mrb[0].mxu0
        %928 = vmatprep.mubr.bf16.mxu0 0
        %929 = vmatmul.mubr.bf16.gmra.mrb[0].mxu0 %v838
        %v930 = vpop.f32.mrb[0].mxu0
        %v931 = vadd.f32 0.0, %v930
        %v932 = vpop.f32.mrb[0].mxu0
        %v933 = vpop.f32.mrb[0].mxu0
        %v934 = vadd.f32 0.0, %v933
        %v935 = vpop.f32.mrb[0].mxu0
        %936 = vmatprep.mubr.bf16.mxu0 0
        %937 = vmatmul.mubr.bf16.gmra.mrb[0].mxu0 %v839
        %v938 = vpop.f32.mrb[0].mxu0
        %v939 = vadd.f32 0.0, %v938
        %v940 = vpop.f32.mrb[0].mxu0
        %v941 = vpop.f32.mrb[0].mxu0
        %v942 = vadd.f32 0.0, %v941
        %v943 = vpop.f32.mrb[0].mxu0
        %944 = vdwg.mxu0
        %v945 = vpack.c.bf16 %v886, %v883
        %v946 = vpack.c.bf16 %v894, %v891
        %v947 = vpack.c.bf16 %v902, %v899
        %v948 = vpack.c.bf16 %v910, %v907
        %v949 = vpack.c.bf16 %v918, %v915
        %v950 = vpack.c.bf16 %v926, %v923
        %v951 = vpack.c.bf16 %v934, %v931
        %v952 = vpack.c.bf16 %v942, %v939
        %v953 = vld [vmem:[%s3] sm:$0xff]
        %v954 = vld [vmem:[%s3 + $0x8] sm:$0xff]
        %v955 = vld [vmem:[%s3 + $0x10] sm:$0xff]
        %v956 = vld [vmem:[%s3 + $0x18] sm:$0xff]
        %v957 = vld [vmem:[%s3 + $0x20] sm:$0xff]
        %v958 = vld [vmem:[%s3 + $0x28] sm:$0xff]
        %v959 = vld [vmem:[%s3 + $0x30] sm:$0xff]
        %v960 = vld [vmem:[%s3 + $0x38] sm:$0xff]
        %v961 = vld [vmem:[%s3 + $0x40] sm:$0xff]
        %v962 = vld [vmem:[%s3 + $0x48] sm:$0xff]
        %v963 = vld [vmem:[%s3 + $0x50] sm:$0xff]
        %v964 = vld [vmem:[%s3 + $0x58] sm:$0xff]
        %v965 = vld [vmem:[%s3 + $0x60] sm:$0xff]
        %v966 = vld [vmem:[%s3 + $0x68] sm:$0xff]
        %v967 = vld [vmem:[%s3 + $0x70] sm:$0xff]
        %v968 = vld [vmem:[%s3 + $0x78] sm:$0xff]
        %v969 = vld [vmem:[%s4] sm:$0x3]
        %v971 = vlaneseq
        %v972 = vshrl.u32 %v971, 7
        %v973 = vsub.s32 0, %v972
        %v974 = vrot.slane %v969, %v973
        %v975 = vlaneseq
        %v976 = vshrl.u32 %v975, 7
        %v977 = vsub.s32 1, %v976
        %v978 = vrot.slane %v969, %v977
        %v997 = vunpack.c.l.b16 %v953
        %v998 = vunpack.c.h.b16 %v953
        %v999 = vunpack.c.l.b16 %v954
        %v1000 = vunpack.c.h.b16 %v954
        %v1001 = vunpack.c.l.b16 %v955
        %v1002 = vunpack.c.h.b16 %v955
        %v1003 = vunpack.c.l.b16 %v956
        %v1004 = vunpack.c.h.b16 %v956
        %v1005 = vunpack.c.l.b16 %v957
        %v1006 = vunpack.c.h.b16 %v957
        %v1007 = vunpack.c.l.b16 %v958
        %v1008 = vunpack.c.h.b16 %v958
        %v1009 = vunpack.c.l.b16 %v959
        %v1010 = vunpack.c.h.b16 %v959
        %v1011 = vunpack.c.l.b16 %v960
        %v1012 = vunpack.c.h.b16 %v960
        %v1013 = vunpack.c.l.b16 %v961
        %v1014 = vunpack.c.h.b16 %v961
        %v1015 = vunpack.c.l.b16 %v962
        %v1016 = vunpack.c.h.b16 %v962
        %v1017 = vunpack.c.l.b16 %v963
        %v1018 = vunpack.c.h.b16 %v963
        %v1019 = vunpack.c.l.b16 %v964
        %v1020 = vunpack.c.h.b16 %v964
        %v1021 = vunpack.c.l.b16 %v965
        %v1022 = vunpack.c.h.b16 %v965
        %v1023 = vunpack.c.l.b16 %v966
        %v1024 = vunpack.c.h.b16 %v966
        %v1025 = vunpack.c.l.b16 %v967
        %v1026 = vunpack.c.h.b16 %v967
        %v1027 = vunpack.c.l.b16 %v968
        %v1028 = vunpack.c.h.b16 %v968
        %v1029 = vpack.c.b16 %v999, %v997
        %v1030 = vpack.c.b16 %v1000, %v998
        %v1031 = vpack.c.b16 %v1003, %v1001
        %v1032 = vpack.c.b16 %v1004, %v1002
        %v1033 = vpack.c.b16 %v1007, %v1005
        %v1034 = vpack.c.b16 %v1008, %v1006
        %v1035 = vpack.c.b16 %v1011, %v1009
        %v1036 = vpack.c.b16 %v1012, %v1010
        %v1037 = vpack.c.b16 %v1015, %v1013
        %v1038 = vpack.c.b16 %v1016, %v1014
        %v1039 = vpack.c.b16 %v1019, %v1017
        %v1040 = vpack.c.b16 %v1020, %v1018
        %v1041 = vpack.c.b16 %v1023, %v1021
        %v1042 = vpack.c.b16 %v1024, %v1022
        %v1043 = vpack.c.b16 %v1027, %v1025
        %v1044 = vpack.c.b16 %v1028, %v1026
        %1061 = vmatprep.subr.bf16.mxu0 %v1030
        %1062 = vmatpush1.bf16.msra.mxu0 %v1029
        %1063 = vmatprep.subr.bf16.mxu0 %v1032
        %1064 = vmatpush1.bf16.msra.mxu0 %v1031
        %1065 = vmatprep.subr.bf16.mxu0 %v1034
        %1066 = vmatpush1.bf16.msra.mxu0 %v1033
        %1067 = vmatprep.subr.bf16.mxu0 %v1036
        %1068 = vmatpush1.bf16.msra.mxu0 %v1035
        %1069 = vmatprep.subr.bf16.mxu0 %v1038
        %1070 = vmatpush1.bf16.msra.mxu0 %v1037
        %1071 = vmatprep.subr.bf16.mxu0 %v1040
        %1072 = vmatpush1.bf16.msra.mxu0 %v1039
        %1073 = vmatprep.subr.bf16.mxu0 %v1042
        %1074 = vmatpush1.bf16.msra.mxu0 %v1041
        %1075 = vmatprep.subr.bf16.mxu0 %v1044
        %1076 = vmatpush1.bf16.msra.mxu0 %v1043
        %1077 = vmatprep.subr.bf16.mxu0 0
        %1078 = vmatpush1.bf16.msra.mxu0 0
        %1079 = vmatprep.subr.bf16.mxu0 0
        %1080 = vmatpush1.bf16.msra.mxu0 0
        %1081 = vmatprep.subr.bf16.mxu0 0
        %1082 = vmatpush1.bf16.msra.mxu0 0
        %1083 = vmatprep.subr.bf16.mxu0 0
        %1084 = vmatpush1.bf16.msra.mxu0 0
        %1085 = vmatprep.subr.bf16.mxu0 0
        %1086 = vmatpush1.bf16.msra.mxu0 0
        %1087 = vmatprep.subr.bf16.mxu0 0
        %1088 = vmatpush1.bf16.msra.mxu0 0
        %1089 = vmatprep.subr.bf16.mxu0 0
        %1090 = vmatpush1.bf16.msra.mxu0 0
        %1091 = vmatprep.subr.bf16.mxu0 0
        %1092 = vmatpush1.bf16.msra.mxu0 0
        %1093 = vmatprep.mubr.bf16.mxu0 0
        %1094 = vmatmul.mubr.bf16.gmra.mrb[0].mxu0 %v945
        %v1095 = vpop.f32.mrb[0].mxu0
        %v1096 = vadd.f32 %v974, %v1095
        %v1097 = vpop.f32.mrb[0].mxu0
        %v1098 = vadd.f32 %v978, %v1097
        %v1099 = vpop.f32.mrb[0].mxu0
        %v1100 = vadd.f32 %v974, %v1099
        %v1101 = vpop.f32.mrb[0].mxu0
        %v1102 = vadd.f32 %v978, %v1101
        %1103 = vmatprep.mubr.bf16.mxu0 0
        %1104 = vmatmul.mubr.bf16.gmra.mrb[0].mxu0 %v946
        %v1105 = vpop.f32.mrb[0].mxu0
        %v1106 = vadd.f32 %v974, %v1105
        %v1107 = vpop.f32.mrb[0].mxu0
        %v1108 = vadd.f32 %v978, %v1107
        %v1109 = vpop.f32.mrb[0].mxu0
        %v1110 = vadd.f32 %v974, %v1109
        %v1111 = vpop.f32.mrb[0].mxu0
        %v1112 = vadd.f32 %v978, %v1111
        %1113 = vmatprep.mubr.bf16.mxu0 0
        %1114 = vmatmul.mubr.bf16.gmra.mrb[0].mxu0 %v947
        %v1115 = vpop.f32.mrb[0].mxu0
        %v1116 = vadd.f32 %v974, %v1115
        %v1117 = vpop.f32.mrb[0].mxu0
        %v1118 = vadd.f32 %v978, %v1117
        %v1119 = vpop.f32.mrb[0].mxu0
        %v1120 = vadd.f32 %v974, %v1119
        %v1121 = vpop.f32.mrb[0].mxu0
        %v1122 = vadd.f32 %v978, %v1121
        %1123 = vmatprep.mubr.bf16.mxu0 0
        %1124 = vmatmul.mubr.bf16.gmra.mrb[0].mxu0 %v948
        %v1125 = vpop.f32.mrb[0].mxu0
        %v1126 = vadd.f32 %v974, %v1125
        %v1127 = vpop.f32.mrb[0].mxu0
        %v1128 = vadd.f32 %v978, %v1127
        %v1129 = vpop.f32.mrb[0].mxu0
        %v1130 = vadd.f32 %v974, %v1129
        %v1131 = vpop.f32.mrb[0].mxu0
        %v1132 = vadd.f32 %v978, %v1131
        %1133 = vmatprep.mubr.bf16.mxu0 0
        %1134 = vmatmul.mubr.bf16.gmra.mrb[0].mxu0 %v949
        %v1135 = vpop.f32.mrb[0].mxu0
        %v1136 = vadd.f32 %v974, %v1135
        %v1137 = vpop.f32.mrb[0].mxu0
        %v1138 = vadd.f32 %v978, %v1137
        %v1139 = vpop.f32.mrb[0].mxu0
        %v1140 = vadd.f32 %v974, %v1139
        %v1141 = vpop.f32.mrb[0].mxu0
        %v1142 = vadd.f32 %v978, %v1141
        %1143 = vmatprep.mubr.bf16.mxu0 0
        %1144 = vmatmul.mubr.bf16.gmra.mrb[0].mxu0 %v950
        %v1145 = vpop.f32.mrb[0].mxu0
        %v1146 = vadd.f32 %v974, %v1145
        %v1147 = vpop.f32.mrb[0].mxu0
        %v1148 = vadd.f32 %v978, %v1147
        %v1149 = vpop.f32.mrb[0].mxu0
        %v1150 = vadd.f32 %v974, %v1149
        %v1151 = vpop.f32.mrb[0].mxu0
        %v1152 = vadd.f32 %v978, %v1151
        %1153 = vmatprep.mubr.bf16.mxu0 0
        %1154 = vmatmul.mubr.bf16.gmra.mrb[0].mxu0 %v951
        %v1155 = vpop.f32.mrb[0].mxu0
        %v1156 = vadd.f32 %v974, %v1155
        %v1157 = vpop.f32.mrb[0].mxu0
        %v1158 = vadd.f32 %v978, %v1157
        %v1159 = vpop.f32.mrb[0].mxu0
        %v1160 = vadd.f32 %v974, %v1159
        %v1161 = vpop.f32.mrb[0].mxu0
        %v1162 = vadd.f32 %v978, %v1161
        %1163 = vmatprep.mubr.bf16.mxu0 0
        %1164 = vmatmul.mubr.bf16.gmra.mrb[0].mxu0 %v952
        %v1165 = vpop.f32.mrb[0].mxu0
        %v1166 = vadd.f32 %v974, %v1165
        %v1167 = vpop.f32.mrb[0].mxu0
        %v1168 = vadd.f32 %v978, %v1167
        %v1169 = vpop.f32.mrb[0].mxu0
        %v1170 = vadd.f32 %v974, %v1169
        %v1171 = vpop.f32.mrb[0].mxu0
        %v1172 = vadd.f32 %v978, %v1171
        %1173 = vdwg.mxu0
        %v1174 = vmax.f32 %v1096, 0.0
        %v1175 = vmax.f32 %v1098, 0.0
        %v1176 = vmax.f32 %v1100, 0.0
        %v1177 = vmax.f32 %v1102, 0.0
        %v1178 = vmax.f32 %v1106, 0.0
        %v1179 = vmax.f32 %v1108, 0.0
        %v1180 = vmax.f32 %v1110, 0.0
        %v1181 = vmax.f32 %v1112, 0.0
        %v1182 = vmax.f32 %v1116, 0.0
        %v1183 = vmax.f32 %v1118, 0.0
        %v1184 = vmax.f32 %v1120, 0.0
        %v1185 = vmax.f32 %v1122, 0.0
        %v1186 = vmax.f32 %v1126, 0.0
        %v1187 = vmax.f32 %v1128, 0.0
        %v1188 = vmax.f32 %v1130, 0.0
        %v1189 = vmax.f32 %v1132, 0.0
        %v1190 = vmax.f32 %v1136, 0.0
        %v1191 = vmax.f32 %v1138, 0.0
        %v1192 = vmax.f32 %v1140, 0.0
        %v1193 = vmax.f32 %v1142, 0.0
        %v1194 = vmax.f32 %v1146, 0.0
        %v1195 = vmax.f32 %v1148, 0.0
        %v1196 = vmax.f32 %v1150, 0.0
        %v1197 = vmax.f32 %v1152, 0.0
        %v1198 = vmax.f32 %v1156, 0.0
        %v1199 = vmax.f32 %v1158, 0.0
        %v1200 = vmax.f32 %v1160, 0.0
        %v1201 = vmax.f32 %v1162, 0.0
        %v1202 = vmax.f32 %v1166, 0.0
        %v1203 = vmax.f32 %v1168, 0.0
        %v1204 = vmax.f32 %v1170, 0.0
        %v1205 = vmax.f32 %v1172, 0.0
        %v1206 = vpack.c.bf16 %v1176, %v1174
        %v1207 = vpack.c.bf16 %v1177, %v1175
        %v1208 = vpack.c.bf16 %v1180, %v1178
        %v1209 = vpack.c.bf16 %v1181, %v1179
        %v1210 = vpack.c.bf16 %v1184, %v1182
        %v1211 = vpack.c.bf16 %v1185, %v1183
        %v1212 = vpack.c.bf16 %v1188, %v1186
        %v1213 = vpack.c.bf16 %v1189, %v1187
        %v1214 = vpack.c.bf16 %v1192, %v1190
        %v1215 = vpack.c.bf16 %v1193, %v1191
        %v1216 = vpack.c.bf16 %v1196, %v1194
        %v1217 = vpack.c.bf16 %v1197, %v1195
        %v1218 = vpack.c.bf16 %v1200, %v1198
        %v1219 = vpack.c.bf16 %v1201, %v1199
        %v1220 = vpack.c.bf16 %v1204, %v1202
        %v1221 = vpack.c.bf16 %v1205, %v1203
        %v1222 = vld [vmem:[%s5] sm:$0xf]
        %v1223 = vld [vmem:[%s5 + $0x4] sm:$0xf]
        %v1224 = vld [vmem:[%s5 + $0x8] sm:$0xf]
        %v1225 = vld [vmem:[%s5 + $0xc] sm:$0xf]
        %v1226 = vld [vmem:[%s5 + $0x10] sm:$0xf]
        %v1227 = vld [vmem:[%s5 + $0x14] sm:$0xf]
        %v1228 = vld [vmem:[%s5 + $0x18] sm:$0xf]
        %v1229 = vld [vmem:[%s5 + $0x1c] sm:$0xf]
        %v1230 = vld [vmem:[%s5 + $0x20] sm:$0xf]
        %v1231 = vld [vmem:[%s5 + $0x24] sm:$0xf]
        %v1232 = vld [vmem:[%s5 + $0x28] sm:$0xf]
        %v1233 = vld [vmem:[%s5 + $0x2c] sm:$0xf]
        %v1234 = vld [vmem:[%s5 + $0x30] sm:$0xf]
        %v1235 = vld [vmem:[%s5 + $0x34] sm:$0xf]
        %v1236 = vld [vmem:[%s5 + $0x38] sm:$0xf]
        %v1237 = vld [vmem:[%s5 + $0x3c] sm:$0xf]
        %v1238 = vld [vmem:[%s5 + $0x40] sm:$0xf]
        %v1239 = vld [vmem:[%s5 + $0x44] sm:$0xf]
        %v1240 = vld [vmem:[%s5 + $0x48] sm:$0xf]
        %v1241 = vld [vmem:[%s5 + $0x4c] sm:$0xf]
        %v1242 = vld [vmem:[%s5 + $0x50] sm:$0xf]
        %v1243 = vld [vmem:[%s5 + $0x54] sm:$0xf]
        %v1244 = vld [vmem:[%s5 + $0x58] sm:$0xf]
        %v1245 = vld [vmem:[%s5 + $0x5c] sm:$0xf]
        %v1246 = vld [vmem:[%s5 + $0x60] sm:$0xf]
        %v1247 = vld [vmem:[%s5 + $0x64] sm:$0xf]
        %v1248 = vld [vmem:[%s5 + $0x68] sm:$0xf]
        %v1249 = vld [vmem:[%s5 + $0x6c] sm:$0xf]
        %v1250 = vld [vmem:[%s5 + $0x70] sm:$0xf]
        %v1251 = vld [vmem:[%s5 + $0x74] sm:$0xf]
        %v1252 = vld [vmem:[%s5 + $0x78] sm:$0xf]
        %v1253 = vld [vmem:[%s5 + $0x7c] sm:$0xf]
        %v1286 = vunpack.c.l.b16 %v1222
        %v1287 = vunpack.c.l.b16 %v1223
        %v1288 = vunpack.c.l.b16 %v1224
        %v1289 = vunpack.c.l.b16 %v1225
        %v1290 = vunpack.c.l.b16 %v1226
        %v1291 = vunpack.c.l.b16 %v1227
        %v1292 = vunpack.c.l.b16 %v1228
        %v1293 = vunpack.c.l.b16 %v1229
        %v1294 = vunpack.c.l.b16 %v1230
        %v1295 = vunpack.c.l.b16 %v1231
        %v1296 = vunpack.c.l.b16 %v1232
        %v1297 = vunpack.c.l.b16 %v1233
        %v1298 = vunpack.c.l.b16 %v1234
        %v1299 = vunpack.c.l.b16 %v1235
        %v1300 = vunpack.c.l.b16 %v1236
        %v1301 = vunpack.c.l.b16 %v1237
        %v1302 = vunpack.c.l.b16 %v1238
        %v1303 = vunpack.c.l.b16 %v1239
        %v1304 = vunpack.c.l.b16 %v1240
        %v1305 = vunpack.c.l.b16 %v1241
        %v1306 = vunpack.c.l.b16 %v1242
        %v1307 = vunpack.c.l.b16 %v1243
        %v1308 = vunpack.c.l.b16 %v1244
        %v1309 = vunpack.c.l.b16 %v1245
        %v1310 = vunpack.c.l.b16 %v1246
        %v1311 = vunpack.c.l.b16 %v1247
        %v1312 = vunpack.c.l.b16 %v1248
        %v1313 = vunpack.c.l.b16 %v1249
        %v1314 = vunpack.c.l.b16 %v1250
        %v1315 = vunpack.c.l.b16 %v1251
        %v1316 = vunpack.c.l.b16 %v1252
        %v1317 = vunpack.c.l.b16 %v1253
        %v1318 = vpack.c.b16 %v1287, %v1286
        %v1319 = vpack.c.b16 %v1289, %v1288
        %v1320 = vpack.c.b16 %v1291, %v1290
        %v1321 = vpack.c.b16 %v1293, %v1292
        %v1322 = vpack.c.b16 %v1295, %v1294
        %v1323 = vpack.c.b16 %v1297, %v1296
        %v1324 = vpack.c.b16 %v1299, %v1298
        %v1325 = vpack.c.b16 %v1301, %v1300
        %v1326 = vpack.c.b16 %v1303, %v1302
        %v1327 = vpack.c.b16 %v1305, %v1304
        %v1328 = vpack.c.b16 %v1307, %v1306
        %v1329 = vpack.c.b16 %v1309, %v1308
        %v1330 = vpack.c.b16 %v1311, %v1310
        %v1331 = vpack.c.b16 %v1313, %v1312
        %v1332 = vpack.c.b16 %v1315, %v1314
        %v1333 = vpack.c.b16 %v1317, %v1316
        %1350 = vmatprep.subr.bf16.mxu0 0
        %1351 = vmatpush1.bf16.msra.mxu0 %v1318
        %1352 = vmatprep.subr.bf16.mxu0 0
        %1353 = vmatpush1.bf16.msra.mxu0 %v1319
        %1354 = vmatprep.subr.bf16.mxu0 0
        %1355 = vmatpush1.bf16.msra.mxu0 %v1320
        %1356 = vmatprep.subr.bf16.mxu0 0
        %1357 = vmatpush1.bf16.msra.mxu0 %v1321
        %1358 = vmatprep.subr.bf16.mxu0 0
        %1359 = vmatpush1.bf16.msra.mxu0 %v1322
        %1360 = vmatprep.subr.bf16.mxu0 0
        %1361 = vmatpush1.bf16.msra.mxu0 %v1323
        %1362 = vmatprep.subr.bf16.mxu0 0
        %1363 = vmatpush1.bf16.msra.mxu0 %v1324
        %1364 = vmatprep.subr.bf16.mxu0 0
        %1365 = vmatpush1.bf16.msra.mxu0 %v1325
        %1366 = vmatprep.subr.bf16.mxu0 0
        %1367 = vmatpush1.bf16.msra.mxu0 %v1326
        %1368 = vmatprep.subr.bf16.mxu0 0
        %1369 = vmatpush1.bf16.msra.mxu0 %v1327
        %1370 = vmatprep.subr.bf16.mxu0 0
        %1371 = vmatpush1.bf16.msra.mxu0 %v1328
        %1372 = vmatprep.subr.bf16.mxu0 0
        %1373 = vmatpush1.bf16.msra.mxu0 %v1329
        %1374 = vmatprep.subr.bf16.mxu0 0
        %1375 = vmatpush1.bf16.msra.mxu0 %v1330
        %1376 = vmatprep.subr.bf16.mxu0 0
        %1377 = vmatpush1.bf16.msra.mxu0 %v1331
        %1378 = vmatprep.subr.bf16.mxu0 0
        %1379 = vmatpush1.bf16.msra.mxu0 %v1332
        %1380 = vmatprep.subr.bf16.mxu0 0
        %1381 = vmatpush1.bf16.msra.mxu0 %v1333
        %1382 = vmatprep.mubr.bf16.mxu0 %v1207
        %1383 = vmatmul.mubr.bf16.gmra.mrb[0].mxu0 %v1206
        %v1384 = vpop.f32.mrb[0].mxu0
        %v1385 = vadd.f32 0.0, %v1384
        %v1386 = vpop.f32.mrb[0].mxu0
        %v1387 = vpop.f32.mrb[0].mxu0
        %v1388 = vadd.f32 0.0, %v1387
        %v1389 = vpop.f32.mrb[0].mxu0
        %1390 = vmatprep.mubr.bf16.mxu0 %v1209
        %1391 = vmatmul.mubr.bf16.gmra.mrb[0].mxu0 %v1208
        %v1392 = vpop.f32.mrb[0].mxu0
        %v1393 = vadd.f32 0.0, %v1392
        %v1394 = vpop.f32.mrb[0].mxu0
        %v1395 = vpop.f32.mrb[0].mxu0
        %v1396 = vadd.f32 0.0, %v1395
        %v1397 = vpop.f32.mrb[0].mxu0
        %1398 = vmatprep.mubr.bf16.mxu0 %v1211
        %1399 = vmatmul.mubr.bf16.gmra.mrb[0].mxu0 %v1210
        %v1400 = vpop.f32.mrb[0].mxu0
        %v1401 = vadd.f32 0.0, %v1400
        %v1402 = vpop.f32.mrb[0].mxu0
        %v1403 = vpop.f32.mrb[0].mxu0
        %v1404 = vadd.f32 0.0, %v1403
        %v1405 = vpop.f32.mrb[0].mxu0
        %1406 = vmatprep.mubr.bf16.mxu0 %v1213
        %1407 = vmatmul.mubr.bf16.gmra.mrb[0].mxu0 %v1212
        %v1408 = vpop.f32.mrb[0].mxu0
        %v1409 = vadd.f32 0.0, %v1408
        %v1410 = vpop.f32.mrb[0].mxu0
        %v1411 = vpop.f32.mrb[0].mxu0
        %v1412 = vadd.f32 0.0, %v1411
        %v1413 = vpop.f32.mrb[0].mxu0
        %1414 = vmatprep.mubr.bf16.mxu0 %v1215
        %1415 = vmatmul.mubr.bf16.gmra.mrb[0].mxu0 %v1214
        %v1416 = vpop.f32.mrb[0].mxu0
        %v1417 = vadd.f32 0.0, %v1416
        %v1418 = vpop.f32.mrb[0].mxu0
        %v1419 = vpop.f32.mrb[0].mxu0
        %v1420 = vadd.f32 0.0, %v1419
        %v1421 = vpop.f32.mrb[0].mxu0
        %1422 = vmatprep.mubr.bf16.mxu0 %v1217
        %1423 = vmatmul.mubr.bf16.gmra.mrb[0].mxu0 %v1216
        %v1424 = vpop.f32.mrb[0].mxu0
        %v1425 = vadd.f32 0.0, %v1424
        %v1426 = vpop.f32.mrb[0].mxu0
        %v1427 = vpop.f32.mrb[0].mxu0
        %v1428 = vadd.f32 0.0, %v1427
        %v1429 = vpop.f32.mrb[0].mxu0
        %1430 = vmatprep.mubr.bf16.mxu0 %v1219
        %1431 = vmatmul.mubr.bf16.gmra.mrb[0].mxu0 %v1218
        %v1432 = vpop.f32.mrb[0].mxu0
        %v1433 = vadd.f32 0.0, %v1432
        %v1434 = vpop.f32.mrb[0].mxu0
        %v1435 = vpop.f32.mrb[0].mxu0
        %v1436 = vadd.f32 0.0, %v1435
        %v1437 = vpop.f32.mrb[0].mxu0
        %1438 = vmatprep.mubr.bf16.mxu0 %v1221
        %1439 = vmatmul.mubr.bf16.gmra.mrb[0].mxu0 %v1220
        %v1440 = vpop.f32.mrb[0].mxu0
        %v1441 = vadd.f32 0.0, %v1440
        %v1442 = vpop.f32.mrb[0].mxu0
        %v1443 = vpop.f32.mrb[0].mxu0
        %v1444 = vadd.f32 0.0, %v1443
        %v1445 = vpop.f32.mrb[0].mxu0
        %1446 = vdwg.mxu0
        %v1447 = vpack.c.bf16 %v1388, %v1385
        %v1448 = vpack.c.bf16 %v1396, %v1393
        %v1449 = vpack.c.bf16 %v1404, %v1401
        %v1450 = vpack.c.bf16 %v1412, %v1409
        %v1451 = vpack.c.bf16 %v1420, %v1417
        %v1452 = vpack.c.bf16 %v1428, %v1425
        %v1453 = vpack.c.bf16 %v1436, %v1433
        %v1454 = vpack.c.bf16 %v1444, %v1441
        %s1455 = sshra.s32 %s181, 4
        %s1456 = sand.u32 %s181, 15
        %s1457 = smul.addr %s1455, 8
        %s1458 = scalar_lea.vmem [#allocation3], %s1457
        %1459 = vst [vmem:[%s1458] sm:$0xff] %v1447
        %1460 = vst [vmem:[%s1458 + $0x8] sm:$0xff] %v1448
        %1461 = vst [vmem:[%s1458 + $0x10] sm:$0xff] %v1449
        %1462 = vst [vmem:[%s1458 + $0x18] sm:$0xff] %v1450
        %1463 = vst [vmem:[%s1458 + $0x20] sm:$0xff] %v1451
        %1464 = vst [vmem:[%s1458 + $0x28] sm:$0xff] %v1452
        %1465 = vst [vmem:[%s1458 + $0x30] sm:$0xff] %v1453
        %1466 = vst [vmem:[%s1458 + $0x38] sm:$0xff] %v1454
      $region48: #{ladapter_forward.1} parent=43 // pred_fallthru
        _
      %p1467 = scmp.eq.s32.totalorder %s21, 1
      // Predicated region
      $region87: #{ladapter_forward.1} parent=43 // pred_check
        %p1468 = pneg %p1467
      $region88: #{ladapter_forward.1} parent=43 // pred_check_branch
        %1470 = sbr.rel (%p1468) target = $region90
      $region89: #{ladapter_forward.1} parent=43 // pred_region
        %p1471 = scmp.lt.s32.totalorder %s22, 0
        %s1472 = ssub.s32 0, %s22
        %s1473 = scalar_select %p1471, %s1472, %s22
        %s1474 = sand.u32 %s1473, 1
        %s1475 = ssub.s32 0, %s1474
        %s1476 = scalar_select %p1471, %s1475, %s1474
        %p1477 = scmp.ne.s32.totalorder %s1476, 0
        %p1478 = scmp.lt.s32.totalorder %s1476, 0
        %p1479 = pnand %p1478, %p1477
        %p1480 = pneg %p1479
        %s1481 = sadd.s32 %s1476, 2
        %s1482 = scalar_select %p1480, %s1481, %s1476
        %p1483 = scmp.eq.s32.totalorder %s22, 0
        // Predicated region
        $region91: #{ladapter_forward.1} parent=89 // pred_check
          %p1484 = pneg %p1483
        $region92: #{ladapter_forward.1} parent=89 // pred_check_branch
          %1486 = sbr.rel (%p1484) target = $region94
        $region93: #{ladapter_forward.1} parent=89 // pred_region
          %p1488 = scmp.lt.u32.totalorder 80, 8
          %p1489 = pneg %p1488
          // Predicated region
          $region95: #{ladapter_forward.1} parent=93 // pred_check
            _
          $region96: #{ladapter_forward.1} parent=93 // pred_check_branch
            %1491 = sbr.rel (%p1488) target = $region98
          $region97: #{ladapter_forward.1} parent=93 // pred_region
            %s1520 = sand.u32 80, 7
            %p1521 = scmp.eq.s32.totalorder %s1520, 0
            // Predicated region
            $region110: #{ladapter_forward.1} parent=97 // pred_check
              %p1522 = pneg %p1521
            $region111: #{ladapter_forward.1} parent=97 // pred_check_branch
              %1524 = sbr.rel (%p1522) target = $region113
            $region112: #{ladapter_forward.1} parent=97 // pred_region
              loop: start=0, step=1, limit=1
              $region114: #{ladapter_forward.1} parent=112 // loop_pre_header
                _
              $region115: #{ladapter_forward.1} parent=112 // loop_header
                %s1526 = sphi 0, %s1530
                %p1527 = scmp.ge.s32.totalorder %s1526, 1
                %s1531 = sphi %s1, %s1
                %s1532 = sphi [#allocation4], [#allocation4]
              $region116: #{ladapter_forward.1} parent=112 // loop_header_branch
                %1529 = sbr.rel (%p1527) target = $region120
              $region117: #{ladapter_forward.1} parent=112 // loop_body
                %v1533 = vld [vmem:[%s1531] sm:$0xff]
                %1534 = vst [vmem:[%s1532] sm:$0xff] %v1533
                %v1535 = vld [vmem:[%s1531 + $0x8] sm:$0xff]
                %1536 = vst [vmem:[%s1532 + $0x8] sm:$0xff] %v1535
                %v1537 = vld [vmem:[%s1531 + $0x10] sm:$0xff]
                %1538 = vst [vmem:[%s1532 + $0x10] sm:$0xff] %v1537
                %v1539 = vld [vmem:[%s1531 + $0x18] sm:$0xff]
                %1540 = vst [vmem:[%s1532 + $0x18] sm:$0xff] %v1539
                %v1541 = vld [vmem:[%s1531 + $0x20] sm:$0xff]
                %1542 = vst [vmem:[%s1532 + $0x20] sm:$0xff] %v1541
                %v1543 = vld [vmem:[%s1531 + $0x28] sm:$0xff]
                %1544 = vst [vmem:[%s1532 + $0x28] sm:$0xff] %v1543
                %v1545 = vld [vmem:[%s1531 + $0x30] sm:$0xff]
                %1546 = vst [vmem:[%s1532 + $0x30] sm:$0xff] %v1545
                %v1547 = vld [vmem:[%s1531 + $0x38] sm:$0xff]
                %1548 = vst [vmem:[%s1532 + $0x38] sm:$0xff] %v1547
                %v1549 = vld [vmem:[%s1531 + $0x40] sm:$0xff]
                %1550 = vst [vmem:[%s1532 + $0x40] sm:$0xff] %v1549
                %v1551 = vld [vmem:[%s1531 + $0x48] sm:$0xff]
                %1552 = vst [vmem:[%s1532 + $0x48] sm:$0xff] %v1551
                %v1553 = vld [vmem:[%s1531 + $0x50] sm:$0xff]
                %1554 = vst [vmem:[%s1532 + $0x80] sm:$0xff] %v1553
                %v1555 = vld [vmem:[%s1531 + $0x58] sm:$0xff]
                %1556 = vst [vmem:[%s1532 + $0x88] sm:$0xff] %v1555
                %v1557 = vld [vmem:[%s1531 + $0x60] sm:$0xff]
                %1558 = vst [vmem:[%s1532 + $0x90] sm:$0xff] %v1557
                %v1559 = vld [vmem:[%s1531 + $0x68] sm:$0xff]
                %1560 = vst [vmem:[%s1532 + $0x98] sm:$0xff] %v1559
                %v1561 = vld [vmem:[%s1531 + $0x70] sm:$0xff]
                %1562 = vst [vmem:[%s1532 + $0xa0] sm:$0xff] %v1561
                %v1563 = vld [vmem:[%s1531 + $0x78] sm:$0xff]
                %1564 = vst [vmem:[%s1532 + $0xa8] sm:$0xff] %v1563
                %v1565 = vld [vmem:[%s1531 + $0x80] sm:$0xff]
                %1566 = vst [vmem:[%s1532 + $0xb0] sm:$0xff] %v1565
                %v1567 = vld [vmem:[%s1531 + $0x88] sm:$0xff]
                %1568 = vst [vmem:[%s1532 + $0xb8] sm:$0xff] %v1567
                %v1569 = vld [vmem:[%s1531 + $0x90] sm:$0xff]
                %1570 = vst [vmem:[%s1532 + $0xc0] sm:$0xff] %v1569
                %v1571 = vld [vmem:[%s1531 + $0x98] sm:$0xff]
                %1572 = vst [vmem:[%s1532 + $0xc8] sm:$0xff] %v1571
                %v1573 = vld [vmem:[%s1531 + $0xa0] sm:$0xff]
                %1574 = vst [vmem:[%s1532 + $0x100] sm:$0xff] %v1573
                %v1575 = vld [vmem:[%s1531 + $0xa8] sm:$0xff]
                %1576 = vst [vmem:[%s1532 + $0x108] sm:$0xff] %v1575
                %v1577 = vld [vmem:[%s1531 + $0xb0] sm:$0xff]
                %1578 = vst [vmem:[%s1532 + $0x110] sm:$0xff] %v1577
                %v1579 = vld [vmem:[%s1531 + $0xb8] sm:$0xff]
                %1580 = vst [vmem:[%s1532 + $0x118] sm:$0xff] %v1579
                %v1581 = vld [vmem:[%s1531 + $0xc0] sm:$0xff]
                %1582 = vst [vmem:[%s1532 + $0x120] sm:$0xff] %v1581
                %v1583 = vld [vmem:[%s1531 + $0xc8] sm:$0xff]
                %1584 = vst [vmem:[%s1532 + $0x128] sm:$0xff] %v1583
                %v1585 = vld [vmem:[%s1531 + $0xd0] sm:$0xff]
                %1586 = vst [vmem:[%s1532 + $0x130] sm:$0xff] %v1585
                %v1587 = vld [vmem:[%s1531 + $0xd8] sm:$0xff]
                %1588 = vst [vmem:[%s1532 + $0x138] sm:$0xff] %v1587
                %v1589 = vld [vmem:[%s1531 + $0xe0] sm:$0xff]
                %1590 = vst [vmem:[%s1532 + $0x140] sm:$0xff] %v1589
                %v1591 = vld [vmem:[%s1531 + $0xe8] sm:$0xff]
                %1592 = vst [vmem:[%s1532 + $0x148] sm:$0xff] %v1591
                %v1593 = vld [vmem:[%s1531 + $0xf0] sm:$0xff]
                %1594 = vst [vmem:[%s1532 + $0x180] sm:$0xff] %v1593
                %v1595 = vld [vmem:[%s1531 + $0xf8] sm:$0xff]
                %1596 = vst [vmem:[%s1532 + $0x188] sm:$0xff] %v1595
                %v1597 = vld [vmem:[%s1531 + $0x100] sm:$0xff]
                %1598 = vst [vmem:[%s1532 + $0x190] sm:$0xff] %v1597
                %v1599 = vld [vmem:[%s1531 + $0x108] sm:$0xff]
                %1600 = vst [vmem:[%s1532 + $0x198] sm:$0xff] %v1599
                %v1601 = vld [vmem:[%s1531 + $0x110] sm:$0xff]
                %1602 = vst [vmem:[%s1532 + $0x1a0] sm:$0xff] %v1601
                %v1603 = vld [vmem:[%s1531 + $0x118] sm:$0xff]
                %1604 = vst [vmem:[%s1532 + $0x1a8] sm:$0xff] %v1603
                %v1605 = vld [vmem:[%s1531 + $0x120] sm:$0xff]
                %1606 = vst [vmem:[%s1532 + $0x1b0] sm:$0xff] %v1605
                %v1607 = vld [vmem:[%s1531 + $0x128] sm:$0xff]
                %1608 = vst [vmem:[%s1532 + $0x1b8] sm:$0xff] %v1607
                %v1609 = vld [vmem:[%s1531 + $0x130] sm:$0xff]
                %1610 = vst [vmem:[%s1532 + $0x1c0] sm:$0xff] %v1609
                %v1611 = vld [vmem:[%s1531 + $0x138] sm:$0xff]
                %1612 = vst [vmem:[%s1532 + $0x1c8] sm:$0xff] %v1611
                %v1613 = vld [vmem:[%s1531 + $0x140] sm:$0xff]
                %1614 = vst [vmem:[%s1532 + $0x200] sm:$0xff] %v1613
                %v1615 = vld [vmem:[%s1531 + $0x148] sm:$0xff]
                %1616 = vst [vmem:[%s1532 + $0x208] sm:$0xff] %v1615
                %v1617 = vld [vmem:[%s1531 + $0x150] sm:$0xff]
                %1618 = vst [vmem:[%s1532 + $0x210] sm:$0xff] %v1617
                %v1619 = vld [vmem:[%s1531 + $0x158] sm:$0xff]
                %1620 = vst [vmem:[%s1532 + $0x218] sm:$0xff] %v1619
                %v1621 = vld [vmem:[%s1531 + $0x160] sm:$0xff]
                %1622 = vst [vmem:[%s1532 + $0x220] sm:$0xff] %v1621
                %v1623 = vld [vmem:[%s1531 + $0x168] sm:$0xff]
                %1624 = vst [vmem:[%s1532 + $0x228] sm:$0xff] %v1623
                %v1625 = vld [vmem:[%s1531 + $0x170] sm:$0xff]
                %1626 = vst [vmem:[%s1532 + $0x230] sm:$0xff] %v1625
                %v1627 = vld [vmem:[%s1531 + $0x178] sm:$0xff]
                %1628 = vst [vmem:[%s1532 + $0x238] sm:$0xff] %v1627
                %v1629 = vld [vmem:[%s1531 + $0x180] sm:$0xff]
                %1630 = vst [vmem:[%s1532 + $0x240] sm:$0xff] %v1629
                %v1631 = vld [vmem:[%s1531 + $0x188] sm:$0xff]
                %1632 = vst [vmem:[%s1532 + $0x248] sm:$0xff] %v1631
                %v1633 = vld [vmem:[%s1531 + $0x190] sm:$0xff]
                %1634 = vst [vmem:[%s1532 + $0x280] sm:$0xff] %v1633
                %v1635 = vld [vmem:[%s1531 + $0x198] sm:$0xff]
                %1636 = vst [vmem:[%s1532 + $0x288] sm:$0xff] %v1635
                %v1637 = vld [vmem:[%s1531 + $0x1a0] sm:$0xff]
                %1638 = vst [vmem:[%s1532 + $0x290] sm:$0xff] %v1637
                %v1639 = vld [vmem:[%s1531 + $0x1a8] sm:$0xff]
                %1640 = vst [vmem:[%s1532 + $0x298] sm:$0xff] %v1639
                %v1641 = vld [vmem:[%s1531 + $0x1b0] sm:$0xff]
                %1642 = vst [vmem:[%s1532 + $0x2a0] sm:$0xff] %v1641
                %v1643 = vld [vmem:[%s1531 + $0x1b8] sm:$0xff]
                %1644 = vst [vmem:[%s1532 + $0x2a8] sm:$0xff] %v1643
                %v1645 = vld [vmem:[%s1531 + $0x1c0] sm:$0xff]
                %1646 = vst [vmem:[%s1532 + $0x2b0] sm:$0xff] %v1645
                %v1647 = vld [vmem:[%s1531 + $0x1c8] sm:$0xff]
                %1648 = vst [vmem:[%s1532 + $0x2b8] sm:$0xff] %v1647
                %v1649 = vld [vmem:[%s1531 + $0x1d0] sm:$0xff]
                %1650 = vst [vmem:[%s1532 + $0x2c0] sm:$0xff] %v1649
                %v1651 = vld [vmem:[%s1531 + $0x1d8] sm:$0xff]
                %1652 = vst [vmem:[%s1532 + $0x2c8] sm:$0xff] %v1651
                %v1653 = vld [vmem:[%s1531 + $0x1e0] sm:$0xff]
                %1654 = vst [vmem:[%s1532 + $0x300] sm:$0xff] %v1653
                %v1655 = vld [vmem:[%s1531 + $0x1e8] sm:$0xff]
                %1656 = vst [vmem:[%s1532 + $0x308] sm:$0xff] %v1655
                %v1657 = vld [vmem:[%s1531 + $0x1f0] sm:$0xff]
                %1658 = vst [vmem:[%s1532 + $0x310] sm:$0xff] %v1657
                %v1659 = vld [vmem:[%s1531 + $0x1f8] sm:$0xff]
                %1660 = vst [vmem:[%s1532 + $0x318] sm:$0xff] %v1659
                %v1661 = vld [vmem:[%s1531 + $0x200] sm:$0xff]
                %1662 = vst [vmem:[%s1532 + $0x320] sm:$0xff] %v1661
                %v1663 = vld [vmem:[%s1531 + $0x208] sm:$0xff]
                %1664 = vst [vmem:[%s1532 + $0x328] sm:$0xff] %v1663
                %v1665 = vld [vmem:[%s1531 + $0x210] sm:$0xff]
                %1666 = vst [vmem:[%s1532 + $0x330] sm:$0xff] %v1665
                %v1667 = vld [vmem:[%s1531 + $0x218] sm:$0xff]
                %1668 = vst [vmem:[%s1532 + $0x338] sm:$0xff] %v1667
                %v1669 = vld [vmem:[%s1531 + $0x220] sm:$0xff]
                %1670 = vst [vmem:[%s1532 + $0x340] sm:$0xff] %v1669
                %v1671 = vld [vmem:[%s1531 + $0x228] sm:$0xff]
                %1672 = vst [vmem:[%s1532 + $0x348] sm:$0xff] %v1671
                %v1673 = vld [vmem:[%s1531 + $0x230] sm:$0xff]
                %1674 = vst [vmem:[%s1532 + $0x380] sm:$0xff] %v1673
                %v1675 = vld [vmem:[%s1531 + $0x238] sm:$0xff]
                %1676 = vst [vmem:[%s1532 + $0x388] sm:$0xff] %v1675
                %v1677 = vld [vmem:[%s1531 + $0x240] sm:$0xff]
                %1678 = vst [vmem:[%s1532 + $0x390] sm:$0xff] %v1677
                %v1679 = vld [vmem:[%s1531 + $0x248] sm:$0xff]
                %1680 = vst [vmem:[%s1532 + $0x398] sm:$0xff] %v1679
                %v1681 = vld [vmem:[%s1531 + $0x250] sm:$0xff]
                %1682 = vst [vmem:[%s1532 + $0x3a0] sm:$0xff] %v1681
                %v1683 = vld [vmem:[%s1531 + $0x258] sm:$0xff]
                %1684 = vst [vmem:[%s1532 + $0x3a8] sm:$0xff] %v1683
                %v1685 = vld [vmem:[%s1531 + $0x260] sm:$0xff]
                %1686 = vst [vmem:[%s1532 + $0x3b0] sm:$0xff] %v1685
                %v1687 = vld [vmem:[%s1531 + $0x268] sm:$0xff]
                %1688 = vst [vmem:[%s1532 + $0x3b8] sm:$0xff] %v1687
                %v1689 = vld [vmem:[%s1531 + $0x270] sm:$0xff]
                %1690 = vst [vmem:[%s1532 + $0x3c0] sm:$0xff] %v1689
                %v1691 = vld [vmem:[%s1531 + $0x278] sm:$0xff]
                %1692 = vst [vmem:[%s1532 + $0x3c8] sm:$0xff] %v1691
              $region118: #{ladapter_forward.1} parent=112 // loop_footer
                %s1530 = sadd.s32 1, %s1526
              $region119: #{ladapter_forward.1} parent=112 // loop_footer_branch
                %1525 = sbr.rel target = $region115
              $region120: #{ladapter_forward.1} parent=112 // loop_exit
                _
            $region113: #{ladapter_forward.1} parent=97 // pred_fallthru
              _
            %p1693 = pneg %p1521
            // Predicated region
            $region121: #{ladapter_forward.1} parent=97 // pred_check
              _
            $region122: #{ladapter_forward.1} parent=97 // pred_check_branch
              %1695 = sbr.rel (%p1521) target = $region124
            $region123: #{ladapter_forward.1} parent=97 // pred_region
              %s1696 = sand.u32 80, 7
            $region124: #{ladapter_forward.1} parent=97 // pred_fallthru
              _
          $region98: #{ladapter_forward.1} parent=93 // pred_fallthru
            _
          // Predicated region
          $region99: #{ladapter_forward.1} parent=93 // pred_check
            %p1492 = pneg %p1488
          $region100: #{ladapter_forward.1} parent=93 // pred_check_branch
            %1494 = sbr.rel (%p1492) target = $region102
          $region101: #{ladapter_forward.1} parent=93 // pred_region
            %s1495 = sshllo.u32 0, 80
            loop: start=0, step=1, limit=1
            $region103: #{ladapter_forward.1} parent=101 // loop_pre_header
              _
            $region104: #{ladapter_forward.1} parent=101 // loop_header
              %s1497 = sphi 0, %s1501
              %p1498 = scmp.ge.s32.totalorder %s1497, 1
              %s1502 = sphi %s1, %s1
              %s1503 = sphi [#allocation4], [#allocation4]
            $region105: #{ladapter_forward.1} parent=101 // loop_header_branch
              %1500 = sbr.rel (%p1498) target = $region109
            $region106: #{ladapter_forward.1} parent=101 // loop_body
              %v1504 = vld [vmem:[%s1502] sm:%s1495]
              %1505 = vst [vmem:[%s1503] sm:%s1495] %v1504
              %v1506 = vld [vmem:[%s1502 + $0x50] sm:%s1495]
              %1507 = vst [vmem:[%s1503 + $0x80] sm:%s1495] %v1506
              %v1508 = vld [vmem:[%s1502 + $0xa0] sm:%s1495]
              %1509 = vst [vmem:[%s1503 + $0x100] sm:%s1495] %v1508
              %v1510 = vld [vmem:[%s1502 + $0xf0] sm:%s1495]
              %1511 = vst [vmem:[%s1503 + $0x180] sm:%s1495] %v1510
              %v1512 = vld [vmem:[%s1502 + $0x140] sm:%s1495]
              %1513 = vst [vmem:[%s1503 + $0x200] sm:%s1495] %v1512
              %v1514 = vld [vmem:[%s1502 + $0x190] sm:%s1495]
              %1515 = vst [vmem:[%s1503 + $0x280] sm:%s1495] %v1514
              %v1516 = vld [vmem:[%s1502 + $0x1e0] sm:%s1495]
              %1517 = vst [vmem:[%s1503 + $0x300] sm:%s1495] %v1516
              %v1518 = vld [vmem:[%s1502 + $0x230] sm:%s1495]
              %1519 = vst [vmem:[%s1503 + $0x380] sm:%s1495] %v1518
            $region107: #{ladapter_forward.1} parent=101 // loop_footer
              %s1501 = sadd.s32 1, %s1497
            $region108: #{ladapter_forward.1} parent=101 // loop_footer_branch
              %1496 = sbr.rel target = $region104
            $region109: #{ladapter_forward.1} parent=101 // loop_exit
              _
          $region102: #{ladapter_forward.1} parent=93 // pred_fallthru
            _
          // Predicated region
          $region125: #{ladapter_forward.1} parent=93 // pred_check
            _
          $region126: #{ladapter_forward.1} parent=93 // pred_check_branch
            %1699 = sbr.rel (0) target = $region128
          $region127: #{ladapter_forward.1} parent=93 // pred_region
            %1700 = vsyncadd [#allocation5], 10240
          $region128: #{ladapter_forward.1} parent=93 // pred_fallthru
            _
        $region94: #{ladapter_forward.1} parent=89 // pred_fallthru
          _
        %v1701 = vld [vmem:[%s178] sm:$0xf]
        %v1702 = vld [vmem:[%s178 + $0x4] sm:$0xf]
        %v1703 = vld [vmem:[%s178 + $0x8] sm:$0xf]
        %v1704 = vld [vmem:[%s178 + $0xc] sm:$0xf]
        %v1705 = vld [vmem:[%s178 + $0x10] sm:$0xf]
        %v1706 = vld [vmem:[%s178 + $0x14] sm:$0xf]
        %v1707 = vld [vmem:[%s178 + $0x18] sm:$0xf]
        %v1708 = vld [vmem:[%s178 + $0x1c] sm:$0xf]
        %v1709 = vld [vmem:[%s178 + $0x20] sm:$0xf]
        %v1710 = vld [vmem:[%s178 + $0x24] sm:$0xf]
        %v1711 = vld [vmem:[%s178 + $0x28] sm:$0xf]
        %v1712 = vld [vmem:[%s178 + $0x2c] sm:$0xf]
        %v1713 = vld [vmem:[%s178 + $0x30] sm:$0xf]
        %v1714 = vld [vmem:[%s178 + $0x34] sm:$0xf]
        %v1715 = vld [vmem:[%s178 + $0x38] sm:$0xf]
        %v1716 = vld [vmem:[%s178 + $0x3c] sm:$0xf]
        %v1717 = vld [vmem:[#allocation3] sm:$0xff]
        %v1718 = vld [vmem:[#allocation3 + $0x8] sm:$0xff]
        %v1719 = vld [vmem:[#allocation3 + $0x10] sm:$0xff]
        %v1720 = vld [vmem:[#allocation3 + $0x18] sm:$0xff]
        %v1721 = vld [vmem:[#allocation3 + $0x20] sm:$0xff]
        %v1722 = vld [vmem:[#allocation3 + $0x28] sm:$0xff]
        %v1723 = vld [vmem:[#allocation3 + $0x30] sm:$0xff]
        %v1724 = vld [vmem:[#allocation3 + $0x38] sm:$0xff]
        %v1725 = vld [vmem:[%s6] sm:$0x1]
        %v1727 = vlaneseq
        %v1728 = vshrl.u32 %v1727, 7
        %v1729 = vsub.s32 0, %v1728
        %v1730 = vrot.slane %v1725, %v1729
        %v1748 = vunpack.c.l.b16 %v1701
        %v1749 = vunpack.c.l.b16 %v1702
        %v1750 = vunpack.c.l.b16 %v1703
        %v1751 = vunpack.c.l.b16 %v1704
        %v1752 = vunpack.c.l.b16 %v1705
        %v1753 = vunpack.c.l.b16 %v1706
        %v1754 = vunpack.c.l.b16 %v1707
        %v1755 = vunpack.c.l.b16 %v1708
        %v1756 = vunpack.c.l.b16 %v1709
        %v1757 = vunpack.c.l.b16 %v1710
        %v1758 = vunpack.c.l.b16 %v1711
        %v1759 = vunpack.c.l.b16 %v1712
        %v1760 = vunpack.c.l.b16 %v1713
        %v1761 = vunpack.c.l.b16 %v1714
        %v1762 = vunpack.c.l.b16 %v1715
        %v1763 = vunpack.c.l.b16 %v1716
        %v1764 = vpack.c.b16 %v1749, %v1748
        %v1765 = vpack.c.b16 %v1751, %v1750
        %v1766 = vpack.c.b16 %v1753, %v1752
        %v1767 = vpack.c.b16 %v1755, %v1754
        %v1768 = vpack.c.b16 %v1757, %v1756
        %v1769 = vpack.c.b16 %v1759, %v1758
        %v1770 = vpack.c.b16 %v1761, %v1760
        %v1771 = vpack.c.b16 %v1763, %v1762
        %1780 = vmatprep.subr.bf16.mxu0 0
        %1781 = vmatpush1.bf16.msra.mxu0 %v1717
        %1782 = vmatprep.subr.bf16.mxu0 0
        %1783 = vmatpush1.bf16.msra.mxu0 %v1718
        %1784 = vmatprep.subr.bf16.mxu0 0
        %1785 = vmatpush1.bf16.msra.mxu0 %v1719
        %1786 = vmatprep.subr.bf16.mxu0 0
        %1787 = vmatpush1.bf16.msra.mxu0 %v1720
        %1788 = vmatprep.subr.bf16.mxu0 0
        %1789 = vmatpush1.bf16.msra.mxu0 %v1721
        %1790 = vmatprep.subr.bf16.mxu0 0
        %1791 = vmatpush1.bf16.msra.mxu0 %v1722
        %1792 = vmatprep.subr.bf16.mxu0 0
        %1793 = vmatpush1.bf16.msra.mxu0 %v1723
        %1794 = vmatprep.subr.bf16.mxu0 0
        %1795 = vmatpush1.bf16.msra.mxu0 %v1724
        %1796 = vmatprep.subr.bf16.mxu0 0
        %1797 = vmatpush1.bf16.msra.mxu0 0
        %1798 = vmatprep.subr.bf16.mxu0 0
        %1799 = vmatpush1.bf16.msra.mxu0 0
        %1800 = vmatprep.subr.bf16.mxu0 0
        %1801 = vmatpush1.bf16.msra.mxu0 0
        %1802 = vmatprep.subr.bf16.mxu0 0
        %1803 = vmatpush1.bf16.msra.mxu0 0
        %1804 = vmatprep.subr.bf16.mxu0 0
        %1805 = vmatpush1.bf16.msra.mxu0 0
        %1806 = vmatprep.subr.bf16.mxu0 0
        %1807 = vmatpush1.bf16.msra.mxu0 0
        %1808 = vmatprep.subr.bf16.mxu0 0
        %1809 = vmatpush1.bf16.msra.mxu0 0
        %1810 = vmatprep.subr.bf16.mxu0 0
        %1811 = vmatpush1.bf16.msra.mxu0 0
        %1812 = vmatprep.mubr.bf16.mxu0 0
        %1813 = vmatmul.mubr.bf16.gmra.mrb[0].mxu0 %v1764
        %v1814 = vpop.f32.mrb[0].mxu0
        %v1815 = vadd.f32 %v1730, %v1814
        %v1816 = vpop.f32.mrb[0].mxu0
        %v1817 = vpop.f32.mrb[0].mxu0
        %v1818 = vadd.f32 %v1730, %v1817
        %v1819 = vpop.f32.mrb[0].mxu0
        %1820 = vmatprep.mubr.bf16.mxu0 0
        %1821 = vmatmul.mubr.bf16.gmra.mrb[0].mxu0 %v1765
        %v1822 = vpop.f32.mrb[0].mxu0
        %v1823 = vadd.f32 %v1730, %v1822
        %v1824 = vpop.f32.mrb[0].mxu0
        %v1825 = vpop.f32.mrb[0].mxu0
        %v1826 = vadd.f32 %v1730, %v1825
        %v1827 = vpop.f32.mrb[0].mxu0
        %1828 = vmatprep.mubr.bf16.mxu0 0
        %1829 = vmatmul.mubr.bf16.gmra.mrb[0].mxu0 %v1766
        %v1830 = vpop.f32.mrb[0].mxu0
        %v1831 = vadd.f32 %v1730, %v1830
        %v1832 = vpop.f32.mrb[0].mxu0
        %v1833 = vpop.f32.mrb[0].mxu0
        %v1834 = vadd.f32 %v1730, %v1833
        %v1835 = vpop.f32.mrb[0].mxu0
        %1836 = vmatprep.mubr.bf16.mxu0 0
        %1837 = vmatmul.mubr.bf16.gmra.mrb[0].mxu0 %v1767
        %v1838 = vpop.f32.mrb[0].mxu0
        %v1839 = vadd.f32 %v1730, %v1838
        %v1840 = vpop.f32.mrb[0].mxu0
        %v1841 = vpop.f32.mrb[0].mxu0
        %v1842 = vadd.f32 %v1730, %v1841
        %v1843 = vpop.f32.mrb[0].mxu0
        %1844 = vmatprep.mubr.bf16.mxu0 0
        %1845 = vmatmul.mubr.bf16.gmra.mrb[0].mxu0 %v1768
        %v1846 = vpop.f32.mrb[0].mxu0
        %v1847 = vadd.f32 %v1730, %v1846
        %v1848 = vpop.f32.mrb[0].mxu0
        %v1849 = vpop.f32.mrb[0].mxu0
        %v1850 = vadd.f32 %v1730, %v1849
        %v1851 = vpop.f32.mrb[0].mxu0
        %1852 = vmatprep.mubr.bf16.mxu0 0
        %1853 = vmatmul.mubr.bf16.gmra.mrb[0].mxu0 %v1769
        %v1854 = vpop.f32.mrb[0].mxu0
        %v1855 = vadd.f32 %v1730, %v1854
        %v1856 = vpop.f32.mrb[0].mxu0
        %v1857 = vpop.f32.mrb[0].mxu0
        %v1858 = vadd.f32 %v1730, %v1857
        %v1859 = vpop.f32.mrb[0].mxu0
        %1860 = vmatprep.mubr.bf16.mxu0 0
        %1861 = vmatmul.mubr.bf16.gmra.mrb[0].mxu0 %v1770
        %v1862 = vpop.f32.mrb[0].mxu0
        %v1863 = vadd.f32 %v1730, %v1862
        %v1864 = vpop.f32.mrb[0].mxu0
        %v1865 = vpop.f32.mrb[0].mxu0
        %v1866 = vadd.f32 %v1730, %v1865
        %v1867 = vpop.f32.mrb[0].mxu0
        %1868 = vmatprep.mubr.bf16.mxu0 0
        %1869 = vmatmul.mubr.bf16.gmra.mrb[0].mxu0 %v1771
        %v1870 = vpop.f32.mrb[0].mxu0
        %v1871 = vadd.f32 %v1730, %v1870
        %v1872 = vpop.f32.mrb[0].mxu0
        %v1873 = vpop.f32.mrb[0].mxu0
        %v1874 = vadd.f32 %v1730, %v1873
        %v1875 = vpop.f32.mrb[0].mxu0
        %1876 = vdwg.mxu0
        // Predicated region
        $region129: #{ladapter_forward.1} parent=89 // pred_check
          %p1877 = pneg %p1483
        $region130: #{ladapter_forward.1} parent=89 // pred_check_branch
          %1879 = sbr.rel (%p1877) target = $region132
        $region131: #{ladapter_forward.1} parent=89 // pred_region
          %s1880 = smul.u32 8, 80
          %s1881 = smul.u32 %s1880, 1
          %s1882 = sshll.u32 %s1881, 4
          %1883 = dma.done [#allocation5], %s1882
        $region132: #{ladapter_forward.1} parent=89 // pred_fallthru
          _
        %s1884 = scalar_lea.vmem %s0, %s181
        %v1885 = vld [vmem:[%s1884] sm:$0xff]
        %v1886 = vld [vmem:[%s1884 + $0x8] sm:$0xff]
        %v1887 = vld [vmem:[%s1884 + $0x10] sm:$0xff]
        %v1888 = vld [vmem:[%s1884 + $0x18] sm:$0xff]
        %v1889 = vld [vmem:[%s1884 + $0x20] sm:$0xff]
        %v1890 = vld [vmem:[%s1884 + $0x28] sm:$0xff]
        %v1891 = vld [vmem:[%s1884 + $0x30] sm:$0xff]
        %v1892 = vld [vmem:[%s1884 + $0x38] sm:$0xff]
        %v1893 = vld [vmem:[%s1884 + $0x40] sm:$0xff]
        %v1894 = vld [vmem:[%s1884 + $0x48] sm:$0xff]
        %v1895 = vld [vmem:[%s1884 + $0x50] sm:$0xff]
        %v1896 = vld [vmem:[%s1884 + $0x58] sm:$0xff]
        %v1897 = vld [vmem:[%s1884 + $0x60] sm:$0xff]
        %v1898 = vld [vmem:[%s1884 + $0x68] sm:$0xff]
        %v1899 = vld [vmem:[%s1884 + $0x70] sm:$0xff]
        %v1900 = vld [vmem:[%s1884 + $0x78] sm:$0xff]
        %1901 = vset.pattern.permute.xlu0 0
        %1902 = vperm.xlu0 %1901, %v1885
        %v1903 = vpop.permute.xlu0 %1902
        %1904 = vset.pattern.permute.xlu0 0
        %1905 = vperm.xlu0 %1904, %v1886
        %v1906 = vpop.permute.xlu0 %1905
        %1907 = vset.pattern.permute.xlu0 0
        %1908 = vperm.xlu0 %1907, %v1887
        %v1909 = vpop.permute.xlu0 %1908
        %1910 = vset.pattern.permute.xlu0 0
        %1911 = vperm.xlu0 %1910, %v1888
        %v1912 = vpop.permute.xlu0 %1911
        %1913 = vset.pattern.permute.xlu0 0
        %1914 = vperm.xlu0 %1913, %v1889
        %v1915 = vpop.permute.xlu0 %1914
        %1916 = vset.pattern.permute.xlu0 0
        %1917 = vperm.xlu0 %1916, %v1890
        %v1918 = vpop.permute.xlu0 %1917
        %1919 = vset.pattern.permute.xlu0 0
        %1920 = vperm.xlu0 %1919, %v1891
        %v1921 = vpop.permute.xlu0 %1920
        %1922 = vset.pattern.permute.xlu0 0
        %1923 = vperm.xlu0 %1922, %v1892
        %v1924 = vpop.permute.xlu0 %1923
        %1925 = vset.pattern.permute.xlu0 0
        %1926 = vperm.xlu0 %1925, %v1893
        %v1927 = vpop.permute.xlu0 %1926
        %1928 = vset.pattern.permute.xlu0 0
        %1929 = vperm.xlu0 %1928, %v1894
        %v1930 = vpop.permute.xlu0 %1929
        %1931 = vset.pattern.permute.xlu0 0
        %1932 = vperm.xlu0 %1931, %v1895
        %v1933 = vpop.permute.xlu0 %1932
        %1934 = vset.pattern.permute.xlu0 0
        %1935 = vperm.xlu0 %1934, %v1896
        %v1936 = vpop.permute.xlu0 %1935
        %1937 = vset.pattern.permute.xlu0 0
        %1938 = vperm.xlu0 %1937, %v1897
        %v1939 = vpop.permute.xlu0 %1938
        %1940 = vset.pattern.permute.xlu0 0
        %1941 = vperm.xlu0 %1940, %v1898
        %v1942 = vpop.permute.xlu0 %1941
        %1943 = vset.pattern.permute.xlu0 0
        %1944 = vperm.xlu0 %1943, %v1899
        %v1945 = vpop.permute.xlu0 %1944
        %1946 = vset.pattern.permute.xlu0 0
        %1947 = vperm.xlu0 %1946, %v1900
        %v1948 = vpop.permute.xlu0 %1947
        %vm1949 = vcmp.eq.s32.totalorder %v1903, 0
        %vm1950 = vcmp.eq.s32.totalorder %v1906, 0
        %vm1951 = vcmp.eq.s32.totalorder %v1909, 0
        %vm1952 = vcmp.eq.s32.totalorder %v1912, 0
        %vm1953 = vcmp.eq.s32.totalorder %v1915, 0
        %vm1954 = vcmp.eq.s32.totalorder %v1918, 0
        %vm1955 = vcmp.eq.s32.totalorder %v1921, 0
        %vm1956 = vcmp.eq.s32.totalorder %v1924, 0
        %vm1957 = vcmp.eq.s32.totalorder %v1927, 0
        %vm1958 = vcmp.eq.s32.totalorder %v1930, 0
        %vm1959 = vcmp.eq.s32.totalorder %v1933, 0
        %vm1960 = vcmp.eq.s32.totalorder %v1936, 0
        %vm1961 = vcmp.eq.s32.totalorder %v1939, 0
        %vm1962 = vcmp.eq.s32.totalorder %v1942, 0
        %vm1963 = vcmp.eq.s32.totalorder %v1945, 0
        %vm1964 = vcmp.eq.s32.totalorder %v1948, 0
        %vm1965 = vcmp.eq.s32.totalorder %v1903, 1
        %vm1966 = vcmp.eq.s32.totalorder %v1906, 1
        %vm1967 = vcmp.eq.s32.totalorder %v1909, 1
        %vm1968 = vcmp.eq.s32.totalorder %v1912, 1
        %vm1969 = vcmp.eq.s32.totalorder %v1915, 1
        %vm1970 = vcmp.eq.s32.totalorder %v1918, 1
        %vm1971 = vcmp.eq.s32.totalorder %v1921, 1
        %vm1972 = vcmp.eq.s32.totalorder %v1924, 1
        %vm1973 = vcmp.eq.s32.totalorder %v1927, 1
        %vm1974 = vcmp.eq.s32.totalorder %v1930, 1
        %vm1975 = vcmp.eq.s32.totalorder %v1933, 1
        %vm1976 = vcmp.eq.s32.totalorder %v1936, 1
        %vm1977 = vcmp.eq.s32.totalorder %v1939, 1
        %vm1978 = vcmp.eq.s32.totalorder %v1942, 1
        %vm1979 = vcmp.eq.s32.totalorder %v1945, 1
        %vm1980 = vcmp.eq.s32.totalorder %v1948, 1
        %vm1981 = vcmp.eq.s32.totalorder %v1903, 2
        %vm1982 = vcmp.eq.s32.totalorder %v1906, 2
        %vm1983 = vcmp.eq.s32.totalorder %v1909, 2
        %vm1984 = vcmp.eq.s32.totalorder %v1912, 2
        %vm1985 = vcmp.eq.s32.totalorder %v1915, 2
        %vm1986 = vcmp.eq.s32.totalorder %v1918, 2
        %vm1987 = vcmp.eq.s32.totalorder %v1921, 2
        %vm1988 = vcmp.eq.s32.totalorder %v1924, 2
        %vm1989 = vcmp.eq.s32.totalorder %v1927, 2
        %vm1990 = vcmp.eq.s32.totalorder %v1930, 2
        %vm1991 = vcmp.eq.s32.totalorder %v1933, 2
        %vm1992 = vcmp.eq.s32.totalorder %v1936, 2
        %vm1993 = vcmp.eq.s32.totalorder %v1939, 2
        %vm1994 = vcmp.eq.s32.totalorder %v1942, 2
        %vm1995 = vcmp.eq.s32.totalorder %v1945, 2
        %vm1996 = vcmp.eq.s32.totalorder %v1948, 2
        %vm1997 = vcmp.eq.s32.totalorder %v1903, 3
        %vm1998 = vcmp.eq.s32.totalorder %v1906, 3
        %vm1999 = vcmp.eq.s32.totalorder %v1909, 3
        %vm2000 = vcmp.eq.s32.totalorder %v1912, 3
        %vm2001 = vcmp.eq.s32.totalorder %v1915, 3
        %vm2002 = vcmp.eq.s32.totalorder %v1918, 3
        %vm2003 = vcmp.eq.s32.totalorder %v1921, 3
        %vm2004 = vcmp.eq.s32.totalorder %v1924, 3
        %vm2005 = vcmp.eq.s32.totalorder %v1927, 3
        %vm2006 = vcmp.eq.s32.totalorder %v1930, 3
        %vm2007 = vcmp.eq.s32.totalorder %v1933, 3
        %vm2008 = vcmp.eq.s32.totalorder %v1936, 3
        %vm2009 = vcmp.eq.s32.totalorder %v1939, 3
        %vm2010 = vcmp.eq.s32.totalorder %v1942, 3
        %vm2011 = vcmp.eq.s32.totalorder %v1945, 3
        %vm2012 = vcmp.eq.s32.totalorder %v1948, 3
        %vm2013 = vcmp.eq.s32.totalorder %v1903, 4
        %vm2014 = vcmp.eq.s32.totalorder %v1906, 4
        %vm2015 = vcmp.eq.s32.totalorder %v1909, 4
        %vm2016 = vcmp.eq.s32.totalorder %v1912, 4
        %vm2017 = vcmp.eq.s32.totalorder %v1915, 4
        %vm2018 = vcmp.eq.s32.totalorder %v1918, 4
        %vm2019 = vcmp.eq.s32.totalorder %v1921, 4
        %vm2020 = vcmp.eq.s32.totalorder %v1924, 4
        %vm2021 = vcmp.eq.s32.totalorder %v1927, 4
        %vm2022 = vcmp.eq.s32.totalorder %v1930, 4
        %vm2023 = vcmp.eq.s32.totalorder %v1933, 4
        %vm2024 = vcmp.eq.s32.totalorder %v1936, 4
        %vm2025 = vcmp.eq.s32.totalorder %v1939, 4
        %vm2026 = vcmp.eq.s32.totalorder %v1942, 4
        %vm2027 = vcmp.eq.s32.totalorder %v1945, 4
        %vm2028 = vcmp.eq.s32.totalorder %v1948, 4
        %vm2029 = vcmp.eq.s32.totalorder %v1903, 5
        %vm2030 = vcmp.eq.s32.totalorder %v1906, 5
        %vm2031 = vcmp.eq.s32.totalorder %v1909, 5
        %vm2032 = vcmp.eq.s32.totalorder %v1912, 5
        %vm2033 = vcmp.eq.s32.totalorder %v1915, 5
        %vm2034 = vcmp.eq.s32.totalorder %v1918, 5
        %vm2035 = vcmp.eq.s32.totalorder %v1921, 5
        %vm2036 = vcmp.eq.s32.totalorder %v1924, 5
        %vm2037 = vcmp.eq.s32.totalorder %v1927, 5
        %vm2038 = vcmp.eq.s32.totalorder %v1930, 5
        %vm2039 = vcmp.eq.s32.totalorder %v1933, 5
        %vm2040 = vcmp.eq.s32.totalorder %v1936, 5
        %vm2041 = vcmp.eq.s32.totalorder %v1939, 5
        %vm2042 = vcmp.eq.s32.totalorder %v1942, 5
        %vm2043 = vcmp.eq.s32.totalorder %v1945, 5
        %vm2044 = vcmp.eq.s32.totalorder %v1948, 5
        %vm2045 = vcmp.eq.s32.totalorder %v1903, 6
        %vm2046 = vcmp.eq.s32.totalorder %v1906, 6
        %vm2047 = vcmp.eq.s32.totalorder %v1909, 6
        %vm2048 = vcmp.eq.s32.totalorder %v1912, 6
        %vm2049 = vcmp.eq.s32.totalorder %v1915, 6
        %vm2050 = vcmp.eq.s32.totalorder %v1918, 6
        %vm2051 = vcmp.eq.s32.totalorder %v1921, 6
        %vm2052 = vcmp.eq.s32.totalorder %v1924, 6
        %vm2053 = vcmp.eq.s32.totalorder %v1927, 6
        %vm2054 = vcmp.eq.s32.totalorder %v1930, 6
        %vm2055 = vcmp.eq.s32.totalorder %v1933, 6
        %vm2056 = vcmp.eq.s32.totalorder %v1936, 6
        %vm2057 = vcmp.eq.s32.totalorder %v1939, 6
        %vm2058 = vcmp.eq.s32.totalorder %v1942, 6
        %vm2059 = vcmp.eq.s32.totalorder %v1945, 6
        %vm2060 = vcmp.eq.s32.totalorder %v1948, 6
        %vm2061 = vcmp.eq.s32.totalorder %v1903, 7
        %vm2062 = vcmp.eq.s32.totalorder %v1906, 7
        %vm2063 = vcmp.eq.s32.totalorder %v1909, 7
        %vm2064 = vcmp.eq.s32.totalorder %v1912, 7
        %vm2065 = vcmp.eq.s32.totalorder %v1915, 7
        %vm2066 = vcmp.eq.s32.totalorder %v1918, 7
        %vm2067 = vcmp.eq.s32.totalorder %v1921, 7
        %vm2068 = vcmp.eq.s32.totalorder %v1924, 7
        %vm2069 = vcmp.eq.s32.totalorder %v1927, 7
        %vm2070 = vcmp.eq.s32.totalorder %v1930, 7
        %vm2071 = vcmp.eq.s32.totalorder %v1933, 7
        %vm2072 = vcmp.eq.s32.totalorder %v1936, 7
        %vm2073 = vcmp.eq.s32.totalorder %v1939, 7
        %vm2074 = vcmp.eq.s32.totalorder %v1942, 7
        %vm2075 = vcmp.eq.s32.totalorder %v1945, 7
        %vm2076 = vcmp.eq.s32.totalorder %v1948, 7
        %s2077 = smul.u32 %s1482, 1024
        %s2078 = scalar_lea.vmem [#allocation4], %s2077
        %v2079 = vld [vmem:[%s2078] sm:$0xff]
        %v2080 = vld [vmem:[%s2078 + $0x8] sm:$0xff]
        %v2081 = vld [vmem:[%s2078 + $0x10] sm:$0xff]
        %v2082 = vld [vmem:[%s2078 + $0x18] sm:$0xff]
        %v2083 = vld [vmem:[%s2078 + $0x20] sm:$0xff]
        %v2084 = vld [vmem:[%s2078 + $0x28] sm:$0xff]
        %v2085 = vld [vmem:[%s2078 + $0x30] sm:$0xff]
        %v2086 = vld [vmem:[%s2078 + $0x38] sm:$0xff]
        %v2087 = vld [vmem:[%s2078 + $0x40] sm:$0xff]
        %v2088 = vld [vmem:[%s2078 + $0x48] sm:$0xff]
        %v2089 = vld [vmem:[%s2078 + $0x50] sm:$0xff]
        %v2090 = vld [vmem:[%s2078 + $0x58] sm:$0xff]
        %v2091 = vld [vmem:[%s2078 + $0x60] sm:$0xff]
        %v2092 = vld [vmem:[%s2078 + $0x68] sm:$0xff]
        %v2093 = vld [vmem:[%s2078 + $0x70] sm:$0xff]
        %v2094 = vld [vmem:[%s2078 + $0x78] sm:$0xff]
        %v2095 = vld [vmem:[%s2078 + $0x80] sm:$0xff]
        %v2096 = vld [vmem:[%s2078 + $0x88] sm:$0xff]
        %v2097 = vld [vmem:[%s2078 + $0x90] sm:$0xff]
        %v2098 = vld [vmem:[%s2078 + $0x98] sm:$0xff]
        %v2099 = vld [vmem:[%s2078 + $0xa0] sm:$0xff]
        %v2100 = vld [vmem:[%s2078 + $0xa8] sm:$0xff]
        %v2101 = vld [vmem:[%s2078 + $0xb0] sm:$0xff]
        %v2102 = vld [vmem:[%s2078 + $0xb8] sm:$0xff]
        %v2103 = vld [vmem:[%s2078 + $0xc0] sm:$0xff]
        %v2104 = vld [vmem:[%s2078 + $0xc8] sm:$0xff]
        %v2105 = vld [vmem:[%s2078 + $0xd0] sm:$0xff]
        %v2106 = vld [vmem:[%s2078 + $0xd8] sm:$0xff]
        %v2107 = vld [vmem:[%s2078 + $0xe0] sm:$0xff]
        %v2108 = vld [vmem:[%s2078 + $0xe8] sm:$0xff]
        %v2109 = vld [vmem:[%s2078 + $0xf0] sm:$0xff]
        %v2110 = vld [vmem:[%s2078 + $0xf8] sm:$0xff]
        %v2111 = vld [vmem:[%s2078 + $0x100] sm:$0xff]
        %v2112 = vld [vmem:[%s2078 + $0x108] sm:$0xff]
        %v2113 = vld [vmem:[%s2078 + $0x110] sm:$0xff]
        %v2114 = vld [vmem:[%s2078 + $0x118] sm:$0xff]
        %v2115 = vld [vmem:[%s2078 + $0x120] sm:$0xff]
        %v2116 = vld [vmem:[%s2078 + $0x128] sm:$0xff]
        %v2117 = vld [vmem:[%s2078 + $0x130] sm:$0xff]
        %v2118 = vld [vmem:[%s2078 + $0x138] sm:$0xff]
        %v2119 = vld [vmem:[%s2078 + $0x140] sm:$0xff]
        %v2120 = vld [vmem:[%s2078 + $0x148] sm:$0xff]
        %v2121 = vld [vmem:[%s2078 + $0x150] sm:$0xff]
        %v2122 = vld [vmem:[%s2078 + $0x158] sm:$0xff]
        %v2123 = vld [vmem:[%s2078 + $0x160] sm:$0xff]
        %v2124 = vld [vmem:[%s2078 + $0x168] sm:$0xff]
        %v2125 = vld [vmem:[%s2078 + $0x170] sm:$0xff]
        %v2126 = vld [vmem:[%s2078 + $0x178] sm:$0xff]
        %v2127 = vld [vmem:[%s2078 + $0x180] sm:$0xff]
        %v2128 = vld [vmem:[%s2078 + $0x188] sm:$0xff]
        %v2129 = vld [vmem:[%s2078 + $0x190] sm:$0xff]
        %v2130 = vld [vmem:[%s2078 + $0x198] sm:$0xff]
        %v2131 = vld [vmem:[%s2078 + $0x1a0] sm:$0xff]
        %v2132 = vld [vmem:[%s2078 + $0x1a8] sm:$0xff]
        %v2133 = vld [vmem:[%s2078 + $0x1b0] sm:$0xff]
        %v2134 = vld [vmem:[%s2078 + $0x1b8] sm:$0xff]
        %v2135 = vld [vmem:[%s2078 + $0x1c0] sm:$0xff]
        %v2136 = vld [vmem:[%s2078 + $0x1c8] sm:$0xff]
        %v2137 = vld [vmem:[%s2078 + $0x1d0] sm:$0xff]
        %v2138 = vld [vmem:[%s2078 + $0x1d8] sm:$0xff]
        %v2139 = vld [vmem:[%s2078 + $0x1e0] sm:$0xff]
        %v2140 = vld [vmem:[%s2078 + $0x1e8] sm:$0xff]
        %v2141 = vld [vmem:[%s2078 + $0x1f0] sm:$0xff]
        %v2142 = vld [vmem:[%s2078 + $0x1f8] sm:$0xff]
        %v2143 = vld [vmem:[%s2078 + $0x200] sm:$0xff]
        %v2144 = vld [vmem:[%s2078 + $0x208] sm:$0xff]
        %v2145 = vld [vmem:[%s2078 + $0x210] sm:$0xff]
        %v2146 = vld [vmem:[%s2078 + $0x218] sm:$0xff]
        %v2147 = vld [vmem:[%s2078 + $0x220] sm:$0xff]
        %v2148 = vld [vmem:[%s2078 + $0x228] sm:$0xff]
        %v2149 = vld [vmem:[%s2078 + $0x230] sm:$0xff]
        %v2150 = vld [vmem:[%s2078 + $0x238] sm:$0xff]
        %v2151 = vld [vmem:[%s2078 + $0x240] sm:$0xff]
        %v2152 = vld [vmem:[%s2078 + $0x248] sm:$0xff]
        %v2153 = vld [vmem:[%s2078 + $0x250] sm:$0xff]
        %v2154 = vld [vmem:[%s2078 + $0x258] sm:$0xff]
        %v2155 = vld [vmem:[%s2078 + $0x260] sm:$0xff]
        %v2156 = vld [vmem:[%s2078 + $0x268] sm:$0xff]
        %v2157 = vld [vmem:[%s2078 + $0x270] sm:$0xff]
        %v2158 = vld [vmem:[%s2078 + $0x278] sm:$0xff]
        %v2159 = vld [vmem:[%s2078 + $0x280] sm:$0xff]
        %v2160 = vld [vmem:[%s2078 + $0x288] sm:$0xff]
        %v2161 = vld [vmem:[%s2078 + $0x290] sm:$0xff]
        %v2162 = vld [vmem:[%s2078 + $0x298] sm:$0xff]
        %v2163 = vld [vmem:[%s2078 + $0x2a0] sm:$0xff]
        %v2164 = vld [vmem:[%s2078 + $0x2a8] sm:$0xff]
        %v2165 = vld [vmem:[%s2078 + $0x2b0] sm:$0xff]
        %v2166 = vld [vmem:[%s2078 + $0x2b8] sm:$0xff]
        %v2167 = vld [vmem:[%s2078 + $0x2c0] sm:$0xff]
        %v2168 = vld [vmem:[%s2078 + $0x2c8] sm:$0xff]
        %v2169 = vld [vmem:[%s2078 + $0x2d0] sm:$0xff]
        %v2170 = vld [vmem:[%s2078 + $0x2d8] sm:$0xff]
        %v2171 = vld [vmem:[%s2078 + $0x2e0] sm:$0xff]
        %v2172 = vld [vmem:[%s2078 + $0x2e8] sm:$0xff]
        %v2173 = vld [vmem:[%s2078 + $0x2f0] sm:$0xff]
        %v2174 = vld [vmem:[%s2078 + $0x2f8] sm:$0xff]
        %v2175 = vld [vmem:[%s2078 + $0x300] sm:$0xff]
        %v2176 = vld [vmem:[%s2078 + $0x308] sm:$0xff]
        %v2177 = vld [vmem:[%s2078 + $0x310] sm:$0xff]
        %v2178 = vld [vmem:[%s2078 + $0x318] sm:$0xff]
        %v2179 = vld [vmem:[%s2078 + $0x320] sm:$0xff]
        %v2180 = vld [vmem:[%s2078 + $0x328] sm:$0xff]
        %v2181 = vld [vmem:[%s2078 + $0x330] sm:$0xff]
        %v2182 = vld [vmem:[%s2078 + $0x338] sm:$0xff]
        %v2183 = vld [vmem:[%s2078 + $0x340] sm:$0xff]
        %v2184 = vld [vmem:[%s2078 + $0x348] sm:$0xff]
        %v2185 = vld [vmem:[%s2078 + $0x350] sm:$0xff]
        %v2186 = vld [vmem:[%s2078 + $0x358] sm:$0xff]
        %v2187 = vld [vmem:[%s2078 + $0x360] sm:$0xff]
        %v2188 = vld [vmem:[%s2078 + $0x368] sm:$0xff]
        %v2189 = vld [vmem:[%s2078 + $0x370] sm:$0xff]
        %v2190 = vld [vmem:[%s2078 + $0x378] sm:$0xff]
        %v2191 = vld [vmem:[%s2078 + $0x380] sm:$0xff]
        %v2192 = vld [vmem:[%s2078 + $0x388] sm:$0xff]
        %v2193 = vld [vmem:[%s2078 + $0x390] sm:$0xff]
        %v2194 = vld [vmem:[%s2078 + $0x398] sm:$0xff]
        %v2195 = vld [vmem:[%s2078 + $0x3a0] sm:$0xff]
        %v2196 = vld [vmem:[%s2078 + $0x3a8] sm:$0xff]
        %v2197 = vld [vmem:[%s2078 + $0x3b0] sm:$0xff]
        %v2198 = vld [vmem:[%s2078 + $0x3b8] sm:$0xff]
        %v2199 = vld [vmem:[%s2078 + $0x3c0] sm:$0xff]
        %v2200 = vld [vmem:[%s2078 + $0x3c8] sm:$0xff]
        %v2201 = vld [vmem:[%s2078 + $0x3d0] sm:$0xff]
        %v2202 = vld [vmem:[%s2078 + $0x3d8] sm:$0xff]
        %v2203 = vld [vmem:[%s2078 + $0x3e0] sm:$0xff]
        %v2204 = vld [vmem:[%s2078 + $0x3e8] sm:$0xff]
        %v2205 = vld [vmem:[%s2078 + $0x3f0] sm:$0xff]
        %v2206 = vld [vmem:[%s2078 + $0x3f8] sm:$0xff]
        %v2207 = vsel %vm1949, %v1815, 0.0
        %v2208 = vsel %vm1950, %v1818, 0.0
        %v2209 = vsel %vm1951, %v1823, 0.0
        %v2210 = vsel %vm1952, %v1826, 0.0
        %v2211 = vsel %vm1953, %v1831, 0.0
        %v2212 = vsel %vm1954, %v1834, 0.0
        %v2213 = vsel %vm1955, %v1839, 0.0
        %v2214 = vsel %vm1956, %v1842, 0.0
        %v2215 = vsel %vm1957, %v1847, 0.0
        %v2216 = vsel %vm1958, %v1850, 0.0
        %v2217 = vsel %vm1959, %v1855, 0.0
        %v2218 = vsel %vm1960, %v1858, 0.0
        %v2219 = vsel %vm1961, %v1863, 0.0
        %v2220 = vsel %vm1962, %v1866, 0.0
        %v2221 = vsel %vm1963, %v1871, 0.0
        %v2222 = vsel %vm1964, %v1874, 0.0
        %v2223 = vsel %vm1965, %v1815, 0.0
        %v2224 = vsel %vm1966, %v1818, 0.0
        %v2225 = vsel %vm1967, %v1823, 0.0
        %v2226 = vsel %vm1968, %v1826, 0.0
        %v2227 = vsel %vm1969, %v1831, 0.0
        %v2228 = vsel %vm1970, %v1834, 0.0
        %v2229 = vsel %vm1971, %v1839, 0.0
        %v2230 = vsel %vm1972, %v1842, 0.0
        %v2231 = vsel %vm1973, %v1847, 0.0
        %v2232 = vsel %vm1974, %v1850, 0.0
        %v2233 = vsel %vm1975, %v1855, 0.0
        %v2234 = vsel %vm1976, %v1858, 0.0
        %v2235 = vsel %vm1977, %v1863, 0.0
        %v2236 = vsel %vm1978, %v1866, 0.0
        %v2237 = vsel %vm1979, %v1871, 0.0
        %v2238 = vsel %vm1980, %v1874, 0.0
        %v2239 = vsel %vm1981, %v1815, 0.0
        %v2240 = vsel %vm1982, %v1818, 0.0
        %v2241 = vsel %vm1983, %v1823, 0.0
        %v2242 = vsel %vm1984, %v1826, 0.0
        %v2243 = vsel %vm1985, %v1831, 0.0
        %v2244 = vsel %vm1986, %v1834, 0.0
        %v2245 = vsel %vm1987, %v1839, 0.0
        %v2246 = vsel %vm1988, %v1842, 0.0
        %v2247 = vsel %vm1989, %v1847, 0.0
        %v2248 = vsel %vm1990, %v1850, 0.0
        %v2249 = vsel %vm1991, %v1855, 0.0
        %v2250 = vsel %vm1992, %v1858, 0.0
        %v2251 = vsel %vm1993, %v1863, 0.0
        %v2252 = vsel %vm1994, %v1866, 0.0
        %v2253 = vsel %vm1995, %v1871, 0.0
        %v2254 = vsel %vm1996, %v1874, 0.0
        %v2255 = vsel %vm1997, %v1815, 0.0
        %v2256 = vsel %vm1998, %v1818, 0.0
        %v2257 = vsel %vm1999, %v1823, 0.0
        %v2258 = vsel %vm2000, %v1826, 0.0
        %v2259 = vsel %vm2001, %v1831, 0.0
        %v2260 = vsel %vm2002, %v1834, 0.0
        %v2261 = vsel %vm2003, %v1839, 0.0
        %v2262 = vsel %vm2004, %v1842, 0.0
        %v2263 = vsel %vm2005, %v1847, 0.0
        %v2264 = vsel %vm2006, %v1850, 0.0
        %v2265 = vsel %vm2007, %v1855, 0.0
        %v2266 = vsel %vm2008, %v1858, 0.0
        %v2267 = vsel %vm2009, %v1863, 0.0
        %v2268 = vsel %vm2010, %v1866, 0.0
        %v2269 = vsel %vm2011, %v1871, 0.0
        %v2270 = vsel %vm2012, %v1874, 0.0
        %v2271 = vsel %vm2013, %v1815, 0.0
        %v2272 = vsel %vm2014, %v1818, 0.0
        %v2273 = vsel %vm2015, %v1823, 0.0
        %v2274 = vsel %vm2016, %v1826, 0.0
        %v2275 = vsel %vm2017, %v1831, 0.0
        %v2276 = vsel %vm2018, %v1834, 0.0
        %v2277 = vsel %vm2019, %v1839, 0.0
        %v2278 = vsel %vm2020, %v1842, 0.0
        %v2279 = vsel %vm2021, %v1847, 0.0
        %v2280 = vsel %vm2022, %v1850, 0.0
        %v2281 = vsel %vm2023, %v1855, 0.0
        %v2282 = vsel %vm2024, %v1858, 0.0
        %v2283 = vsel %vm2025, %v1863, 0.0
        %v2284 = vsel %vm2026, %v1866, 0.0
        %v2285 = vsel %vm2027, %v1871, 0.0
        %v2286 = vsel %vm2028, %v1874, 0.0
        %v2287 = vsel %vm2029, %v1815, 0.0
        %v2288 = vsel %vm2030, %v1818, 0.0
        %v2289 = vsel %vm2031, %v1823, 0.0
        %v2290 = vsel %vm2032, %v1826, 0.0
        %v2291 = vsel %vm2033, %v1831, 0.0
        %v2292 = vsel %vm2034, %v1834, 0.0
        %v2293 = vsel %vm2035, %v1839, 0.0
        %v2294 = vsel %vm2036, %v1842, 0.0
        %v2295 = vsel %vm2037, %v1847, 0.0
        %v2296 = vsel %vm2038, %v1850, 0.0
        %v2297 = vsel %vm2039, %v1855, 0.0
        %v2298 = vsel %vm2040, %v1858, 0.0
        %v2299 = vsel %vm2041, %v1863, 0.0
        %v2300 = vsel %vm2042, %v1866, 0.0
        %v2301 = vsel %vm2043, %v1871, 0.0
        %v2302 = vsel %vm2044, %v1874, 0.0
        %v2303 = vsel %vm2045, %v1815, 0.0
        %v2304 = vsel %vm2046, %v1818, 0.0
        %v2305 = vsel %vm2047, %v1823, 0.0
        %v2306 = vsel %vm2048, %v1826, 0.0
        %v2307 = vsel %vm2049, %v1831, 0.0
        %v2308 = vsel %vm2050, %v1834, 0.0
        %v2309 = vsel %vm2051, %v1839, 0.0
        %v2310 = vsel %vm2052, %v1842, 0.0
        %v2311 = vsel %vm2053, %v1847, 0.0
        %v2312 = vsel %vm2054, %v1850, 0.0
        %v2313 = vsel %vm2055, %v1855, 0.0
        %v2314 = vsel %vm2056, %v1858, 0.0
        %v2315 = vsel %vm2057, %v1863, 0.0
        %v2316 = vsel %vm2058, %v1866, 0.0
        %v2317 = vsel %vm2059, %v1871, 0.0
        %v2318 = vsel %vm2060, %v1874, 0.0
        %v2319 = vsel %vm2061, %v1815, 0.0
        %v2320 = vsel %vm2062, %v1818, 0.0
        %v2321 = vsel %vm2063, %v1823, 0.0
        %v2322 = vsel %vm2064, %v1826, 0.0
        %v2323 = vsel %vm2065, %v1831, 0.0
        %v2324 = vsel %vm2066, %v1834, 0.0
        %v2325 = vsel %vm2067, %v1839, 0.0
        %v2326 = vsel %vm2068, %v1842, 0.0
        %v2327 = vsel %vm2069, %v1847, 0.0
        %v2328 = vsel %vm2070, %v1850, 0.0
        %v2329 = vsel %vm2071, %v1855, 0.0
        %v2330 = vsel %vm2072, %v1858, 0.0
        %v2331 = vsel %vm2073, %v1863, 0.0
        %v2332 = vsel %vm2074, %v1866, 0.0
        %v2333 = vsel %vm2075, %v1871, 0.0
        %v2334 = vsel %vm2076, %v1874, 0.0
        %v2335 = vadd.f32 %v2079, %v2207
        %v2336 = vadd.f32 %v2080, %v2208
        %v2337 = vadd.f32 %v2081, %v2209
        %v2338 = vadd.f32 %v2082, %v2210
        %v2339 = vadd.f32 %v2083, %v2211
        %v2340 = vadd.f32 %v2084, %v2212
        %v2341 = vadd.f32 %v2085, %v2213
        %v2342 = vadd.f32 %v2086, %v2214
        %v2343 = vadd.f32 %v2087, %v2215
        %v2344 = vadd.f32 %v2088, %v2216
        %v2345 = vadd.f32 %v2089, %v2217
        %v2346 = vadd.f32 %v2090, %v2218
        %v2347 = vadd.f32 %v2091, %v2219
        %v2348 = vadd.f32 %v2092, %v2220
        %v2349 = vadd.f32 %v2093, %v2221
        %v2350 = vadd.f32 %v2094, %v2222
        %v2351 = vadd.f32 %v2095, %v2223
        %v2352 = vadd.f32 %v2096, %v2224
        %v2353 = vadd.f32 %v2097, %v2225
        %v2354 = vadd.f32 %v2098, %v2226
        %v2355 = vadd.f32 %v2099, %v2227
        %v2356 = vadd.f32 %v2100, %v2228
        %v2357 = vadd.f32 %v2101, %v2229
        %v2358 = vadd.f32 %v2102, %v2230
        %v2359 = vadd.f32 %v2103, %v2231
        %v2360 = vadd.f32 %v2104, %v2232
        %v2361 = vadd.f32 %v2105, %v2233
        %v2362 = vadd.f32 %v2106, %v2234
        %v2363 = vadd.f32 %v2107, %v2235
        %v2364 = vadd.f32 %v2108, %v2236
        %v2365 = vadd.f32 %v2109, %v2237
        %v2366 = vadd.f32 %v2110, %v2238
        %v2367 = vadd.f32 %v2111, %v2239
        %v2368 = vadd.f32 %v2112, %v2240
        %v2369 = vadd.f32 %v2113, %v2241
        %v2370 = vadd.f32 %v2114, %v2242
        %v2371 = vadd.f32 %v2115, %v2243
        %v2372 = vadd.f32 %v2116, %v2244
        %v2373 = vadd.f32 %v2117, %v2245
        %v2374 = vadd.f32 %v2118, %v2246
        %v2375 = vadd.f32 %v2119, %v2247
        %v2376 = vadd.f32 %v2120, %v2248
        %v2377 = vadd.f32 %v2121, %v2249
        %v2378 = vadd.f32 %v2122, %v2250
        %v2379 = vadd.f32 %v2123, %v2251
        %v2380 = vadd.f32 %v2124, %v2252
        %v2381 = vadd.f32 %v2125, %v2253
        %v2382 = vadd.f32 %v2126, %v2254
        %v2383 = vadd.f32 %v2127, %v2255
        %v2384 = vadd.f32 %v2128, %v2256
        %v2385 = vadd.f32 %v2129, %v2257
        %v2386 = vadd.f32 %v2130, %v2258
        %v2387 = vadd.f32 %v2131, %v2259
        %v2388 = vadd.f32 %v2132, %v2260
        %v2389 = vadd.f32 %v2133, %v2261
        %v2390 = vadd.f32 %v2134, %v2262
        %v2391 = vadd.f32 %v2135, %v2263
        %v2392 = vadd.f32 %v2136, %v2264
        %v2393 = vadd.f32 %v2137, %v2265
        %v2394 = vadd.f32 %v2138, %v2266
        %v2395 = vadd.f32 %v2139, %v2267
        %v2396 = vadd.f32 %v2140, %v2268
        %v2397 = vadd.f32 %v2141, %v2269
        %v2398 = vadd.f32 %v2142, %v2270
        %v2399 = vadd.f32 %v2143, %v2271
        %v2400 = vadd.f32 %v2144, %v2272
        %v2401 = vadd.f32 %v2145, %v2273
        %v2402 = vadd.f32 %v2146, %v2274
        %v2403 = vadd.f32 %v2147, %v2275
        %v2404 = vadd.f32 %v2148, %v2276
        %v2405 = vadd.f32 %v2149, %v2277
        %v2406 = vadd.f32 %v2150, %v2278
        %v2407 = vadd.f32 %v2151, %v2279
        %v2408 = vadd.f32 %v2152, %v2280
        %v2409 = vadd.f32 %v2153, %v2281
        %v2410 = vadd.f32 %v2154, %v2282
        %v2411 = vadd.f32 %v2155, %v2283
        %v2412 = vadd.f32 %v2156, %v2284
        %v2413 = vadd.f32 %v2157, %v2285
        %v2414 = vadd.f32 %v2158, %v2286
        %v2415 = vadd.f32 %v2159, %v2287
        %v2416 = vadd.f32 %v2160, %v2288
        %v2417 = vadd.f32 %v2161, %v2289
        %v2418 = vadd.f32 %v2162, %v2290
        %v2419 = vadd.f32 %v2163, %v2291
        %v2420 = vadd.f32 %v2164, %v2292
        %v2421 = vadd.f32 %v2165, %v2293
        %v2422 = vadd.f32 %v2166, %v2294
        %v2423 = vadd.f32 %v2167, %v2295
        %v2424 = vadd.f32 %v2168, %v2296
        %v2425 = vadd.f32 %v2169, %v2297
        %v2426 = vadd.f32 %v2170, %v2298
        %v2427 = vadd.f32 %v2171, %v2299
        %v2428 = vadd.f32 %v2172, %v2300
        %v2429 = vadd.f32 %v2173, %v2301
        %v2430 = vadd.f32 %v2174, %v2302
        %v2431 = vadd.f32 %v2175, %v2303
        %v2432 = vadd.f32 %v2176, %v2304
        %v2433 = vadd.f32 %v2177, %v2305
        %v2434 = vadd.f32 %v2178, %v2306
        %v2435 = vadd.f32 %v2179, %v2307
        %v2436 = vadd.f32 %v2180, %v2308
        %v2437 = vadd.f32 %v2181, %v2309
        %v2438 = vadd.f32 %v2182, %v2310
        %v2439 = vadd.f32 %v2183, %v2311
        %v2440 = vadd.f32 %v2184, %v2312
        %v2441 = vadd.f32 %v2185, %v2313
        %v2442 = vadd.f32 %v2186, %v2314
        %v2443 = vadd.f32 %v2187, %v2315
        %v2444 = vadd.f32 %v2188, %v2316
        %v2445 = vadd.f32 %v2189, %v2317
        %v2446 = vadd.f32 %v2190, %v2318
        %v2447 = vadd.f32 %v2191, %v2319
        %v2448 = vadd.f32 %v2192, %v2320
        %v2449 = vadd.f32 %v2193, %v2321
        %v2450 = vadd.f32 %v2194, %v2322
        %v2451 = vadd.f32 %v2195, %v2323
        %v2452 = vadd.f32 %v2196, %v2324
        %v2453 = vadd.f32 %v2197, %v2325
        %v2454 = vadd.f32 %v2198, %v2326
        %v2455 = vadd.f32 %v2199, %v2327
        %v2456 = vadd.f32 %v2200, %v2328
        %v2457 = vadd.f32 %v2201, %v2329
        %v2458 = vadd.f32 %v2202, %v2330
        %v2459 = vadd.f32 %v2203, %v2331
        %v2460 = vadd.f32 %v2204, %v2332
        %v2461 = vadd.f32 %v2205, %v2333
        %v2462 = vadd.f32 %v2206, %v2334
        %2463 = vst [vmem:[%s2078] sm:$0xff] %v2335
        %2464 = vst [vmem:[%s2078 + $0x8] sm:$0xff] %v2336
        %2465 = vst [vmem:[%s2078 + $0x10] sm:$0xff] %v2337
        %2466 = vst [vmem:[%s2078 + $0x18] sm:$0xff] %v2338
        %2467 = vst [vmem:[%s2078 + $0x20] sm:$0xff] %v2339
        %2468 = vst [vmem:[%s2078 + $0x28] sm:$0xff] %v2340
        %2469 = vst [vmem:[%s2078 + $0x30] sm:$0xff] %v2341
        %2470 = vst [vmem:[%s2078 + $0x38] sm:$0xff] %v2342
        %2471 = vst [vmem:[%s2078 + $0x40] sm:$0xff] %v2343
        %2472 = vst [vmem:[%s2078 + $0x48] sm:$0xff] %v2344
        %2473 = vst [vmem:[%s2078 + $0x50] sm:$0xff] %v2345
        %2474 = vst [vmem:[%s2078 + $0x58] sm:$0xff] %v2346
        %2475 = vst [vmem:[%s2078 + $0x60] sm:$0xff] %v2347
        %2476 = vst [vmem:[%s2078 + $0x68] sm:$0xff] %v2348
        %2477 = vst [vmem:[%s2078 + $0x70] sm:$0xff] %v2349
        %2478 = vst [vmem:[%s2078 + $0x78] sm:$0xff] %v2350
        %2479 = vst [vmem:[%s2078 + $0x80] sm:$0xff] %v2351
        %2480 = vst [vmem:[%s2078 + $0x88] sm:$0xff] %v2352
        %2481 = vst [vmem:[%s2078 + $0x90] sm:$0xff] %v2353
        %2482 = vst [vmem:[%s2078 + $0x98] sm:$0xff] %v2354
        %2483 = vst [vmem:[%s2078 + $0xa0] sm:$0xff] %v2355
        %2484 = vst [vmem:[%s2078 + $0xa8] sm:$0xff] %v2356
        %2485 = vst [vmem:[%s2078 + $0xb0] sm:$0xff] %v2357
        %2486 = vst [vmem:[%s2078 + $0xb8] sm:$0xff] %v2358
        %2487 = vst [vmem:[%s2078 + $0xc0] sm:$0xff] %v2359
        %2488 = vst [vmem:[%s2078 + $0xc8] sm:$0xff] %v2360
        %2489 = vst [vmem:[%s2078 + $0xd0] sm:$0xff] %v2361
        %2490 = vst [vmem:[%s2078 + $0xd8] sm:$0xff] %v2362
        %2491 = vst [vmem:[%s2078 + $0xe0] sm:$0xff] %v2363
        %2492 = vst [vmem:[%s2078 + $0xe8] sm:$0xff] %v2364
        %2493 = vst [vmem:[%s2078 + $0xf0] sm:$0xff] %v2365
        %2494 = vst [vmem:[%s2078 + $0xf8] sm:$0xff] %v2366
        %2495 = vst [vmem:[%s2078 + $0x100] sm:$0xff] %v2367
        %2496 = vst [vmem:[%s2078 + $0x108] sm:$0xff] %v2368
        %2497 = vst [vmem:[%s2078 + $0x110] sm:$0xff] %v2369
        %2498 = vst [vmem:[%s2078 + $0x118] sm:$0xff] %v2370
        %2499 = vst [vmem:[%s2078 + $0x120] sm:$0xff] %v2371
        %2500 = vst [vmem:[%s2078 + $0x128] sm:$0xff] %v2372
        %2501 = vst [vmem:[%s2078 + $0x130] sm:$0xff] %v2373
        %2502 = vst [vmem:[%s2078 + $0x138] sm:$0xff] %v2374
        %2503 = vst [vmem:[%s2078 + $0x140] sm:$0xff] %v2375
        %2504 = vst [vmem:[%s2078 + $0x148] sm:$0xff] %v2376
        %2505 = vst [vmem:[%s2078 + $0x150] sm:$0xff] %v2377
        %2506 = vst [vmem:[%s2078 + $0x158] sm:$0xff] %v2378
        %2507 = vst [vmem:[%s2078 + $0x160] sm:$0xff] %v2379
        %2508 = vst [vmem:[%s2078 + $0x168] sm:$0xff] %v2380
        %2509 = vst [vmem:[%s2078 + $0x170] sm:$0xff] %v2381
        %2510 = vst [vmem:[%s2078 + $0x178] sm:$0xff] %v2382
        %2511 = vst [vmem:[%s2078 + $0x180] sm:$0xff] %v2383
        %2512 = vst [vmem:[%s2078 + $0x188] sm:$0xff] %v2384
        %2513 = vst [vmem:[%s2078 + $0x190] sm:$0xff] %v2385
        %2514 = vst [vmem:[%s2078 + $0x198] sm:$0xff] %v2386
        %2515 = vst [vmem:[%s2078 + $0x1a0] sm:$0xff] %v2387
        %2516 = vst [vmem:[%s2078 + $0x1a8] sm:$0xff] %v2388
        %2517 = vst [vmem:[%s2078 + $0x1b0] sm:$0xff] %v2389
        %2518 = vst [vmem:[%s2078 + $0x1b8] sm:$0xff] %v2390
        %2519 = vst [vmem:[%s2078 + $0x1c0] sm:$0xff] %v2391
        %2520 = vst [vmem:[%s2078 + $0x1c8] sm:$0xff] %v2392
        %2521 = vst [vmem:[%s2078 + $0x1d0] sm:$0xff] %v2393
        %2522 = vst [vmem:[%s2078 + $0x1d8] sm:$0xff] %v2394
        %2523 = vst [vmem:[%s2078 + $0x1e0] sm:$0xff] %v2395
        %2524 = vst [vmem:[%s2078 + $0x1e8] sm:$0xff] %v2396
        %2525 = vst [vmem:[%s2078 + $0x1f0] sm:$0xff] %v2397
        %2526 = vst [vmem:[%s2078 + $0x1f8] sm:$0xff] %v2398
        %2527 = vst [vmem:[%s2078 + $0x200] sm:$0xff] %v2399
        %2528 = vst [vmem:[%s2078 + $0x208] sm:$0xff] %v2400
        %2529 = vst [vmem:[%s2078 + $0x210] sm:$0xff] %v2401
        %2530 = vst [vmem:[%s2078 + $0x218] sm:$0xff] %v2402
        %2531 = vst [vmem:[%s2078 + $0x220] sm:$0xff] %v2403
        %2532 = vst [vmem:[%s2078 + $0x228] sm:$0xff] %v2404
        %2533 = vst [vmem:[%s2078 + $0x230] sm:$0xff] %v2405
        %2534 = vst [vmem:[%s2078 + $0x238] sm:$0xff] %v2406
        %2535 = vst [vmem:[%s2078 + $0x240] sm:$0xff] %v2407
        %2536 = vst [vmem:[%s2078 + $0x248] sm:$0xff] %v2408
        %2537 = vst [vmem:[%s2078 + $0x250] sm:$0xff] %v2409
        %2538 = vst [vmem:[%s2078 + $0x258] sm:$0xff] %v2410
        %2539 = vst [vmem:[%s2078 + $0x260] sm:$0xff] %v2411
        %2540 = vst [vmem:[%s2078 + $0x268] sm:$0xff] %v2412
        %2541 = vst [vmem:[%s2078 + $0x270] sm:$0xff] %v2413
        %2542 = vst [vmem:[%s2078 + $0x278] sm:$0xff] %v2414
        %2543 = vst [vmem:[%s2078 + $0x280] sm:$0xff] %v2415
        %2544 = vst [vmem:[%s2078 + $0x288] sm:$0xff] %v2416
        %2545 = vst [vmem:[%s2078 + $0x290] sm:$0xff] %v2417
        %2546 = vst [vmem:[%s2078 + $0x298] sm:$0xff] %v2418
        %2547 = vst [vmem:[%s2078 + $0x2a0] sm:$0xff] %v2419
        %2548 = vst [vmem:[%s2078 + $0x2a8] sm:$0xff] %v2420
        %2549 = vst [vmem:[%s2078 + $0x2b0] sm:$0xff] %v2421
        %2550 = vst [vmem:[%s2078 + $0x2b8] sm:$0xff] %v2422
        %2551 = vst [vmem:[%s2078 + $0x2c0] sm:$0xff] %v2423
        %2552 = vst [vmem:[%s2078 + $0x2c8] sm:$0xff] %v2424
        %2553 = vst [vmem:[%s2078 + $0x2d0] sm:$0xff] %v2425
        %2554 = vst [vmem:[%s2078 + $0x2d8] sm:$0xff] %v2426
        %2555 = vst [vmem:[%s2078 + $0x2e0] sm:$0xff] %v2427
        %2556 = vst [vmem:[%s2078 + $0x2e8] sm:$0xff] %v2428
        %2557 = vst [vmem:[%s2078 + $0x2f0] sm:$0xff] %v2429
        %2558 = vst [vmem:[%s2078 + $0x2f8] sm:$0xff] %v2430
        %2559 = vst [vmem:[%s2078 + $0x300] sm:$0xff] %v2431
        %2560 = vst [vmem:[%s2078 + $0x308] sm:$0xff] %v2432
        %2561 = vst [vmem:[%s2078 + $0x310] sm:$0xff] %v2433
        %2562 = vst [vmem:[%s2078 + $0x318] sm:$0xff] %v2434
        %2563 = vst [vmem:[%s2078 + $0x320] sm:$0xff] %v2435
        %2564 = vst [vmem:[%s2078 + $0x328] sm:$0xff] %v2436
        %2565 = vst [vmem:[%s2078 + $0x330] sm:$0xff] %v2437
        %2566 = vst [vmem:[%s2078 + $0x338] sm:$0xff] %v2438
        %2567 = vst [vmem:[%s2078 + $0x340] sm:$0xff] %v2439
        %2568 = vst [vmem:[%s2078 + $0x348] sm:$0xff] %v2440
        %2569 = vst [vmem:[%s2078 + $0x350] sm:$0xff] %v2441
        %2570 = vst [vmem:[%s2078 + $0x358] sm:$0xff] %v2442
        %2571 = vst [vmem:[%s2078 + $0x360] sm:$0xff] %v2443
        %2572 = vst [vmem:[%s2078 + $0x368] sm:$0xff] %v2444
        %2573 = vst [vmem:[%s2078 + $0x370] sm:$0xff] %v2445
        %2574 = vst [vmem:[%s2078 + $0x378] sm:$0xff] %v2446
        %2575 = vst [vmem:[%s2078 + $0x380] sm:$0xff] %v2447
        %2576 = vst [vmem:[%s2078 + $0x388] sm:$0xff] %v2448
        %2577 = vst [vmem:[%s2078 + $0x390] sm:$0xff] %v2449
        %2578 = vst [vmem:[%s2078 + $0x398] sm:$0xff] %v2450
        %2579 = vst [vmem:[%s2078 + $0x3a0] sm:$0xff] %v2451
        %2580 = vst [vmem:[%s2078 + $0x3a8] sm:$0xff] %v2452
        %2581 = vst [vmem:[%s2078 + $0x3b0] sm:$0xff] %v2453
        %2582 = vst [vmem:[%s2078 + $0x3b8] sm:$0xff] %v2454
        %2583 = vst [vmem:[%s2078 + $0x3c0] sm:$0xff] %v2455
        %2584 = vst [vmem:[%s2078 + $0x3c8] sm:$0xff] %v2456
        %2585 = vst [vmem:[%s2078 + $0x3d0] sm:$0xff] %v2457
        %2586 = vst [vmem:[%s2078 + $0x3d8] sm:$0xff] %v2458
        %2587 = vst [vmem:[%s2078 + $0x3e0] sm:$0xff] %v2459
        %2588 = vst [vmem:[%s2078 + $0x3e8] sm:$0xff] %v2460
        %2589 = vst [vmem:[%s2078 + $0x3f0] sm:$0xff] %v2461
        %2590 = vst [vmem:[%s2078 + $0x3f8] sm:$0xff] %v2462
        // Predicated region
        $region133: #{ladapter_forward.1} parent=89 // pred_check
          %p2591 = pneg %p1483
        $region134: #{ladapter_forward.1} parent=89 // pred_check_branch
          %2593 = sbr.rel (%p2591) target = $region136
        $region135: #{ladapter_forward.1} parent=89 // pred_region
          %p2595 = scmp.lt.u32.totalorder 80, 8
          %p2596 = pneg %p2595
          // Predicated region
          $region137: #{ladapter_forward.1} parent=135 // pred_check
            _
          $region138: #{ladapter_forward.1} parent=135 // pred_check_branch
            %2598 = sbr.rel (%p2595) target = $region140
          $region139: #{ladapter_forward.1} parent=135 // pred_region
            %s2627 = sand.u32 80, 7
            %p2628 = scmp.eq.s32.totalorder %s2627, 0
            // Predicated region
            $region152: #{ladapter_forward.1} parent=139 // pred_check
              %p2629 = pneg %p2628
            $region153: #{ladapter_forward.1} parent=139 // pred_check_branch
              %2631 = sbr.rel (%p2629) target = $region155
            $region154: #{ladapter_forward.1} parent=139 // pred_region
              loop: start=0, step=1, limit=1
              $region156: #{ladapter_forward.1} parent=154 // loop_pre_header
                _
              $region157: #{ladapter_forward.1} parent=154 // loop_header
                %s2633 = sphi 0, %s2637
                %p2634 = scmp.ge.s32.totalorder %s2633, 1
                %s2638 = sphi [#allocation4], [#allocation4]
                %s2639 = sphi %s7, %s7
              $region158: #{ladapter_forward.1} parent=154 // loop_header_branch
                %2636 = sbr.rel (%p2634) target = $region162
              $region159: #{ladapter_forward.1} parent=154 // loop_body
                %v2640 = vld [vmem:[%s2638] sm:$0xff]
                %2641 = vst [vmem:[%s2639] sm:$0xff] %v2640
                %v2642 = vld [vmem:[%s2638 + $0x8] sm:$0xff]
                %2643 = vst [vmem:[%s2639 + $0x8] sm:$0xff] %v2642
                %v2644 = vld [vmem:[%s2638 + $0x10] sm:$0xff]
                %2645 = vst [vmem:[%s2639 + $0x10] sm:$0xff] %v2644
                %v2646 = vld [vmem:[%s2638 + $0x18] sm:$0xff]
                %2647 = vst [vmem:[%s2639 + $0x18] sm:$0xff] %v2646
                %v2648 = vld [vmem:[%s2638 + $0x20] sm:$0xff]
                %2649 = vst [vmem:[%s2639 + $0x20] sm:$0xff] %v2648
                %v2650 = vld [vmem:[%s2638 + $0x28] sm:$0xff]
                %2651 = vst [vmem:[%s2639 + $0x28] sm:$0xff] %v2650
                %v2652 = vld [vmem:[%s2638 + $0x30] sm:$0xff]
                %2653 = vst [vmem:[%s2639 + $0x30] sm:$0xff] %v2652
                %v2654 = vld [vmem:[%s2638 + $0x38] sm:$0xff]
                %2655 = vst [vmem:[%s2639 + $0x38] sm:$0xff] %v2654
                %v2656 = vld [vmem:[%s2638 + $0x40] sm:$0xff]
                %2657 = vst [vmem:[%s2639 + $0x40] sm:$0xff] %v2656
                %v2658 = vld [vmem:[%s2638 + $0x48] sm:$0xff]
                %2659 = vst [vmem:[%s2639 + $0x48] sm:$0xff] %v2658
                %v2660 = vld [vmem:[%s2638 + $0x80] sm:$0xff]
                %2661 = vst [vmem:[%s2639 + $0x50] sm:$0xff] %v2660
                %v2662 = vld [vmem:[%s2638 + $0x88] sm:$0xff]
                %2663 = vst [vmem:[%s2639 + $0x58] sm:$0xff] %v2662
                %v2664 = vld [vmem:[%s2638 + $0x90] sm:$0xff]
                %2665 = vst [vmem:[%s2639 + $0x60] sm:$0xff] %v2664
                %v2666 = vld [vmem:[%s2638 + $0x98] sm:$0xff]
                %2667 = vst [vmem:[%s2639 + $0x68] sm:$0xff] %v2666
                %v2668 = vld [vmem:[%s2638 + $0xa0] sm:$0xff]
                %2669 = vst [vmem:[%s2639 + $0x70] sm:$0xff] %v2668
                %v2670 = vld [vmem:[%s2638 + $0xa8] sm:$0xff]
                %2671 = vst [vmem:[%s2639 + $0x78] sm:$0xff] %v2670
                %v2672 = vld [vmem:[%s2638 + $0xb0] sm:$0xff]
                %2673 = vst [vmem:[%s2639 + $0x80] sm:$0xff] %v2672
                %v2674 = vld [vmem:[%s2638 + $0xb8] sm:$0xff]
                %2675 = vst [vmem:[%s2639 + $0x88] sm:$0xff] %v2674
                %v2676 = vld [vmem:[%s2638 + $0xc0] sm:$0xff]
                %2677 = vst [vmem:[%s2639 + $0x90] sm:$0xff] %v2676
                %v2678 = vld [vmem:[%s2638 + $0xc8] sm:$0xff]
                %2679 = vst [vmem:[%s2639 + $0x98] sm:$0xff] %v2678
                %v2680 = vld [vmem:[%s2638 + $0x100] sm:$0xff]
                %2681 = vst [vmem:[%s2639 + $0xa0] sm:$0xff] %v2680
                %v2682 = vld [vmem:[%s2638 + $0x108] sm:$0xff]
                %2683 = vst [vmem:[%s2639 + $0xa8] sm:$0xff] %v2682
                %v2684 = vld [vmem:[%s2638 + $0x110] sm:$0xff]
                %2685 = vst [vmem:[%s2639 + $0xb0] sm:$0xff] %v2684
                %v2686 = vld [vmem:[%s2638 + $0x118] sm:$0xff]
                %2687 = vst [vmem:[%s2639 + $0xb8] sm:$0xff] %v2686
                %v2688 = vld [vmem:[%s2638 + $0x120] sm:$0xff]
                %2689 = vst [vmem:[%s2639 + $0xc0] sm:$0xff] %v2688
                %v2690 = vld [vmem:[%s2638 + $0x128] sm:$0xff]
                %2691 = vst [vmem:[%s2639 + $0xc8] sm:$0xff] %v2690
                %v2692 = vld [vmem:[%s2638 + $0x130] sm:$0xff]
                %2693 = vst [vmem:[%s2639 + $0xd0] sm:$0xff] %v2692
                %v2694 = vld [vmem:[%s2638 + $0x138] sm:$0xff]
                %2695 = vst [vmem:[%s2639 + $0xd8] sm:$0xff] %v2694
                %v2696 = vld [vmem:[%s2638 + $0x140] sm:$0xff]
                %2697 = vst [vmem:[%s2639 + $0xe0] sm:$0xff] %v2696
                %v2698 = vld [vmem:[%s2638 + $0x148] sm:$0xff]
                %2699 = vst [vmem:[%s2639 + $0xe8] sm:$0xff] %v2698
                %v2700 = vld [vmem:[%s2638 + $0x180] sm:$0xff]
                %2701 = vst [vmem:[%s2639 + $0xf0] sm:$0xff] %v2700
                %v2702 = vld [vmem:[%s2638 + $0x188] sm:$0xff]
                %2703 = vst [vmem:[%s2639 + $0xf8] sm:$0xff] %v2702
                %v2704 = vld [vmem:[%s2638 + $0x190] sm:$0xff]
                %2705 = vst [vmem:[%s2639 + $0x100] sm:$0xff] %v2704
                %v2706 = vld [vmem:[%s2638 + $0x198] sm:$0xff]
                %2707 = vst [vmem:[%s2639 + $0x108] sm:$0xff] %v2706
                %v2708 = vld [vmem:[%s2638 + $0x1a0] sm:$0xff]
                %2709 = vst [vmem:[%s2639 + $0x110] sm:$0xff] %v2708
                %v2710 = vld [vmem:[%s2638 + $0x1a8] sm:$0xff]
                %2711 = vst [vmem:[%s2639 + $0x118] sm:$0xff] %v2710
                %v2712 = vld [vmem:[%s2638 + $0x1b0] sm:$0xff]
                %2713 = vst [vmem:[%s2639 + $0x120] sm:$0xff] %v2712
                %v2714 = vld [vmem:[%s2638 + $0x1b8] sm:$0xff]
                %2715 = vst [vmem:[%s2639 + $0x128] sm:$0xff] %v2714
                %v2716 = vld [vmem:[%s2638 + $0x1c0] sm:$0xff]
                %2717 = vst [vmem:[%s2639 + $0x130] sm:$0xff] %v2716
                %v2718 = vld [vmem:[%s2638 + $0x1c8] sm:$0xff]
                %2719 = vst [vmem:[%s2639 + $0x138] sm:$0xff] %v2718
                %v2720 = vld [vmem:[%s2638 + $0x200] sm:$0xff]
                %2721 = vst [vmem:[%s2639 + $0x140] sm:$0xff] %v2720
                %v2722 = vld [vmem:[%s2638 + $0x208] sm:$0xff]
                %2723 = vst [vmem:[%s2639 + $0x148] sm:$0xff] %v2722
                %v2724 = vld [vmem:[%s2638 + $0x210] sm:$0xff]
                %2725 = vst [vmem:[%s2639 + $0x150] sm:$0xff] %v2724
                %v2726 = vld [vmem:[%s2638 + $0x218] sm:$0xff]
                %2727 = vst [vmem:[%s2639 + $0x158] sm:$0xff] %v2726
                %v2728 = vld [vmem:[%s2638 + $0x220] sm:$0xff]
                %2729 = vst [vmem:[%s2639 + $0x160] sm:$0xff] %v2728
                %v2730 = vld [vmem:[%s2638 + $0x228] sm:$0xff]
                %2731 = vst [vmem:[%s2639 + $0x168] sm:$0xff] %v2730
                %v2732 = vld [vmem:[%s2638 + $0x230] sm:$0xff]
                %2733 = vst [vmem:[%s2639 + $0x170] sm:$0xff] %v2732
                %v2734 = vld [vmem:[%s2638 + $0x238] sm:$0xff]
                %2735 = vst [vmem:[%s2639 + $0x178] sm:$0xff] %v2734
                %v2736 = vld [vmem:[%s2638 + $0x240] sm:$0xff]
                %2737 = vst [vmem:[%s2639 + $0x180] sm:$0xff] %v2736
                %v2738 = vld [vmem:[%s2638 + $0x248] sm:$0xff]
                %2739 = vst [vmem:[%s2639 + $0x188] sm:$0xff] %v2738
                %v2740 = vld [vmem:[%s2638 + $0x280] sm:$0xff]
                %2741 = vst [vmem:[%s2639 + $0x190] sm:$0xff] %v2740
                %v2742 = vld [vmem:[%s2638 + $0x288] sm:$0xff]
                %2743 = vst [vmem:[%s2639 + $0x198] sm:$0xff] %v2742
                %v2744 = vld [vmem:[%s2638 + $0x290] sm:$0xff]
                %2745 = vst [vmem:[%s2639 + $0x1a0] sm:$0xff] %v2744
                %v2746 = vld [vmem:[%s2638 + $0x298] sm:$0xff]
                %2747 = vst [vmem:[%s2639 + $0x1a8] sm:$0xff] %v2746
                %v2748 = vld [vmem:[%s2638 + $0x2a0] sm:$0xff]
                %2749 = vst [vmem:[%s2639 + $0x1b0] sm:$0xff] %v2748
                %v2750 = vld [vmem:[%s2638 + $0x2a8] sm:$0xff]
                %2751 = vst [vmem:[%s2639 + $0x1b8] sm:$0xff] %v2750
                %v2752 = vld [vmem:[%s2638 + $0x2b0] sm:$0xff]
                %2753 = vst [vmem:[%s2639 + $0x1c0] sm:$0xff] %v2752
                %v2754 = vld [vmem:[%s2638 + $0x2b8] sm:$0xff]
                %2755 = vst [vmem:[%s2639 + $0x1c8] sm:$0xff] %v2754
                %v2756 = vld [vmem:[%s2638 + $0x2c0] sm:$0xff]
                %2757 = vst [vmem:[%s2639 + $0x1d0] sm:$0xff] %v2756
                %v2758 = vld [vmem:[%s2638 + $0x2c8] sm:$0xff]
                %2759 = vst [vmem:[%s2639 + $0x1d8] sm:$0xff] %v2758
                %v2760 = vld [vmem:[%s2638 + $0x300] sm:$0xff]
                %2761 = vst [vmem:[%s2639 + $0x1e0] sm:$0xff] %v2760
                %v2762 = vld [vmem:[%s2638 + $0x308] sm:$0xff]
                %2763 = vst [vmem:[%s2639 + $0x1e8] sm:$0xff] %v2762
                %v2764 = vld [vmem:[%s2638 + $0x310] sm:$0xff]
                %2765 = vst [vmem:[%s2639 + $0x1f0] sm:$0xff] %v2764
                %v2766 = vld [vmem:[%s2638 + $0x318] sm:$0xff]
                %2767 = vst [vmem:[%s2639 + $0x1f8] sm:$0xff] %v2766
                %v2768 = vld [vmem:[%s2638 + $0x320] sm:$0xff]
                %2769 = vst [vmem:[%s2639 + $0x200] sm:$0xff] %v2768
                %v2770 = vld [vmem:[%s2638 + $0x328] sm:$0xff]
                %2771 = vst [vmem:[%s2639 + $0x208] sm:$0xff] %v2770
                %v2772 = vld [vmem:[%s2638 + $0x330] sm:$0xff]
                %2773 = vst [vmem:[%s2639 + $0x210] sm:$0xff] %v2772
                %v2774 = vld [vmem:[%s2638 + $0x338] sm:$0xff]
                %2775 = vst [vmem:[%s2639 + $0x218] sm:$0xff] %v2774
                %v2776 = vld [vmem:[%s2638 + $0x340] sm:$0xff]
                %2777 = vst [vmem:[%s2639 + $0x220] sm:$0xff] %v2776
                %v2778 = vld [vmem:[%s2638 + $0x348] sm:$0xff]
                %2779 = vst [vmem:[%s2639 + $0x228] sm:$0xff] %v2778
                %v2780 = vld [vmem:[%s2638 + $0x380] sm:$0xff]
                %2781 = vst [vmem:[%s2639 + $0x230] sm:$0xff] %v2780
                %v2782 = vld [vmem:[%s2638 + $0x388] sm:$0xff]
                %2783 = vst [vmem:[%s2639 + $0x238] sm:$0xff] %v2782
                %v2784 = vld [vmem:[%s2638 + $0x390] sm:$0xff]
                %2785 = vst [vmem:[%s2639 + $0x240] sm:$0xff] %v2784
                %v2786 = vld [vmem:[%s2638 + $0x398] sm:$0xff]
                %2787 = vst [vmem:[%s2639 + $0x248] sm:$0xff] %v2786
                %v2788 = vld [vmem:[%s2638 + $0x3a0] sm:$0xff]
                %2789 = vst [vmem:[%s2639 + $0x250] sm:$0xff] %v2788
                %v2790 = vld [vmem:[%s2638 + $0x3a8] sm:$0xff]
                %2791 = vst [vmem:[%s2639 + $0x258] sm:$0xff] %v2790
                %v2792 = vld [vmem:[%s2638 + $0x3b0] sm:$0xff]
                %2793 = vst [vmem:[%s2639 + $0x260] sm:$0xff] %v2792
                %v2794 = vld [vmem:[%s2638 + $0x3b8] sm:$0xff]
                %2795 = vst [vmem:[%s2639 + $0x268] sm:$0xff] %v2794
                %v2796 = vld [vmem:[%s2638 + $0x3c0] sm:$0xff]
                %2797 = vst [vmem:[%s2639 + $0x270] sm:$0xff] %v2796
                %v2798 = vld [vmem:[%s2638 + $0x3c8] sm:$0xff]
                %2799 = vst [vmem:[%s2639 + $0x278] sm:$0xff] %v2798
              $region160: #{ladapter_forward.1} parent=154 // loop_footer
                %s2637 = sadd.s32 1, %s2633
              $region161: #{ladapter_forward.1} parent=154 // loop_footer_branch
                %2632 = sbr.rel target = $region157
              $region162: #{ladapter_forward.1} parent=154 // loop_exit
                _
            $region155: #{ladapter_forward.1} parent=139 // pred_fallthru
              _
            %p2800 = pneg %p2628
            // Predicated region
            $region163: #{ladapter_forward.1} parent=139 // pred_check
              _
            $region164: #{ladapter_forward.1} parent=139 // pred_check_branch
              %2802 = sbr.rel (%p2628) target = $region166
            $region165: #{ladapter_forward.1} parent=139 // pred_region
              %s2803 = sand.u32 80, 7
            $region166: #{ladapter_forward.1} parent=139 // pred_fallthru
              _
          $region140: #{ladapter_forward.1} parent=135 // pred_fallthru
            _
          // Predicated region
          $region141: #{ladapter_forward.1} parent=135 // pred_check
            %p2599 = pneg %p2595
          $region142: #{ladapter_forward.1} parent=135 // pred_check_branch
            %2601 = sbr.rel (%p2599) target = $region144
          $region143: #{ladapter_forward.1} parent=135 // pred_region
            %s2602 = sshllo.u32 0, 80
            loop: start=0, step=1, limit=1
            $region145: #{ladapter_forward.1} parent=143 // loop_pre_header
              _
            $region146: #{ladapter_forward.1} parent=143 // loop_header
              %s2604 = sphi 0, %s2608
              %p2605 = scmp.ge.s32.totalorder %s2604, 1
              %s2609 = sphi [#allocation4], [#allocation4]
              %s2610 = sphi %s7, %s7
            $region147: #{ladapter_forward.1} parent=143 // loop_header_branch
              %2607 = sbr.rel (%p2605) target = $region151
            $region148: #{ladapter_forward.1} parent=143 // loop_body
              %v2611 = vld [vmem:[%s2609] sm:%s2602]
              %2612 = vst [vmem:[%s2610] sm:%s2602] %v2611
              %v2613 = vld [vmem:[%s2609 + $0x80] sm:%s2602]
              %2614 = vst [vmem:[%s2610 + $0x50] sm:%s2602] %v2613
              %v2615 = vld [vmem:[%s2609 + $0x100] sm:%s2602]
              %2616 = vst [vmem:[%s2610 + $0xa0] sm:%s2602] %v2615
              %v2617 = vld [vmem:[%s2609 + $0x180] sm:%s2602]
              %2618 = vst [vmem:[%s2610 + $0xf0] sm:%s2602] %v2617
              %v2619 = vld [vmem:[%s2609 + $0x200] sm:%s2602]
              %2620 = vst [vmem:[%s2610 + $0x140] sm:%s2602] %v2619
              %v2621 = vld [vmem:[%s2609 + $0x280] sm:%s2602]
              %2622 = vst [vmem:[%s2610 + $0x190] sm:%s2602] %v2621
              %v2623 = vld [vmem:[%s2609 + $0x300] sm:%s2602]
              %2624 = vst [vmem:[%s2610 + $0x1e0] sm:%s2602] %v2623
              %v2625 = vld [vmem:[%s2609 + $0x380] sm:%s2602]
              %2626 = vst [vmem:[%s2610 + $0x230] sm:%s2602] %v2625
            $region149: #{ladapter_forward.1} parent=143 // loop_footer
              %s2608 = sadd.s32 1, %s2604
            $region150: #{ladapter_forward.1} parent=143 // loop_footer_branch
              %2603 = sbr.rel target = $region146
            $region151: #{ladapter_forward.1} parent=143 // loop_exit
              _
          $region144: #{ladapter_forward.1} parent=135 // pred_fallthru
            _
          // Predicated region
          $region167: #{ladapter_forward.1} parent=135 // pred_check
            _
          $region168: #{ladapter_forward.1} parent=135 // pred_check_branch
            %2806 = sbr.rel (0) target = $region170
          $region169: #{ladapter_forward.1} parent=135 // pred_region
            %2807 = vsyncadd [#allocation6], 10240
          $region170: #{ladapter_forward.1} parent=135 // pred_fallthru
            _
          %s2808 = smul.u32 8, 80
          %s2809 = smul.u32 %s2808, 1
          %s2810 = sshll.u32 %s2809, 4
          %2811 = dma.done [#allocation6], %s2810
        $region136: #{ladapter_forward.1} parent=89 // pred_fallthru
          _
      $region90: #{ladapter_forward.1} parent=43 // pred_fallthru
        _
    $region44: #{ladapter_forward.1} parent=5 // pred_fallthru
      _
  $region6: #{ladapter_forward.1} parent=0 // loop_footer
    %s17 = sadd.s32 1, %s13
  $region7: #{ladapter_forward.1} parent=0 // loop_footer_branch
    %12 = sbr.rel target = $region3
  $region8: #{ladapter_forward.1} parent=0 // loop_exit
    _
  %2812 = vsyncmov [#allocation5]
  %s2813 = vpop.sfrf %2812
  %p2814 = scmp.eq.s32.totalorder %s2813, 0
  %p2815 = pneg %p2814
  %2817 = shalt.err (%p2815)
  %s2818 = scalar_lea.sflag [#allocation5], 1
  %2819 = vsyncmov %s2818
  %s2820 = vpop.sfrf %2819
  %p2821 = scmp.eq.s32.totalorder %s2820, 0
  %p2822 = pneg %p2821
  %2824 = shalt.err (%p2822)
  %2825 = vsyncmov [#allocation6]
  %s2826 = vpop.sfrf %2825
  %p2827 = scmp.eq.s32.totalorder %s2826, 0
  %p2828 = pneg %p2827
  %2830 = shalt.err (%p2828)
  %s2831 = scalar_lea.sflag [#allocation6], 1
  %2832 = vsyncmov %s2831
  %s2833 = vpop.sfrf %2832
  %p2834 = scmp.eq.s32.totalorder %s2833, 0
  %p2835 = pneg %p2834
  %2837 = shalt.err (%p2835)

</llo_original>
